<compile_context>
chip_gen: v7x
topology: tpu7x:2x2x1
jax: 0.10.0
libtpu: 0.0.40
codegen_flags: <defaults>
</compile_context>

<pallas_src>
import numpy as np
import jax
import jax.numpy as jnp
from jax import lax
from jax.experimental import pallas as pl
from jax.experimental.pallas import tpu as pltpu


def _round_up(x, m):
    return ((x + m - 1) // m) * m


# ----------------------------------------------------------------------------
# Host-side (trace-time) constant builders
# ----------------------------------------------------------------------------
def _cubic1(t, A=-0.75):
    return ((A + 2.0) * t - (A + 3.0)) * t * t + 1.0


def _cubic2(t, A=-0.75):
    return ((A * t - 5.0 * A) * t + 8.0 * A) * t - 4.0 * A


def _bicubic_matrix(in_size, out_size):
    """(out_size, in_size) PyTorch bicubic interpolation matrix, align_corners=True."""
    Wm = np.zeros((out_size, in_size), dtype=np.float64)
    for i in range(out_size):
        src = 0.0 if out_size == 1 else i * (in_size - 1) / (out_size - 1)
        i0 = int(np.floor(src))
        t = src - i0
        coeffs = (_cubic2(t + 1.0), _cubic1(t), _cubic1(1.0 - t), _cubic2(2.0 - t))
        for k in range(4):
            idx = min(max(i0 - 1 + k, 0), in_size - 1)
            Wm[i, idx] += coeffs[k]
    return Wm


def _bicubic_kron(in_h, in_w, out_h, out_w, dtype=jnp.float32):
    """(in_h*in_w, out_h*out_w) matrix K so that x_flat @ K == resize(x)_flat."""
    wh = _bicubic_matrix(in_h, out_h)          # (out_h, in_h)
    ww = _bicubic_matrix(in_w, out_w)          # (out_w, in_w)
    k = np.kron(wh, ww).T.astype(np.float32)   # (in_h*in_w, out_h*out_w)
    return jnp.asarray(k).astype(dtype)


def _col_masks(w_img, hw_img, cmax):
    """(2, cmax, hw_img) f32 lane masks killing horizontal wrap for kx=0 / kx=2
    taps.  Pre-broadcast over channels so the kernel never emits broadcasts."""
    col = np.arange(hw_img) % w_img
    m0 = (col >= 1).astype(np.float32)           # kx = 0 taps read column x-1
    m2 = (col <= w_img - 2).astype(np.float32)   # kx = 2 taps read column x+1
    m = np.broadcast_to(np.stack([m0, m2])[:, None, :], (2, cmax, hw_img))
    return jnp.asarray(np.ascontiguousarray(m))


def _prep_w(w, k_pad):
    """Torch conv weight (Cout, Cin, 3, 3) -> (Cout, k_pad) bf16 im2col matrix.
    K index = kx*3*Cin + ky*Cin + cin, zero-padded up to k_pad columns."""
    cout, cin = w.shape[0], w.shape[1]
    w2d = jnp.transpose(w, (0, 3, 2, 1)).reshape(cout, 9 * cin)
    if k_pad > 9 * cin:
        w2d = jnp.concatenate(
            [w2d, jnp.zeros((cout, k_pad - 9 * cin), w2d.dtype)], axis=1)
    return w2d.astype(jnp.bfloat16)


def _row_layout(hw_img, w_img):
    """Zero-bordered row-scratch layout: [lead | img0 | gap | img1 | gap ...].
    lead and (hw_img + gap) are multiples of 128 so every image interior is
    lane-aligned; gap >= w_img+1 zeros implement the conv's vertical padding."""
    lead = _round_up(w_img + 1, 128)
    gap = (w_img + 1) + ((-(hw_img + w_img + 1)) % 128)
    return lead, hw_img + gap


# ----------------------------------------------------------------------------
# Fused LRBlock kernel (one grid step = one chunk of `bc` batch images)
# ----------------------------------------------------------------------------
def _make_lr_block_kernel(hr_h, hr_w, lr_h, lr_w, c_in, n_feat, bc):
    f32, bf16 = jnp.float32, jnp.bfloat16
    hw_hr, hw_lr = hr_h * hr_w, lr_h * lr_w
    n_hr, n_lr = bc * hw_hr, bc * hw_lr
    lead_hr, seg_hr = _row_layout(hw_hr, hr_w)
    lead_lr, seg_lr = _row_layout(hw_lr, lr_w)
    row_hr_len = lead_hr + bc * seg_hr
    row_lr_len = lead_lr + bc * seg_lr
    cmax = max(c_in, n_feat)
    kc = _round_up(9 * c_in, 8)     # padded im2col K for cin = c_in
    kf = _round_up(9 * n_feat, 8)   # padded im2col K for cin = n_feat

    def kernel(ms_ref, lrms_ref, dt_ref, ct_ref,
               w1a_ref, w1b_ref, w2a_ref, w2b_ref, w3a_ref, w3b_ref,
               kd_ref, ku_ref, mhr_ref, mlr_ref,
               dt_out_ref, lrres_out_ref,
               row_hr_ref, row_lr_ref,
               slab_hr_c_ref, slab_hr_f_ref, slab_lr_c_ref, slab_lr_f_ref):

        # Per-step init: zero the bordered row scratches (their zero gaps are
        # the conv's vertical 'zeros' padding) and the K-padding rows of the
        # cin=c_in slabs (their weight columns are zero, but 0 * stale-VMEM
        # garbage could be NaN).  Interiors are always fully overwritten.
        row_hr_ref[...] = jnp.zeros_like(row_hr_ref)
        row_lr_ref[...] = jnp.zeros_like(row_lr_ref)
        if kc > 9 * c_in:
            slab_hr_c_ref[9 * c_in:kc, :] = jnp.zeros((kc - 9 * c_in, n_hr), f32)
            slab_lr_c_ref[9 * c_in:kc, :] = jnp.zeros((kc - 9 * c_in, n_lr), f32)
        if kf > 9 * n_feat:
            slab_hr_f_ref[9 * n_feat:kf, :] = jnp.zeros((kf - 9 * n_feat, n_hr), f32)
            slab_lr_f_ref[9 * n_feat:kf, :] = jnp.zeros((kf - 9 * n_feat, n_lr), f32)

        def conv3x3(x, w_ref, row_ref, slab_ref, m_ref, w_img, hw_img, lead, seg):
            """3x3 zero-padded conv as ONE MXU matmul via an im2col slab.

            x: (cin, bc*hw_img) f32, images concatenated along lanes.
            Returns (cout, bc*hw_img) f32.
            """
            cin = x.shape[0]
            masks = m_ref[...]                      # (2, cmax, hw_img) f32
            m0 = masks[0, 0:cin, :]
            m2 = masks[1, 0:cin, :]
            # 1) scatter images into the zero-bordered row scratch
            for b in range(bc):
                off = lead + b * seg
                row_ref[0:cin, off:off + hw_img] = x[:, b * hw_img:(b + 1) * hw_img]
            # 2) im2col: stack the 9 statically shifted whole-image slices
            #    along the K (sublane) axis; one full-lane store per tap.
            for kx in range(3):
                for ky in range(3):
                    shift = (ky - 1) * w_img + (kx - 1)
                    parts = []
                    for b in range(bc):
                        base = lead + b * seg + shift
                        v = row_ref[0:cin, base:base + hw_img]
                        if kx == 0:
                            v = v * m0          # kill column wrap (reads x-1)
                        elif kx == 2:
                            v = v * m2          # kill column wrap (reads x+1)
                        parts.append(v)
                    tap = parts[0] if bc == 1 else jnp.concatenate(parts, axis=1)
                    r0 = (kx * 3 + ky) * cin
                    slab_ref[r0:r0 + cin, :] = tap
            # 3) single MXU matmul: (cout, K) x (K, bc*hw), bf16 in, f32 acc
            return jnp.dot(w_ref[...], slab_ref[...].astype(bf16),
                           preferred_element_type=f32)

        def basic_unit(x, wa_ref, wb_ref, row_ref, slab_a_ref, slab_b_ref,
                       m_ref, w_img, hw_img, lead, seg):
            mid = jnp.maximum(conv3x3(x, wa_ref, row_ref, slab_a_ref, m_ref,
                                      w_img, hw_img, lead, seg), 0.0)
            return conv3x3(mid, wb_ref, row_ref, slab_b_ref, m_ref,
                           w_img, hw_img, lead, seg)

        def resize(x, k_ref, hw_in):
            # Bicubic resize (align_corners=True) as one matmul per image with
            # the precomputed kron(wh, ww) matrix.
            # TODO(synk): separable row/col resize for large images (kron is
            # O(hw_in*hw_out) and is the first thing to exceed v7x VMEM).
            k = k_ref[...]
            parts = [jnp.dot(x[:, b * hw_in:(b + 1) * hw_in].astype(bf16), k,
                             preferred_element_type=f32) for b in range(bc)]
            return parts[0] if bc == 1 else jnp.concatenate(parts, axis=1)

        # HR = N1(MS + Dt)
        hr = basic_unit(ms_ref[...] + dt_ref[...], w1a_ref, w1b_ref,
                        row_hr_ref, slab_hr_c_ref, slab_hr_f_ref,
                        mhr_ref, hr_w, hw_hr, lead_hr, seg_hr)
        # LR_hat = bicubic(HR -> (lr_h, lr_w))
        lr_hat = resize(hr, kd_ref, hw_hr)
        # LR_Residual = N2(LR_hat - lrms)
        lr_res = basic_unit(lr_hat - lrms_ref[...], w2a_ref, w2b_ref,
                            row_lr_ref, slab_lr_c_ref, slab_lr_f_ref,
                            mlr_ref, lr_w, hw_lr, lead_lr, seg_lr)
        # R = bicubic(LR_Residual -> (hr_h, hr_w))
        r = resize(lr_res, ku_ref, hw_lr)
        # Dt_new = prox(Dt - R - Ct)
        dt_new = basic_unit(dt_ref[...] - r - ct_ref[...], w3a_ref, w3b_ref,
                            row_hr_ref, slab_hr_c_ref, slab_hr_f_ref,
                            mhr_ref, hr_w, hw_hr, lead_hr, seg_hr)

        dt_out_ref[...] = dt_new
        lrres_out_ref[...] = lr_res

    scratch = [
        pltpu.VMEM((cmax, row_hr_len), jnp.float32),   # bordered HR row buf
        pltpu.VMEM((cmax, row_lr_len), jnp.float32),   # bordered LR row buf
        pltpu.VMEM((kc, n_hr), jnp.float32),           # im2col slab HR, cin=C
        pltpu.VMEM((kf, n_hr), jnp.float32),           # im2col slab HR, cin=F
        pltpu.VMEM((kc, n_lr), jnp.float32),           # im2col slab LR, cin=C
        pltpu.VMEM((kf, n_lr), jnp.float32),           # im2col slab LR, cin=F
    ]
    return kernel, scratch, (kc, kf)


def _pick_num_chunks(batch):
    kind = ""
    try:
        kind = jax.devices()[0].device_kind.lower()
    except Exception:
        pass
    # v7x has 2 TensorCores per chip -> keep 2 "parallel" grid steps there;
    # v5e / v6e have a single TC -> collapse the whole batch into one step.
    nc = 2 if ("v7" in kind and batch % 2 == 0) else 1
    # Bound per-step VMEM: pack at most 8 images per grid step.
    while batch // nc > 8 and batch % (nc * 2) == 0:
        nc *= 2
    return nc


# ----------------------------------------------------------------------------
# LRBlock forward (NCHW in / NCHW out)
# ----------------------------------------------------------------------------
def lr_block(MS, lrms, Dt, Ct, params, num_chunks=None):
    B, C, H, W = MS.shape
    h, w = lrms.shape[2], lrms.shape[3]
    F = params["n1"][0].shape[0]
    HW_HR, HW_LR = H * W, h * w

    nc = _pick_num_chunks(B) if num_chunks is None else num_chunks
    assert B % nc == 0
    bc = B // nc
    N_HR, N_LR = bc * HW_HR, bc * HW_LR
    cmax = max(C, F)

    def to_chunks(x, hw):
        # (B, C, H, W) -> (nc, C, bc*hw): the bc images of a chunk are
        # concatenated along lanes per channel (tiny host-side transpose).
        return (x.reshape(nc, bc, C, hw).transpose(0, 2, 1, 3)
                .reshape(nc, C, bc * hw))

    msf = to_chunks(MS, HW_HR)
    dtf = to_chunks(Dt, HW_HR)
    ctf = to_chunks(Ct, HW_HR)
    lrmsf = to_chunks(lrms, HW_LR)

    kernel, scratch_shapes, (kc, kf) = _make_lr_block_kernel(H, W, h, w, C, F, bc)

    w1a, w1b = _prep_w(params["n1"][0], kc), _prep_w(params["n1"][1], kf)
    w2a, w2b = _prep_w(params["n2"][0], kc), _prep_w(params["n2"][1], kf)
    w3a, w3b = _prep_w(params["prox"][0], kc), _prep_w(params["prox"][1], kf)

    kd = _bicubic_kron(H, W, h, w, jnp.bfloat16)   # (HW_HR, HW_LR) downsample
    ku = _bicubic_kron(h, w, H, W, jnp.bfloat16)   # (HW_LR, HW_HR) upsample
    m_hr = _col_masks(W, HW_HR, cmax)              # (2, cmax, HW_HR)
    m_lr = _col_masks(w, HW_LR, cmax)              # (2, cmax, HW_LR)

    per_chunk = lambda i: (i, 0, 0)
    bc2 = lambda i: (0, 0)
    bc3 = lambda i: (0, 0, 0)

    dt_f, lrres_f = pl.pallas_call(
        kernel,
        out_shape=(jax.ShapeDtypeStruct((nc, C, N_HR), jnp.float32),
                   jax.ShapeDtypeStruct((nc, C, N_LR), jnp.float32)),
        grid_spec=pltpu.PrefetchScalarGridSpec(
            num_scalar_prefetch=0,
            grid=(nc,),
            in_specs=[
                pl.BlockSpec((None, C, N_HR), per_chunk),   # MS
                pl.BlockSpec((None, C, N_LR), per_chunk),   # lrms
                pl.BlockSpec((None, C, N_HR), per_chunk),   # Dt
                pl.BlockSpec((None, C, N_HR), per_chunk),   # Ct
                pl.BlockSpec((F, kc), bc2),                 # n1 conv1
                pl.BlockSpec((C, kf), bc2),                 # n1 conv2
                pl.BlockSpec((F, kc), bc2),                 # n2 conv1
                pl.BlockSpec((C, kf), bc2),                 # n2 conv2
                pl.BlockSpec((F, kc), bc2),                 # prox conv1
                pl.BlockSpec((C, kf), bc2),                 # prox conv2
                pl.BlockSpec((HW_HR, HW_LR), bc2),          # bicubic down
                pl.BlockSpec((HW_LR, HW_HR), bc2),          # bicubic up
                pl.BlockSpec((2, cmax, HW_HR), bc3),        # HR col masks
                pl.BlockSpec((2, cmax, HW_LR), bc3),        # LR col masks
            ],
            out_specs=[
                pl.BlockSpec((None, C, N_HR), per_chunk),   # Dt_new
                pl.BlockSpec((None, C, N_LR), per_chunk),   # LR_Residual
            ],
            scratch_shapes=scratch_shapes,
        ),
        compiler_params=pltpu.CompilerParams(
            dimension_semantics=("parallel",)),
    )(msf, lrmsf, dtf, ctf, w1a, w1b, w2a, w2b, w3a, w3b, kd, ku, m_hr, m_lr)

    def from_chunks(y, hh, ww):
        return (y.reshape(nc, C, bc, hh, ww).transpose(0, 2, 1, 3, 4)
                .reshape(B, C, hh, ww))

    return from_chunks(dt_f, H, W), from_chunks(lrres_f, h, w)


# ----------------------------------------------------------------------------
# Pure-JAX f32 reference (lax.conv + the same bicubic interp matrices)
# ----------------------------------------------------------------------------
def _ref_forward(MS, lrms, Dt, Ct, params):
    H, W = MS.shape[2], MS.shape[3]
    h, w = lrms.shape[2], lrms.shape[3]

    def conv(x, wgt):
        return lax.conv_general_dilated(
            x, wgt, (1, 1), ((1, 1), (1, 1)),
            dimension_numbers=("NCHW", "OIHW", "NCHW"))

    def unit(x, ws):
        return conv(jnp.maximum(conv(x, ws[0]), 0.0), ws[1])

    def resize(x, oh, ow):
        b, c, ih, iw = x.shape
        k = _bicubic_kron(ih, iw, oh, ow, jnp.float32)
        return (x.reshape(b, c, ih * iw) @ k).reshape(b, c, oh, ow)

    hr = unit(MS + Dt, params["n1"])
    lr_hat = resize(hr, h, w)
    lr_res = unit(lr_hat - lrms, params["n2"])
    r = resize(lr_res, H, W)
    dt_new = unit(Dt - r - Ct, params["prox"])
    return dt_new, lr_res


if __name__ == "__main__":
    key = jax.random.PRNGKey(0)
    ks = jax.random.split(key, 10)

    B, C, M, N = 2, 4, 16, 16        # ms_channels = 4
    m, n = 8, 8
    F = 8                            # n_feat

    MS = jax.random.normal(ks[0], (B, C, M, N), jnp.float32)
    lrms = jax.random.normal(ks[1], (B, C, m, n), jnp.float32)
    Dt = jax.random.normal(ks[2], (B, C, M, N), jnp.float32)
    Ct = jax.random.normal(ks[3], (B, C, M, N), jnp.float32)

    def conv_w(k, cout, cin):
        return 0.1 * jax.random.normal(k, (cout, cin, 3, 3), jnp.float32)

    params = {
        "n1": (conv_w(ks[4], F, C), conv_w(ks[5], C, F)),
        "n2": (conv_w(ks[6], F, C), conv_w(ks[7], C, F)),
        "prox": (conv_w(ks[8], F, C), conv_w(ks[9], C, F)),
    }

    Dt_out, LR_res = jax.jit(lr_block)(MS, lrms, Dt, Ct, params)
    jax.block_until_ready((Dt_out, LR_res))

    assert Dt_out.shape == (B, C, M, N)
    assert LR_res.shape == (B, C, m, n)
    assert bool(jnp.all(jnp.isfinite(Dt_out))) and bool(jnp.all(jnp.isfinite(LR_res)))

    # Correctness vs. a pure-JAX f32 reference (loose tolerance: the kernel
    # feeds the MXU bf16 operands with f32 accumulation).
    Dt_ref, LR_ref = jax.jit(_ref_forward)(MS, lrms, Dt, Ct, params)
    np.testing.assert_allclose(np.asarray(Dt_out), np.asarray(Dt_ref),
                               rtol=0.1, atol=0.1)
    np.testing.assert_allclose(np.asarray(LR_res), np.asarray(LR_ref),
                               rtol=0.1, atol=0.1)
    print("KERNEL_OK")
</pallas_src>

<mosaic_0001>
module attributes {stable_mosaic.version = 11 : i64} {
  func.func @kernel(%arg0: i32, %arg1: memref<1x4x512xf32, #tpu.memory_space<vmem>>, %arg2: memref<1x4x128xf32, #tpu.memory_space<vmem>>, %arg3: memref<1x4x512xf32, #tpu.memory_space<vmem>>, %arg4: memref<1x4x512xf32, #tpu.memory_space<vmem>>, %arg5: memref<8x40xbf16, #tpu.memory_space<vmem>>, %arg6: memref<4x72xbf16, #tpu.memory_space<vmem>>, %arg7: memref<8x40xbf16, #tpu.memory_space<vmem>>, %arg8: memref<4x72xbf16, #tpu.memory_space<vmem>>, %arg9: memref<8x40xbf16, #tpu.memory_space<vmem>>, %arg10: memref<4x72xbf16, #tpu.memory_space<vmem>>, %arg11: memref<256x64xbf16, #tpu.memory_space<vmem>>, %arg12: memref<64x256xbf16, #tpu.memory_space<vmem>>, %arg13: memref<2x8x256xf32, #tpu.memory_space<vmem>>, %arg14: memref<2x8x64xf32, #tpu.memory_space<vmem>>, %arg15: memref<1x4x512xf32, #tpu.memory_space<vmem>>, %arg16: memref<1x4x128xf32, #tpu.memory_space<vmem>>, %arg17: memref<8x896xf32, #tpu.memory_space<vmem>>, %arg18: memref<8x384xf32, #tpu.memory_space<vmem>>, %arg19: memref<40x512xf32, #tpu.memory_space<vmem>>, %arg20: memref<72x512xf32, #tpu.memory_space<vmem>>, %arg21: memref<40x128xf32, #tpu.memory_space<vmem>>, %arg22: memref<72x128xf32, #tpu.memory_space<vmem>>) attributes {dimension_semantics = [#tpu.dimension_semantics<parallel>], iteration_bounds = array<i64: 1>, scalar_prefetch = 0 : i64, scratch_operands = 6 : i64, tpu.core_type = #tpu.core_type<tc>, window_params = [{transform_indices = @transform_0, window_bounds = array<i64: 1, 4, 512>}, {transform_indices = @transform_1, window_bounds = array<i64: 1, 4, 128>}, {transform_indices = @transform_2, window_bounds = array<i64: 1, 4, 512>}, {transform_indices = @transform_3, window_bounds = array<i64: 1, 4, 512>}, {pipeline_mode = #tpu.pipeline_mode<synchronous>, transform_indices = @transform_4, window_bounds = array<i64: 8, 40>}, {pipeline_mode = #tpu.pipeline_mode<synchronous>, transform_indices = @transform_5, window_bounds = array<i64: 4, 72>}, {pipeline_mode = #tpu.pipeline_mode<synchronous>, transform_indices = @transform_6, window_bounds = array<i64: 8, 40>}, {pipeline_mode = #tpu.pipeline_mode<synchronous>, transform_indices = @transform_7, window_bounds = array<i64: 4, 72>}, {pipeline_mode = #tpu.pipeline_mode<synchronous>, transform_indices = @transform_8, window_bounds = array<i64: 8, 40>}, {pipeline_mode = #tpu.pipeline_mode<synchronous>, transform_indices = @transform_9, window_bounds = array<i64: 4, 72>}, {pipeline_mode = #tpu.pipeline_mode<synchronous>, transform_indices = @transform_10, window_bounds = array<i64: 256, 64>}, {pipeline_mode = #tpu.pipeline_mode<synchronous>, transform_indices = @transform_11, window_bounds = array<i64: 64, 256>}, {pipeline_mode = #tpu.pipeline_mode<synchronous>, transform_indices = @transform_12, window_bounds = array<i64: 2, 8, 256>}, {pipeline_mode = #tpu.pipeline_mode<synchronous>, transform_indices = @transform_13, window_bounds = array<i64: 2, 8, 64>}, {transform_indices = @transform_14, window_bounds = array<i64: 1, 4, 512>}, {transform_indices = @transform_15, window_bounds = array<i64: 1, 4, 128>}]} {
    %cst = arith.constant 0.000000e+00 : f32
    %0 = vector.broadcast %cst : f32 to vector<8x896xf32>
    %c0 = arith.constant 0 : index
    %c0_0 = arith.constant 0 : index
    %1 = vector.load %arg17[%c0, %c0_0] : memref<8x896xf32, #tpu.memory_space<vmem>>, vector<8x896xf32>
    tpu.vector_store %arg17[%c0, %c0_0], %0 {strides = array<i32>} : memref<8x896xf32, #tpu.memory_space<vmem>>, vector<8x896xf32>,
    %cst_1 = arith.constant 0.000000e+00 : f32
    %2 = vector.broadcast %cst_1 : f32 to vector<8x384xf32>
    %c0_2 = arith.constant 0 : index
    %c0_3 = arith.constant 0 : index
    %3 = vector.load %arg18[%c0_2, %c0_3] : memref<8x384xf32, #tpu.memory_space<vmem>>, vector<8x384xf32>
    tpu.vector_store %arg18[%c0_2, %c0_3], %2 {strides = array<i32>} : memref<8x384xf32, #tpu.memory_space<vmem>>, vector<8x384xf32>,
    %cst_4 = arith.constant 0.000000e+00 : f32
    %4 = vector.broadcast %cst_4 : f32 to vector<4x512xf32>
    %c36 = arith.constant 36 : index
    %c0_5 = arith.constant 0 : index
    %5 = vector.load %arg19[%c36, %c0_5] : memref<40x512xf32, #tpu.memory_space<vmem>>, vector<4x512xf32>
    tpu.vector_store %arg19[%c36, %c0_5], %4 {strides = array<i32>} : memref<40x512xf32, #tpu.memory_space<vmem>>, vector<4x512xf32>,
    %cst_6 = arith.constant 0.000000e+00 : f32
    %6 = vector.broadcast %cst_6 : f32 to vector<4x128xf32>
    %c36_7 = arith.constant 36 : index
    %c0_8 = arith.constant 0 : index
    %7 = vector.load %arg21[%c36_7, %c0_8] : memref<40x128xf32, #tpu.memory_space<vmem>>, vector<4x128xf32>
    tpu.vector_store %arg21[%c36_7, %c0_8], %6 {strides = array<i32>} : memref<40x128xf32, #tpu.memory_space<vmem>>, vector<4x128xf32>,
    %c0_9 = arith.constant 0 : index
    %c0_10 = arith.constant 0 : index
    %c0_11 = arith.constant 0 : index
    %8 = vector.load %arg1[%c0_9, %c0_10, %c0_11] : memref<1x4x512xf32, #tpu.memory_space<vmem>>, vector<1x4x512xf32>
    %9 = vector.shape_cast %8 : vector<1x4x512xf32> to vector<4x512xf32>
    %c0_12 = arith.constant 0 : index
    %c0_13 = arith.constant 0 : index
    %c0_14 = arith.constant 0 : index
    %10 = vector.load %arg3[%c0_12, %c0_13, %c0_14] : memref<1x4x512xf32, #tpu.memory_space<vmem>>, vector<1x4x512xf32>
    %11 = vector.shape_cast %10 : vector<1x4x512xf32> to vector<4x512xf32>
    %12 = arith.addf %9, %11 : vector<4x512xf32>
    %c0_15 = arith.constant 0 : index
    %c0_16 = arith.constant 0 : index
    %c0_17 = arith.constant 0 : index
    %13 = vector.load %arg13[%c0_15, %c0_16, %c0_17] : memref<2x8x256xf32, #tpu.memory_space<vmem>>, vector<2x8x256xf32>
    %14 = vector.extract_strided_slice %13 {offsets = [0, 0, 0], sizes = [1, 4, 256], strides = [1, 1, 1]} : vector<2x8x256xf32> to vector<1x4x256xf32>
    %15 = vector.shape_cast %14 : vector<1x4x256xf32> to vector<4x256xf32>
    %16 = vector.extract_strided_slice %13 {offsets = [1, 0, 0], sizes = [1, 4, 256], strides = [1, 1, 1]} : vector<2x8x256xf32> to vector<1x4x256xf32>
    %17 = vector.shape_cast %16 : vector<1x4x256xf32> to vector<4x256xf32>
    %18 = vector.extract_strided_slice %12 {offsets = [0, 0], sizes = [4, 256], strides = [1, 1]} : vector<4x512xf32> to vector<4x256xf32>
    %c0_18 = arith.constant 0 : index
    %c128 = arith.constant 128 : index
    %19 = vector.load %arg17[%c0_18, %c128] : memref<8x896xf32, #tpu.memory_space<vmem>>, vector<4x256xf32>
    tpu.vector_store %arg17[%c0_18, %c128], %18 {strides = array<i32>} : memref<8x896xf32, #tpu.memory_space<vmem>>, vector<4x256xf32>,
    %20 = vector.extract_strided_slice %12 {offsets = [0, 256], sizes = [4, 256], strides = [1, 1]} : vector<4x512xf32> to vector<4x256xf32>
    %c0_19 = arith.constant 0 : index
    %c512 = arith.constant 512 : index
    %21 = vector.load %arg17[%c0_19, %c512] : memref<8x896xf32, #tpu.memory_space<vmem>>, vector<4x256xf32>
    tpu.vector_store %arg17[%c0_19, %c512], %20 {strides = array<i32>} : memref<8x896xf32, #tpu.memory_space<vmem>>, vector<4x256xf32>,
    %c0_20 = arith.constant 0 : index
    %c111 = arith.constant 111 : index
    %22 = vector.load %arg17[%c0_20, %c111] : memref<8x896xf32, #tpu.memory_space<vmem>>, vector<4x256xf32>
    %23 = arith.mulf %22, %15 : vector<4x256xf32>
    %c0_21 = arith.constant 0 : index
    %c495 = arith.constant 495 : index
    %24 = vector.load %arg17[%c0_21, %c495] : memref<8x896xf32, #tpu.memory_space<vmem>>, vector<4x256xf32>
    %25 = arith.mulf %24, %15 : vector<4x256xf32>
    %26 = tpu.concatenate %23, %25 in 1 : vector<4x256xf32>, vector<4x256xf32> -> vector<4x512xf32>
    %c0_22 = arith.constant 0 : index
    %c0_23 = arith.constant 0 : index
    %27 = vector.load %arg19[%c0_22, %c0_23] : memref<40x512xf32, #tpu.memory_space<vmem>>, vector<4x512xf32>
    tpu.vector_store %arg19[%c0_22, %c0_23], %26 {strides = array<i32>} : memref<40x512xf32, #tpu.memory_space<vmem>>, vector<4x512xf32>,
    %c0_24 = arith.constant 0 : index
    %c127 = arith.constant 127 : index
    %28 = vector.load %arg17[%c0_24, %c127] : memref<8x896xf32, #tpu.memory_space<vmem>>, vector<4x256xf32>
    %29 = arith.mulf %28, %15 : vector<4x256xf32>
    %c0_25 = arith.constant 0 : index
    %c511 = arith.constant 511 : index
    %30 = vector.load %arg17[%c0_25, %c511] : memref<8x896xf32, #tpu.memory_space<vmem>>, vector<4x256xf32>
    %31 = arith.mulf %30, %15 : vector<4x256xf32>
    %32 = tpu.concatenate %29, %31 in 1 : vector<4x256xf32>, vector<4x256xf32> -> vector<4x512xf32>
    %c4 = arith.constant 4 : index
    %c0_26 = arith.constant 0 : index
    %33 = vector.load %arg19[%c4, %c0_26] : memref<40x512xf32, #tpu.memory_space<vmem>>, vector<4x512xf32>
    tpu.vector_store %arg19[%c4, %c0_26], %32 {strides = array<i32>} : memref<40x512xf32, #tpu.memory_space<vmem>>, vector<4x512xf32>,
    %c0_27 = arith.constant 0 : index
    %c143 = arith.constant 143 : index
    %34 = vector.load %arg17[%c0_27, %c143] : memref<8x896xf32, #tpu.memory_space<vmem>>, vector<4x256xf32>
    %35 = arith.mulf %34, %15 : vector<4x256xf32>
    %c0_28 = arith.constant 0 : index
    %c527 = arith.constant 527 : index
    %36 = vector.load %arg17[%c0_28, %c527] : memref<8x896xf32, #tpu.memory_space<vmem>>, vector<4x256xf32>
    %37 = arith.mulf %36, %15 : vector<4x256xf32>
    %38 = tpu.concatenate %35, %37 in 1 : vector<4x256xf32>, vector<4x256xf32> -> vector<4x512xf32>
    %c8 = arith.constant 8 : index
    %c0_29 = arith.constant 0 : index
    %39 = vector.load %arg19[%c8, %c0_29] : memref<40x512xf32, #tpu.memory_space<vmem>>, vector<4x512xf32>
    tpu.vector_store %arg19[%c8, %c0_29], %38 {strides = array<i32>} : memref<40x512xf32, #tpu.memory_space<vmem>>, vector<4x512xf32>,
    %c0_30 = arith.constant 0 : index
    %c112 = arith.constant 112 : index
    %40 = vector.load %arg17[%c0_30, %c112] : memref<8x896xf32, #tpu.memory_space<vmem>>, vector<4x256xf32>
    %c0_31 = arith.constant 0 : index
    %c496 = arith.constant 496 : index
    %41 = vector.load %arg17[%c0_31, %c496] : memref<8x896xf32, #tpu.memory_space<vmem>>, vector<4x256xf32>
    %42 = tpu.concatenate %40, %41 in 1 : vector<4x256xf32>, vector<4x256xf32> -> vector<4x512xf32>
    %c12 = arith.constant 12 : index
    %c0_32 = arith.constant 0 : index
    %43 = vector.load %arg19[%c12, %c0_32] : memref<40x512xf32, #tpu.memory_space<vmem>>, vector<4x512xf32>
    tpu.vector_store %arg19[%c12, %c0_32], %42 {strides = array<i32>} : memref<40x512xf32, #tpu.memory_space<vmem>>, vector<4x512xf32>,
    %c0_33 = arith.constant 0 : index
    %c128_34 = arith.constant 128 : index
    %44 = vector.load %arg17[%c0_33, %c128_34] : memref<8x896xf32, #tpu.memory_space<vmem>>, vector<4x256xf32>
    %c0_35 = arith.constant 0 : index
    %c512_36 = arith.constant 512 : index
    %45 = vector.load %arg17[%c0_35, %c512_36] : memref<8x896xf32, #tpu.memory_space<vmem>>, vector<4x256xf32>
    %46 = tpu.concatenate %44, %45 in 1 : vector<4x256xf32>, vector<4x256xf32> -> vector<4x512xf32>
    %c16 = arith.constant 16 : index
    %c0_37 = arith.constant 0 : index
    %47 = vector.load %arg19[%c16, %c0_37] : memref<40x512xf32, #tpu.memory_space<vmem>>, vector<4x512xf32>
    tpu.vector_store %arg19[%c16, %c0_37], %46 {strides = array<i32>} : memref<40x512xf32, #tpu.memory_space<vmem>>, vector<4x512xf32>,
    %c0_38 = arith.constant 0 : index
    %c144 = arith.constant 144 : index
    %48 = vector.load %arg17[%c0_38, %c144] : memref<8x896xf32, #tpu.memory_space<vmem>>, vector<4x256xf32>
    %c0_39 = arith.constant 0 : index
    %c528 = arith.constant 528 : index
    %49 = vector.load %arg17[%c0_39, %c528] : memref<8x896xf32, #tpu.memory_space<vmem>>, vector<4x256xf32>
    %50 = tpu.concatenate %48, %49 in 1 : vector<4x256xf32>, vector<4x256xf32> -> vector<4x512xf32>
    %c20 = arith.constant 20 : index
    %c0_40 = arith.constant 0 : index
    %51 = vector.load %arg19[%c20, %c0_40] : memref<40x512xf32, #tpu.memory_space<vmem>>, vector<4x512xf32>
    tpu.vector_store %arg19[%c20, %c0_40], %50 {strides = array<i32>} : memref<40x512xf32, #tpu.memory_space<vmem>>, vector<4x512xf32>,
    %c0_41 = arith.constant 0 : index
    %c113 = arith.constant 113 : index
    %52 = vector.load %arg17[%c0_41, %c113] : memref<8x896xf32, #tpu.memory_space<vmem>>, vector<4x256xf32>
    %53 = arith.mulf %52, %17 : vector<4x256xf32>
    %c0_42 = arith.constant 0 : index
    %c497 = arith.constant 497 : index
    %54 = vector.load %arg17[%c0_42, %c497] : memref<8x896xf32, #tpu.memory_space<vmem>>, vector<4x256xf32>
    %55 = arith.mulf %54, %17 : vector<4x256xf32>
    %56 = tpu.concatenate %53, %55 in 1 : vector<4x256xf32>, vector<4x256xf32> -> vector<4x512xf32>
    %c24 = arith.constant 24 : index
    %c0_43 = arith.constant 0 : index
    %57 = vector.load %arg19[%c24, %c0_43] : memref<40x512xf32, #tpu.memory_space<vmem>>, vector<4x512xf32>
    tpu.vector_store %arg19[%c24, %c0_43], %56 {strides = array<i32>} : memref<40x512xf32, #tpu.memory_space<vmem>>, vector<4x512xf32>,
    %c0_44 = arith.constant 0 : index
    %c129 = arith.constant 129 : index
    %58 = vector.load %arg17[%c0_44, %c129] : memref<8x896xf32, #tpu.memory_space<vmem>>, vector<4x256xf32>
    %59 = arith.mulf %58, %17 : vector<4x256xf32>
    %c0_45 = arith.constant 0 : index
    %c513 = arith.constant 513 : index
    %60 = vector.load %arg17[%c0_45, %c513] : memref<8x896xf32, #tpu.memory_space<vmem>>, vector<4x256xf32>
    %61 = arith.mulf %60, %17 : vector<4x256xf32>
    %62 = tpu.concatenate %59, %61 in 1 : vector<4x256xf32>, vector<4x256xf32> -> vector<4x512xf32>
    %c28 = arith.constant 28 : index
    %c0_46 = arith.constant 0 : index
    %63 = vector.load %arg19[%c28, %c0_46] : memref<40x512xf32, #tpu.memory_space<vmem>>, vector<4x512xf32>
    tpu.vector_store %arg19[%c28, %c0_46], %62 {strides = array<i32>} : memref<40x512xf32, #tpu.memory_space<vmem>>, vector<4x512xf32>,
    %c0_47 = arith.constant 0 : index
    %c145 = arith.constant 145 : index
    %64 = vector.load %arg17[%c0_47, %c145] : memref<8x896xf32, #tpu.memory_space<vmem>>, vector<4x256xf32>
    %65 = arith.mulf %64, %17 : vector<4x256xf32>
    %c0_48 = arith.constant 0 : index
    %c529 = arith.constant 529 : index
    %66 = vector.load %arg17[%c0_48, %c529] : memref<8x896xf32, #tpu.memory_space<vmem>>, vector<4x256xf32>
    %67 = arith.mulf %66, %17 : vector<4x256xf32>
    %68 = tpu.concatenate %65, %67 in 1 : vector<4x256xf32>, vector<4x256xf32> -> vector<4x512xf32>
    %c32 = arith.constant 32 : index
    %c0_49 = arith.constant 0 : index
    %69 = vector.load %arg19[%c32, %c0_49] : memref<40x512xf32, #tpu.memory_space<vmem>>, vector<4x512xf32>
    tpu.vector_store %arg19[%c32, %c0_49], %68 {strides = array<i32>} : memref<40x512xf32, #tpu.memory_space<vmem>>, vector<4x512xf32>,
    %c0_50 = arith.constant 0 : index
    %c0_51 = arith.constant 0 : index
    %70 = vector.load %arg5[%c0_50, %c0_51] : memref<8x40xbf16, #tpu.memory_space<vmem>>, vector<8x40xbf16>
    %c0_52 = arith.constant 0 : index
    %c0_53 = arith.constant 0 : index
    %71 = vector.load %arg19[%c0_52, %c0_53] : memref<40x512xf32, #tpu.memory_space<vmem>>, vector<40x512xf32>
    %72 = arith.truncf %71 : vector<40x512xf32> to vector<40x512xbf16>
    %cst_54 = arith.constant dense<0.000000e+00> : vector<8x512xf32>
    %73 = tpu.matmul %70, %72, %cst_54 {dimension_numbers = #tpu.dot_dimension_numbers<[1], [0], [0], [1], [0, 0, 1, 1], [], []>} : vector<8x40xbf16>, vector<40x512xbf16>, vector<8x512xf32> -> vector<8x512xf32>
    %cst_55 = arith.constant 0.000000e+00 : f32
    %74 = vector.broadcast %cst_55 : f32 to vector<8x512xf32>
    %75 = arith.maximumf %73, %74 : vector<8x512xf32>
    %c0_56 = arith.constant 0 : index
    %c0_57 = arith.constant 0 : index
    %c0_58 = arith.constant 0 : index
    %76 = vector.load %arg13[%c0_56, %c0_57, %c0_58] : memref<2x8x256xf32, #tpu.memory_space<vmem>>, vector<2x8x256xf32>
    %77 = vector.extract_strided_slice %76 {offsets = [0, 0, 0], sizes = [1, 8, 256], strides = [1, 1, 1]} : vector<2x8x256xf32> to vector<1x8x256xf32>
    %78 = vector.shape_cast %77 : vector<1x8x256xf32> to vector<8x256xf32>
    %79 = vector.extract_strided_slice %76 {offsets = [1, 0, 0], sizes = [1, 8, 256], strides = [1, 1, 1]} : vector<2x8x256xf32> to vector<1x8x256xf32>
    %80 = vector.shape_cast %79 : vector<1x8x256xf32> to vector<8x256xf32>
    %81 = vector.extract_strided_slice %75 {offsets = [0, 0], sizes = [8, 256], strides = [1, 1]} : vector<8x512xf32> to vector<8x256xf32>
    %c0_59 = arith.constant 0 : index
    %c128_60 = arith.constant 128 : index
    %82 = vector.load %arg17[%c0_59, %c128_60] : memref<8x896xf32, #tpu.memory_space<vmem>>, vector<8x256xf32>
    tpu.vector_store %arg17[%c0_59, %c128_60], %81 {strides = array<i32>} : memref<8x896xf32, #tpu.memory_space<vmem>>, vector<8x256xf32>,
    %83 = vector.extract_strided_slice %75 {offsets = [0, 256], sizes = [8, 256], strides = [1, 1]} : vector<8x512xf32> to vector<8x256xf32>
    %c0_61 = arith.constant 0 : index
    %c512_62 = arith.constant 512 : index
    %84 = vector.load %arg17[%c0_61, %c512_62] : memref<8x896xf32, #tpu.memory_space<vmem>>, vector<8x256xf32>
    tpu.vector_store %arg17[%c0_61, %c512_62], %83 {strides = array<i32>} : memref<8x896xf32, #tpu.memory_space<vmem>>, vector<8x256xf32>,
    %c0_63 = arith.constant 0 : index
    %c111_64 = arith.constant 111 : index
    %85 = vector.load %arg17[%c0_63, %c111_64] : memref<8x896xf32, #tpu.memory_space<vmem>>, vector<8x256xf32>
    %86 = arith.mulf %85, %78 : vector<8x256xf32>
    %c0_65 = arith.constant 0 : index
    %c495_66 = arith.constant 495 : index
    %87 = vector.load %arg17[%c0_65, %c495_66] : memref<8x896xf32, #tpu.memory_space<vmem>>, vector<8x256xf32>
    %88 = arith.mulf %87, %78 : vector<8x256xf32>
    %89 = tpu.concatenate %86, %88 in 1 : vector<8x256xf32>, vector<8x256xf32> -> vector<8x512xf32>
    %c0_67 = arith.constant 0 : index
    %c0_68 = arith.constant 0 : index
    %90 = vector.load %arg20[%c0_67, %c0_68] : memref<72x512xf32, #tpu.memory_space<vmem>>, vector<8x512xf32>
    tpu.vector_store %arg20[%c0_67, %c0_68], %89 {strides = array<i32>} : memref<72x512xf32, #tpu.memory_space<vmem>>, vector<8x512xf32>,
    %c0_69 = arith.constant 0 : index
    %c127_70 = arith.constant 127 : index
    %91 = vector.load %arg17[%c0_69, %c127_70] : memref<8x896xf32, #tpu.memory_space<vmem>>, vector<8x256xf32>
    %92 = arith.mulf %91, %78 : vector<8x256xf32>
    %c0_71 = arith.constant 0 : index
    %c511_72 = arith.constant 511 : index
    %93 = vector.load %arg17[%c0_71, %c511_72] : memref<8x896xf32, #tpu.memory_space<vmem>>, vector<8x256xf32>
    %94 = arith.mulf %93, %78 : vector<8x256xf32>
    %95 = tpu.concatenate %92, %94 in 1 : vector<8x256xf32>, vector<8x256xf32> -> vector<8x512xf32>
    %c8_73 = arith.constant 8 : index
    %c0_74 = arith.constant 0 : index
    %96 = vector.load %arg20[%c8_73, %c0_74] : memref<72x512xf32, #tpu.memory_space<vmem>>, vector<8x512xf32>
    tpu.vector_store %arg20[%c8_73, %c0_74], %95 {strides = array<i32>} : memref<72x512xf32, #tpu.memory_space<vmem>>, vector<8x512xf32>,
    %c0_75 = arith.constant 0 : index
    %c143_76 = arith.constant 143 : index
    %97 = vector.load %arg17[%c0_75, %c143_76] : memref<8x896xf32, #tpu.memory_space<vmem>>, vector<8x256xf32>
    %98 = arith.mulf %97, %78 : vector<8x256xf32>
    %c0_77 = arith.constant 0 : index
    %c527_78 = arith.constant 527 : index
    %99 = vector.load %arg17[%c0_77, %c527_78] : memref<8x896xf32, #tpu.memory_space<vmem>>, vector<8x256xf32>
    %100 = arith.mulf %99, %78 : vector<8x256xf32>
    %101 = tpu.concatenate %98, %100 in 1 : vector<8x256xf32>, vector<8x256xf32> -> vector<8x512xf32>
    %c16_79 = arith.constant 16 : index
    %c0_80 = arith.constant 0 : index
    %102 = vector.load %arg20[%c16_79, %c0_80] : memref<72x512xf32, #tpu.memory_space<vmem>>, vector<8x512xf32>
    tpu.vector_store %arg20[%c16_79, %c0_80], %101 {strides = array<i32>} : memref<72x512xf32, #tpu.memory_space<vmem>>, vector<8x512xf32>,
    %c0_81 = arith.constant 0 : index
    %c112_82 = arith.constant 112 : index
    %103 = vector.load %arg17[%c0_81, %c112_82] : memref<8x896xf32, #tpu.memory_space<vmem>>, vector<8x256xf32>
    %c0_83 = arith.constant 0 : index
    %c496_84 = arith.constant 496 : index
    %104 = vector.load %arg17[%c0_83, %c496_84] : memref<8x896xf32, #tpu.memory_space<vmem>>, vector<8x256xf32>
    %105 = tpu.concatenate %103, %104 in 1 : vector<8x256xf32>, vector<8x256xf32> -> vector<8x512xf32>
    %c24_85 = arith.constant 24 : index
    %c0_86 = arith.constant 0 : index
    %106 = vector.load %arg20[%c24_85, %c0_86] : memref<72x512xf32, #tpu.memory_space<vmem>>, vector<8x512xf32>
    tpu.vector_store %arg20[%c24_85, %c0_86], %105 {strides = array<i32>} : memref<72x512xf32, #tpu.memory_space<vmem>>, vector<8x512xf32>,
    %c0_87 = arith.constant 0 : index
    %c128_88 = arith.constant 128 : index
    %107 = vector.load %arg17[%c0_87, %c128_88] : memref<8x896xf32, #tpu.memory_space<vmem>>, vector<8x256xf32>
    %c0_89 = arith.constant 0 : index
    %c512_90 = arith.constant 512 : index
    %108 = vector.load %arg17[%c0_89, %c512_90] : memref<8x896xf32, #tpu.memory_space<vmem>>, vector<8x256xf32>
    %109 = tpu.concatenate %107, %108 in 1 : vector<8x256xf32>, vector<8x256xf32> -> vector<8x512xf32>
    %c32_91 = arith.constant 32 : index
    %c0_92 = arith.constant 0 : index
    %110 = vector.load %arg20[%c32_91, %c0_92] : memref<72x512xf32, #tpu.memory_space<vmem>>, vector<8x512xf32>
    tpu.vector_store %arg20[%c32_91, %c0_92], %109 {strides = array<i32>} : memref<72x512xf32, #tpu.memory_space<vmem>>, vector<8x512xf32>,
    %c0_93 = arith.constant 0 : index
    %c144_94 = arith.constant 144 : index
    %111 = vector.load %arg17[%c0_93, %c144_94] : memref<8x896xf32, #tpu.memory_space<vmem>>, vector<8x256xf32>
    %c0_95 = arith.constant 0 : index
    %c528_96 = arith.constant 528 : index
    %112 = vector.load %arg17[%c0_95, %c528_96] : memref<8x896xf32, #tpu.memory_space<vmem>>, vector<8x256xf32>
    %113 = tpu.concatenate %111, %112 in 1 : vector<8x256xf32>, vector<8x256xf32> -> vector<8x512xf32>
    %c40 = arith.constant 40 : index
    %c0_97 = arith.constant 0 : index
    %114 = vector.load %arg20[%c40, %c0_97] : memref<72x512xf32, #tpu.memory_space<vmem>>, vector<8x512xf32>
    tpu.vector_store %arg20[%c40, %c0_97], %113 {strides = array<i32>} : memref<72x512xf32, #tpu.memory_space<vmem>>, vector<8x512xf32>,
    %c0_98 = arith.constant 0 : index
    %c113_99 = arith.constant 113 : index
    %115 = vector.load %arg17[%c0_98, %c113_99] : memref<8x896xf32, #tpu.memory_space<vmem>>, vector<8x256xf32>
    %116 = arith.mulf %115, %80 : vector<8x256xf32>
    %c0_100 = arith.constant 0 : index
    %c497_101 = arith.constant 497 : index
    %117 = vector.load %arg17[%c0_100, %c497_101] : memref<8x896xf32, #tpu.memory_space<vmem>>, vector<8x256xf32>
    %118 = arith.mulf %117, %80 : vector<8x256xf32>
    %119 = tpu.concatenate %116, %118 in 1 : vector<8x256xf32>, vector<8x256xf32> -> vector<8x512xf32>
    %c48 = arith.constant 48 : index
    %c0_102 = arith.constant 0 : index
    %120 = vector.load %arg20[%c48, %c0_102] : memref<72x512xf32, #tpu.memory_space<vmem>>, vector<8x512xf32>
    tpu.vector_store %arg20[%c48, %c0_102], %119 {strides = array<i32>} : memref<72x512xf32, #tpu.memory_space<vmem>>, vector<8x512xf32>,
    %c0_103 = arith.constant 0 : index
    %c129_104 = arith.constant 129 : index
    %121 = vector.load %arg17[%c0_103, %c129_104] : memref<8x896xf32, #tpu.memory_space<vmem>>, vector<8x256xf32>
    %122 = arith.mulf %121, %80 : vector<8x256xf32>
    %c0_105 = arith.constant 0 : index
    %c513_106 = arith.constant 513 : index
    %123 = vector.load %arg17[%c0_105, %c513_106] : memref<8x896xf32, #tpu.memory_space<vmem>>, vector<8x256xf32>
    %124 = arith.mulf %123, %80 : vector<8x256xf32>
    %125 = tpu.concatenate %122, %124 in 1 : vector<8x256xf32>, vector<8x256xf32> -> vector<8x512xf32>
    %c56 = arith.constant 56 : index
    %c0_107 = arith.constant 0 : index
    %126 = vector.load %arg20[%c56, %c0_107] : memref<72x512xf32, #tpu.memory_space<vmem>>, vector<8x512xf32>
    tpu.vector_store %arg20[%c56, %c0_107], %125 {strides = array<i32>} : memref<72x512xf32, #tpu.memory_space<vmem>>, vector<8x512xf32>,
    %c0_108 = arith.constant 0 : index
    %c145_109 = arith.constant 145 : index
    %127 = vector.load %arg17[%c0_108, %c145_109] : memref<8x896xf32, #tpu.memory_space<vmem>>, vector<8x256xf32>
    %128 = arith.mulf %127, %80 : vector<8x256xf32>
    %c0_110 = arith.constant 0 : index
    %c529_111 = arith.constant 529 : index
    %129 = vector.load %arg17[%c0_110, %c529_111] : memref<8x896xf32, #tpu.memory_space<vmem>>, vector<8x256xf32>
    %130 = arith.mulf %129, %80 : vector<8x256xf32>
    %131 = tpu.concatenate %128, %130 in 1 : vector<8x256xf32>, vector<8x256xf32> -> vector<8x512xf32>
    %c64 = arith.constant 64 : index
    %c0_112 = arith.constant 0 : index
    %132 = vector.load %arg20[%c64, %c0_112] : memref<72x512xf32, #tpu.memory_space<vmem>>, vector<8x512xf32>
    tpu.vector_store %arg20[%c64, %c0_112], %131 {strides = array<i32>} : memref<72x512xf32, #tpu.memory_space<vmem>>, vector<8x512xf32>,
    %c0_113 = arith.constant 0 : index
    %c0_114 = arith.constant 0 : index
    %133 = vector.load %arg6[%c0_113, %c0_114] : memref<4x72xbf16, #tpu.memory_space<vmem>>, vector<4x72xbf16>
    %c0_115 = arith.constant 0 : index
    %c0_116 = arith.constant 0 : index
    %134 = vector.load %arg20[%c0_115, %c0_116] : memref<72x512xf32, #tpu.memory_space<vmem>>, vector<72x512xf32>
    %135 = arith.truncf %134 : vector<72x512xf32> to vector<72x512xbf16>
    %cst_117 = arith.constant dense<0.000000e+00> : vector<4x512xf32>
    %136 = tpu.matmul %133, %135, %cst_117 {dimension_numbers = #tpu.dot_dimension_numbers<[1], [0], [0], [1], [0, 0, 1, 1], [], []>} : vector<4x72xbf16>, vector<72x512xbf16>, vector<4x512xf32> -> vector<4x512xf32>
    %c0_118 = arith.constant 0 : index
    %c0_119 = arith.constant 0 : index
    %137 = vector.load %arg11[%c0_118, %c0_119] : memref<256x64xbf16, #tpu.memory_space<vmem>>, vector<256x64xbf16>
    %138 = vector.extract_strided_slice %136 {offsets = [0, 0], sizes = [4, 256], strides = [1, 1]} : vector<4x512xf32> to vector<4x256xf32>
    %139 = arith.truncf %138 : vector<4x256xf32> to vector<4x256xbf16>
    %cst_120 = arith.constant dense<0.000000e+00> : vector<4x64xf32>
    %140 = tpu.matmul %139, %137, %cst_120 {dimension_numbers = #tpu.dot_dimension_numbers<[1], [0], [0], [1], [0, 0, 1, 1], [], []>} : vector<4x256xbf16>, vector<256x64xbf16>, vector<4x64xf32> -> vector<4x64xf32>
    %141 = vector.extract_strided_slice %136 {offsets = [0, 256], sizes = [4, 256], strides = [1, 1]} : vector<4x512xf32> to vector<4x256xf32>
    %142 = arith.truncf %141 : vector<4x256xf32> to vector<4x256xbf16>
    %cst_121 = arith.constant dense<0.000000e+00> : vector<4x64xf32>
    %143 = tpu.matmul %142, %137, %cst_121 {dimension_numbers = #tpu.dot_dimension_numbers<[1], [0], [0], [1], [0, 0, 1, 1], [], []>} : vector<4x256xbf16>, vector<256x64xbf16>, vector<4x64xf32> -> vector<4x64xf32>
    %144 = tpu.concatenate %140, %143 in 1 : vector<4x64xf32>, vector<4x64xf32> -> vector<4x128xf32>
    %c0_122 = arith.constant 0 : index
    %c0_123 = arith.constant 0 : index
    %c0_124 = arith.constant 0 : index
    %145 = vector.load %arg2[%c0_122, %c0_123, %c0_124] : memref<1x4x128xf32, #tpu.memory_space<vmem>>, vector<1x4x128xf32>
    %146 = vector.shape_cast %145 : vector<1x4x128xf32> to vector<4x128xf32>
    %147 = arith.subf %144, %146 : vector<4x128xf32>
    %c0_125 = arith.constant 0 : index
    %c0_126 = arith.constant 0 : index
    %c0_127 = arith.constant 0 : index
    %148 = vector.load %arg14[%c0_125, %c0_126, %c0_127] : memref<2x8x64xf32, #tpu.memory_space<vmem>>, vector<2x8x64xf32>
    %149 = vector.extract_strided_slice %148 {offsets = [0, 0, 0], sizes = [1, 4, 64], strides = [1, 1, 1]} : vector<2x8x64xf32> to vector<1x4x64xf32>
    %150 = vector.shape_cast %149 : vector<1x4x64xf32> to vector<4x64xf32>
    %151 = vector.extract_strided_slice %148 {offsets = [1, 0, 0], sizes = [1, 4, 64], strides = [1, 1, 1]} : vector<2x8x64xf32> to vector<1x4x64xf32>
    %152 = vector.shape_cast %151 : vector<1x4x64xf32> to vector<4x64xf32>
    %153 = vector.extract_strided_slice %147 {offsets = [0, 0], sizes = [4, 64], strides = [1, 1]} : vector<4x128xf32> to vector<4x64xf32>
    %c0_128 = arith.constant 0 : index
    %c128_129 = arith.constant 128 : index
    %154 = vector.load %arg18[%c0_128, %c128_129] : memref<8x384xf32, #tpu.memory_space<vmem>>, vector<4x64xf32>
    tpu.vector_store %arg18[%c0_128, %c128_129], %153 {strides = array<i32>} : memref<8x384xf32, #tpu.memory_space<vmem>>, vector<4x64xf32>,
    %155 = vector.extract_strided_slice %147 {offsets = [0, 64], sizes = [4, 64], strides = [1, 1]} : vector<4x128xf32> to vector<4x64xf32>
    %c0_130 = arith.constant 0 : index
    %c256 = arith.constant 256 : index
    %156 = vector.load %arg18[%c0_130, %c256] : memref<8x384xf32, #tpu.memory_space<vmem>>, vector<4x64xf32>
    tpu.vector_store %arg18[%c0_130, %c256], %155 {strides = array<i32>} : memref<8x384xf32, #tpu.memory_space<vmem>>, vector<4x64xf32>,
    %c0_131 = arith.constant 0 : index
    %c119 = arith.constant 119 : index
    %157 = vector.load %arg18[%c0_131, %c119] : memref<8x384xf32, #tpu.memory_space<vmem>>, vector<4x64xf32>
    %158 = arith.mulf %157, %150 : vector<4x64xf32>
    %c0_132 = arith.constant 0 : index
    %c247 = arith.constant 247 : index
    %159 = vector.load %arg18[%c0_132, %c247] : memref<8x384xf32, #tpu.memory_space<vmem>>, vector<4x64xf32>
    %160 = arith.mulf %159, %150 : vector<4x64xf32>
    %161 = tpu.concatenate %158, %160 in 1 : vector<4x64xf32>, vector<4x64xf32> -> vector<4x128xf32>
    %c0_133 = arith.constant 0 : index
    %c0_134 = arith.constant 0 : index
    %162 = vector.load %arg21[%c0_133, %c0_134] : memref<40x128xf32, #tpu.memory_space<vmem>>, vector<4x128xf32>
    tpu.vector_store %arg21[%c0_133, %c0_134], %161 {strides = array<i32>} : memref<40x128xf32, #tpu.memory_space<vmem>>, vector<4x128xf32>,
    %c0_135 = arith.constant 0 : index
    %c127_136 = arith.constant 127 : index
    %163 = vector.load %arg18[%c0_135, %c127_136] : memref<8x384xf32, #tpu.memory_space<vmem>>, vector<4x64xf32>
    %164 = arith.mulf %163, %150 : vector<4x64xf32>
    %c0_137 = arith.constant 0 : index
    %c255 = arith.constant 255 : index
    %165 = vector.load %arg18[%c0_137, %c255] : memref<8x384xf32, #tpu.memory_space<vmem>>, vector<4x64xf32>
    %166 = arith.mulf %165, %150 : vector<4x64xf32>
    %167 = tpu.concatenate %164, %166 in 1 : vector<4x64xf32>, vector<4x64xf32> -> vector<4x128xf32>
    %c4_138 = arith.constant 4 : index
    %c0_139 = arith.constant 0 : index
    %168 = vector.load %arg21[%c4_138, %c0_139] : memref<40x128xf32, #tpu.memory_space<vmem>>, vector<4x128xf32>
    tpu.vector_store %arg21[%c4_138, %c0_139], %167 {strides = array<i32>} : memref<40x128xf32, #tpu.memory_space<vmem>>, vector<4x128xf32>,
    %c0_140 = arith.constant 0 : index
    %c135 = arith.constant 135 : index
    %169 = vector.load %arg18[%c0_140, %c135] : memref<8x384xf32, #tpu.memory_space<vmem>>, vector<4x64xf32>
    %170 = arith.mulf %169, %150 : vector<4x64xf32>
    %c0_141 = arith.constant 0 : index
    %c263 = arith.constant 263 : index
    %171 = vector.load %arg18[%c0_141, %c263] : memref<8x384xf32, #tpu.memory_space<vmem>>, vector<4x64xf32>
    %172 = arith.mulf %171, %150 : vector<4x64xf32>
    %173 = tpu.concatenate %170, %172 in 1 : vector<4x64xf32>, vector<4x64xf32> -> vector<4x128xf32>
    %c8_142 = arith.constant 8 : index
    %c0_143 = arith.constant 0 : index
    %174 = vector.load %arg21[%c8_142, %c0_143] : memref<40x128xf32, #tpu.memory_space<vmem>>, vector<4x128xf32>
    tpu.vector_store %arg21[%c8_142, %c0_143], %173 {strides = array<i32>} : memref<40x128xf32, #tpu.memory_space<vmem>>, vector<4x128xf32>,
    %c0_144 = arith.constant 0 : index
    %c120 = arith.constant 120 : index
    %175 = vector.load %arg18[%c0_144, %c120] : memref<8x384xf32, #tpu.memory_space<vmem>>, vector<4x64xf32>
    %c0_145 = arith.constant 0 : index
    %c248 = arith.constant 248 : index
    %176 = vector.load %arg18[%c0_145, %c248] : memref<8x384xf32, #tpu.memory_space<vmem>>, vector<4x64xf32>
    %177 = tpu.concatenate %175, %176 in 1 : vector<4x64xf32>, vector<4x64xf32> -> vector<4x128xf32>
    %c12_146 = arith.constant 12 : index
    %c0_147 = arith.constant 0 : index
    %178 = vector.load %arg21[%c12_146, %c0_147] : memref<40x128xf32, #tpu.memory_space<vmem>>, vector<4x128xf32>
    tpu.vector_store %arg21[%c12_146, %c0_147], %177 {strides = array<i32>} : memref<40x128xf32, #tpu.memory_space<vmem>>, vector<4x128xf32>,
    %c0_148 = arith.constant 0 : index
    %c128_149 = arith.constant 128 : index
    %179 = vector.load %arg18[%c0_148, %c128_149] : memref<8x384xf32, #tpu.memory_space<vmem>>, vector<4x64xf32>
    %c0_150 = arith.constant 0 : index
    %c256_151 = arith.constant 256 : index
    %180 = vector.load %arg18[%c0_150, %c256_151] : memref<8x384xf32, #tpu.memory_space<vmem>>, vector<4x64xf32>
    %181 = tpu.concatenate %179, %180 in 1 : vector<4x64xf32>, vector<4x64xf32> -> vector<4x128xf32>
    %c16_152 = arith.constant 16 : index
    %c0_153 = arith.constant 0 : index
    %182 = vector.load %arg21[%c16_152, %c0_153] : memref<40x128xf32, #tpu.memory_space<vmem>>, vector<4x128xf32>
    tpu.vector_store %arg21[%c16_152, %c0_153], %181 {strides = array<i32>} : memref<40x128xf32, #tpu.memory_space<vmem>>, vector<4x128xf32>,
    %c0_154 = arith.constant 0 : index
    %c136 = arith.constant 136 : index
    %183 = vector.load %arg18[%c0_154, %c136] : memref<8x384xf32, #tpu.memory_space<vmem>>, vector<4x64xf32>
    %c0_155 = arith.constant 0 : index
    %c264 = arith.constant 264 : index
    %184 = vector.load %arg18[%c0_155, %c264] : memref<8x384xf32, #tpu.memory_space<vmem>>, vector<4x64xf32>
    %185 = tpu.concatenate %183, %184 in 1 : vector<4x64xf32>, vector<4x64xf32> -> vector<4x128xf32>
    %c20_156 = arith.constant 20 : index
    %c0_157 = arith.constant 0 : index
    %186 = vector.load %arg21[%c20_156, %c0_157] : memref<40x128xf32, #tpu.memory_space<vmem>>, vector<4x128xf32>
    tpu.vector_store %arg21[%c20_156, %c0_157], %185 {strides = array<i32>} : memref<40x128xf32, #tpu.memory_space<vmem>>, vector<4x128xf32>,
    %c0_158 = arith.constant 0 : index
    %c121 = arith.constant 121 : index
    %187 = vector.load %arg18[%c0_158, %c121] : memref<8x384xf32, #tpu.memory_space<vmem>>, vector<4x64xf32>
    %188 = arith.mulf %187, %152 : vector<4x64xf32>
    %c0_159 = arith.constant 0 : index
    %c249 = arith.constant 249 : index
    %189 = vector.load %arg18[%c0_159, %c249] : memref<8x384xf32, #tpu.memory_space<vmem>>, vector<4x64xf32>
    %190 = arith.mulf %189, %152 : vector<4x64xf32>
    %191 = tpu.concatenate %188, %190 in 1 : vector<4x64xf32>, vector<4x64xf32> -> vector<4x128xf32>
    %c24_160 = arith.constant 24 : index
    %c0_161 = arith.constant 0 : index
    %192 = vector.load %arg21[%c24_160, %c0_161] : memref<40x128xf32, #tpu.memory_space<vmem>>, vector<4x128xf32>
    tpu.vector_store %arg21[%c24_160, %c0_161], %191 {strides = array<i32>} : memref<40x128xf32, #tpu.memory_space<vmem>>, vector<4x128xf32>,
    %c0_162 = arith.constant 0 : index
    %c129_163 = arith.constant 129 : index
    %193 = vector.load %arg18[%c0_162, %c129_163] : memref<8x384xf32, #tpu.memory_space<vmem>>, vector<4x64xf32>
    %194 = arith.mulf %193, %152 : vector<4x64xf32>
    %c0_164 = arith.constant 0 : index
    %c257 = arith.constant 257 : index
    %195 = vector.load %arg18[%c0_164, %c257] : memref<8x384xf32, #tpu.memory_space<vmem>>, vector<4x64xf32>
    %196 = arith.mulf %195, %152 : vector<4x64xf32>
    %197 = tpu.concatenate %194, %196 in 1 : vector<4x64xf32>, vector<4x64xf32> -> vector<4x128xf32>
    %c28_165 = arith.constant 28 : index
    %c0_166 = arith.constant 0 : index
    %198 = vector.load %arg21[%c28_165, %c0_166] : memref<40x128xf32, #tpu.memory_space<vmem>>, vector<4x128xf32>
    tpu.vector_store %arg21[%c28_165, %c0_166], %197 {strides = array<i32>} : memref<40x128xf32, #tpu.memory_space<vmem>>, vector<4x128xf32>,
    %c0_167 = arith.constant 0 : index
    %c137 = arith.constant 137 : index
    %199 = vector.load %arg18[%c0_167, %c137] : memref<8x384xf32, #tpu.memory_space<vmem>>, vector<4x64xf32>
    %200 = arith.mulf %199, %152 : vector<4x64xf32>
    %c0_168 = arith.constant 0 : index
    %c265 = arith.constant 265 : index
    %201 = vector.load %arg18[%c0_168, %c265] : memref<8x384xf32, #tpu.memory_space<vmem>>, vector<4x64xf32>
    %202 = arith.mulf %201, %152 : vector<4x64xf32>
    %203 = tpu.concatenate %200, %202 in 1 : vector<4x64xf32>, vector<4x64xf32> -> vector<4x128xf32>
    %c32_169 = arith.constant 32 : index
    %c0_170 = arith.constant 0 : index
    %204 = vector.load %arg21[%c32_169, %c0_170] : memref<40x128xf32, #tpu.memory_space<vmem>>, vector<4x128xf32>
    tpu.vector_store %arg21[%c32_169, %c0_170], %203 {strides = array<i32>} : memref<40x128xf32, #tpu.memory_space<vmem>>, vector<4x128xf32>,
    %c0_171 = arith.constant 0 : index
    %c0_172 = arith.constant 0 : index
    %205 = vector.load %arg7[%c0_171, %c0_172] : memref<8x40xbf16, #tpu.memory_space<vmem>>, vector<8x40xbf16>
    %c0_173 = arith.constant 0 : index
    %c0_174 = arith.constant 0 : index
    %206 = vector.load %arg21[%c0_173, %c0_174] : memref<40x128xf32, #tpu.memory_space<vmem>>, vector<40x128xf32>
    %207 = arith.truncf %206 : vector<40x128xf32> to vector<40x128xbf16>
    %cst_175 = arith.constant dense<0.000000e+00> : vector<8x128xf32>
    %208 = tpu.matmul %205, %207, %cst_175 {dimension_numbers = #tpu.dot_dimension_numbers<[1], [0], [0], [1], [0, 0, 1, 1], [], []>} : vector<8x40xbf16>, vector<40x128xbf16>, vector<8x128xf32> -> vector<8x128xf32>
    %cst_176 = arith.constant 0.000000e+00 : f32
    %209 = vector.broadcast %cst_176 : f32 to vector<8x128xf32>
    %210 = arith.maximumf %208, %209 : vector<8x128xf32>
    %c0_177 = arith.constant 0 : index
    %c0_178 = arith.constant 0 : index
    %c0_179 = arith.constant 0 : index
    %211 = vector.load %arg14[%c0_177, %c0_178, %c0_179] : memref<2x8x64xf32, #tpu.memory_space<vmem>>, vector<2x8x64xf32>
    %212 = vector.extract_strided_slice %211 {offsets = [0, 0, 0], sizes = [1, 8, 64], strides = [1, 1, 1]} : vector<2x8x64xf32> to vector<1x8x64xf32>
    %213 = vector.shape_cast %212 : vector<1x8x64xf32> to vector<8x64xf32>
    %214 = vector.extract_strided_slice %211 {offsets = [1, 0, 0], sizes = [1, 8, 64], strides = [1, 1, 1]} : vector<2x8x64xf32> to vector<1x8x64xf32>
    %215 = vector.shape_cast %214 : vector<1x8x64xf32> to vector<8x64xf32>
    %216 = vector.extract_strided_slice %210 {offsets = [0, 0], sizes = [8, 64], strides = [1, 1]} : vector<8x128xf32> to vector<8x64xf32>
    %c0_180 = arith.constant 0 : index
    %c128_181 = arith.constant 128 : index
    %217 = vector.load %arg18[%c0_180, %c128_181] : memref<8x384xf32, #tpu.memory_space<vmem>>, vector<8x64xf32>
    tpu.vector_store %arg18[%c0_180, %c128_181], %216 {strides = array<i32>} : memref<8x384xf32, #tpu.memory_space<vmem>>, vector<8x64xf32>,
    %218 = vector.extract_strided_slice %210 {offsets = [0, 64], sizes = [8, 64], strides = [1, 1]} : vector<8x128xf32> to vector<8x64xf32>
    %c0_182 = arith.constant 0 : index
    %c256_183 = arith.constant 256 : index
    %219 = vector.load %arg18[%c0_182, %c256_183] : memref<8x384xf32, #tpu.memory_space<vmem>>, vector<8x64xf32>
    tpu.vector_store %arg18[%c0_182, %c256_183], %218 {strides = array<i32>} : memref<8x384xf32, #tpu.memory_space<vmem>>, vector<8x64xf32>,
    %c0_184 = arith.constant 0 : index
    %c119_185 = arith.constant 119 : index
    %220 = vector.load %arg18[%c0_184, %c119_185] : memref<8x384xf32, #tpu.memory_space<vmem>>, vector<8x64xf32>
    %221 = arith.mulf %220, %213 : vector<8x64xf32>
    %c0_186 = arith.constant 0 : index
    %c247_187 = arith.constant 247 : index
    %222 = vector.load %arg18[%c0_186, %c247_187] : memref<8x384xf32, #tpu.memory_space<vmem>>, vector<8x64xf32>
    %223 = arith.mulf %222, %213 : vector<8x64xf32>
    %224 = tpu.concatenate %221, %223 in 1 : vector<8x64xf32>, vector<8x64xf32> -> vector<8x128xf32>
    %c0_188 = arith.constant 0 : index
    %c0_189 = arith.constant 0 : index
    %225 = vector.load %arg22[%c0_188, %c0_189] : memref<72x128xf32, #tpu.memory_space<vmem>>, vector<8x128xf32>
    tpu.vector_store %arg22[%c0_188, %c0_189], %224 {strides = array<i32>} : memref<72x128xf32, #tpu.memory_space<vmem>>, vector<8x128xf32>,
    %c0_190 = arith.constant 0 : index
    %c127_191 = arith.constant 127 : index
    %226 = vector.load %arg18[%c0_190, %c127_191] : memref<8x384xf32, #tpu.memory_space<vmem>>, vector<8x64xf32>
    %227 = arith.mulf %226, %213 : vector<8x64xf32>
    %c0_192 = arith.constant 0 : index
    %c255_193 = arith.constant 255 : index
    %228 = vector.load %arg18[%c0_192, %c255_193] : memref<8x384xf32, #tpu.memory_space<vmem>>, vector<8x64xf32>
    %229 = arith.mulf %228, %213 : vector<8x64xf32>
    %230 = tpu.concatenate %227, %229 in 1 : vector<8x64xf32>, vector<8x64xf32> -> vector<8x128xf32>
    %c8_194 = arith.constant 8 : index
    %c0_195 = arith.constant 0 : index
    %231 = vector.load %arg22[%c8_194, %c0_195] : memref<72x128xf32, #tpu.memory_space<vmem>>, vector<8x128xf32>
    tpu.vector_store %arg22[%c8_194, %c0_195], %230 {strides = array<i32>} : memref<72x128xf32, #tpu.memory_space<vmem>>, vector<8x128xf32>,
    %c0_196 = arith.constant 0 : index
    %c135_197 = arith.constant 135 : index
    %232 = vector.load %arg18[%c0_196, %c135_197] : memref<8x384xf32, #tpu.memory_space<vmem>>, vector<8x64xf32>
    %233 = arith.mulf %232, %213 : vector<8x64xf32>
    %c0_198 = arith.constant 0 : index
    %c263_199 = arith.constant 263 : index
    %234 = vector.load %arg18[%c0_198, %c263_199] : memref<8x384xf32, #tpu.memory_space<vmem>>, vector<8x64xf32>
    %235 = arith.mulf %234, %213 : vector<8x64xf32>
    %236 = tpu.concatenate %233, %235 in 1 : vector<8x64xf32>, vector<8x64xf32> -> vector<8x128xf32>
    %c16_200 = arith.constant 16 : index
    %c0_201 = arith.constant 0 : index
    %237 = vector.load %arg22[%c16_200, %c0_201] : memref<72x128xf32, #tpu.memory_space<vmem>>, vector<8x128xf32>
    tpu.vector_store %arg22[%c16_200, %c0_201], %236 {strides = array<i32>} : memref<72x128xf32, #tpu.memory_space<vmem>>, vector<8x128xf32>,
    %c0_202 = arith.constant 0 : index
    %c120_203 = arith.constant 120 : index
    %238 = vector.load %arg18[%c0_202, %c120_203] : memref<8x384xf32, #tpu.memory_space<vmem>>, vector<8x64xf32>
    %c0_204 = arith.constant 0 : index
    %c248_205 = arith.constant 248 : index
    %239 = vector.load %arg18[%c0_204, %c248_205] : memref<8x384xf32, #tpu.memory_space<vmem>>, vector<8x64xf32>
    %240 = tpu.concatenate %238, %239 in 1 : vector<8x64xf32>, vector<8x64xf32> -> vector<8x128xf32>
    %c24_206 = arith.constant 24 : index
    %c0_207 = arith.constant 0 : index
    %241 = vector.load %arg22[%c24_206, %c0_207] : memref<72x128xf32, #tpu.memory_space<vmem>>, vector<8x128xf32>
    tpu.vector_store %arg22[%c24_206, %c0_207], %240 {strides = array<i32>} : memref<72x128xf32, #tpu.memory_space<vmem>>, vector<8x128xf32>,
    %c0_208 = arith.constant 0 : index
    %c128_209 = arith.constant 128 : index
    %242 = vector.load %arg18[%c0_208, %c128_209] : memref<8x384xf32, #tpu.memory_space<vmem>>, vector<8x64xf32>
    %c0_210 = arith.constant 0 : index
    %c256_211 = arith.constant 256 : index
    %243 = vector.load %arg18[%c0_210, %c256_211] : memref<8x384xf32, #tpu.memory_space<vmem>>, vector<8x64xf32>
    %244 = tpu.concatenate %242, %243 in 1 : vector<8x64xf32>, vector<8x64xf32> -> vector<8x128xf32>
    %c32_212 = arith.constant 32 : index
    %c0_213 = arith.constant 0 : index
    %245 = vector.load %arg22[%c32_212, %c0_213] : memref<72x128xf32, #tpu.memory_space<vmem>>, vector<8x128xf32>
    tpu.vector_store %arg22[%c32_212, %c0_213], %244 {strides = array<i32>} : memref<72x128xf32, #tpu.memory_space<vmem>>, vector<8x128xf32>,
    %c0_214 = arith.constant 0 : index
    %c136_215 = arith.constant 136 : index
    %246 = vector.load %arg18[%c0_214, %c136_215] : memref<8x384xf32, #tpu.memory_space<vmem>>, vector<8x64xf32>
    %c0_216 = arith.constant 0 : index
    %c264_217 = arith.constant 264 : index
    %247 = vector.load %arg18[%c0_216, %c264_217] : memref<8x384xf32, #tpu.memory_space<vmem>>, vector<8x64xf32>
    %248 = tpu.concatenate %246, %247 in 1 : vector<8x64xf32>, vector<8x64xf32> -> vector<8x128xf32>
    %c40_218 = arith.constant 40 : index
    %c0_219 = arith.constant 0 : index
    %249 = vector.load %arg22[%c40_218, %c0_219] : memref<72x128xf32, #tpu.memory_space<vmem>>, vector<8x128xf32>
    tpu.vector_store %arg22[%c40_218, %c0_219], %248 {strides = array<i32>} : memref<72x128xf32, #tpu.memory_space<vmem>>, vector<8x128xf32>,
    %c0_220 = arith.constant 0 : index
    %c121_221 = arith.constant 121 : index
    %250 = vector.load %arg18[%c0_220, %c121_221] : memref<8x384xf32, #tpu.memory_space<vmem>>, vector<8x64xf32>
    %251 = arith.mulf %250, %215 : vector<8x64xf32>
    %c0_222 = arith.constant 0 : index
    %c249_223 = arith.constant 249 : index
    %252 = vector.load %arg18[%c0_222, %c249_223] : memref<8x384xf32, #tpu.memory_space<vmem>>, vector<8x64xf32>
    %253 = arith.mulf %252, %215 : vector<8x64xf32>
    %254 = tpu.concatenate %251, %253 in 1 : vector<8x64xf32>, vector<8x64xf32> -> vector<8x128xf32>
    %c48_224 = arith.constant 48 : index
    %c0_225 = arith.constant 0 : index
    %255 = vector.load %arg22[%c48_224, %c0_225] : memref<72x128xf32, #tpu.memory_space<vmem>>, vector<8x128xf32>
    tpu.vector_store %arg22[%c48_224, %c0_225], %254 {strides = array<i32>} : memref<72x128xf32, #tpu.memory_space<vmem>>, vector<8x128xf32>,
    %c0_226 = arith.constant 0 : index
    %c129_227 = arith.constant 129 : index
    %256 = vector.load %arg18[%c0_226, %c129_227] : memref<8x384xf32, #tpu.memory_space<vmem>>, vector<8x64xf32>
    %257 = arith.mulf %256, %215 : vector<8x64xf32>
    %c0_228 = arith.constant 0 : index
    %c257_229 = arith.constant 257 : index
    %258 = vector.load %arg18[%c0_228, %c257_229] : memref<8x384xf32, #tpu.memory_space<vmem>>, vector<8x64xf32>
    %259 = arith.mulf %258, %215 : vector<8x64xf32>
    %260 = tpu.concatenate %257, %259 in 1 : vector<8x64xf32>, vector<8x64xf32> -> vector<8x128xf32>
    %c56_230 = arith.constant 56 : index
    %c0_231 = arith.constant 0 : index
    %261 = vector.load %arg22[%c56_230, %c0_231] : memref<72x128xf32, #tpu.memory_space<vmem>>, vector<8x128xf32>
    tpu.vector_store %arg22[%c56_230, %c0_231], %260 {strides = array<i32>} : memref<72x128xf32, #tpu.memory_space<vmem>>, vector<8x128xf32>,
    %c0_232 = arith.constant 0 : index
    %c137_233 = arith.constant 137 : index
    %262 = vector.load %arg18[%c0_232, %c137_233] : memref<8x384xf32, #tpu.memory_space<vmem>>, vector<8x64xf32>
    %263 = arith.mulf %262, %215 : vector<8x64xf32>
    %c0_234 = arith.constant 0 : index
    %c265_235 = arith.constant 265 : index
    %264 = vector.load %arg18[%c0_234, %c265_235] : memref<8x384xf32, #tpu.memory_space<vmem>>, vector<8x64xf32>
    %265 = arith.mulf %264, %215 : vector<8x64xf32>
    %266 = tpu.concatenate %263, %265 in 1 : vector<8x64xf32>, vector<8x64xf32> -> vector<8x128xf32>
    %c64_236 = arith.constant 64 : index
    %c0_237 = arith.constant 0 : index
    %267 = vector.load %arg22[%c64_236, %c0_237] : memref<72x128xf32, #tpu.memory_space<vmem>>, vector<8x128xf32>
    tpu.vector_store %arg22[%c64_236, %c0_237], %266 {strides = array<i32>} : memref<72x128xf32, #tpu.memory_space<vmem>>, vector<8x128xf32>,
    %c0_238 = arith.constant 0 : index
    %c0_239 = arith.constant 0 : index
    %268 = vector.load %arg8[%c0_238, %c0_239] : memref<4x72xbf16, #tpu.memory_space<vmem>>, vector<4x72xbf16>
    %c0_240 = arith.constant 0 : index
    %c0_241 = arith.constant 0 : index
    %269 = vector.load %arg22[%c0_240, %c0_241] : memref<72x128xf32, #tpu.memory_space<vmem>>, vector<72x128xf32>
    %270 = arith.truncf %269 : vector<72x128xf32> to vector<72x128xbf16>
    %cst_242 = arith.constant dense<0.000000e+00> : vector<4x128xf32>
    %271 = tpu.matmul %268, %270, %cst_242 {dimension_numbers = #tpu.dot_dimension_numbers<[1], [0], [0], [1], [0, 0, 1, 1], [], []>} : vector<4x72xbf16>, vector<72x128xbf16>, vector<4x128xf32> -> vector<4x128xf32>
    %c0_243 = arith.constant 0 : index
    %c0_244 = arith.constant 0 : index
    %272 = vector.load %arg12[%c0_243, %c0_244] : memref<64x256xbf16, #tpu.memory_space<vmem>>, vector<64x256xbf16>
    %273 = vector.extract_strided_slice %271 {offsets = [0, 0], sizes = [4, 64], strides = [1, 1]} : vector<4x128xf32> to vector<4x64xf32>
    %274 = arith.truncf %273 : vector<4x64xf32> to vector<4x64xbf16>
    %cst_245 = arith.constant dense<0.000000e+00> : vector<4x256xf32>
    %275 = tpu.matmul %274, %272, %cst_245 {dimension_numbers = #tpu.dot_dimension_numbers<[1], [0], [0], [1], [0, 0, 1, 1], [], []>} : vector<4x64xbf16>, vector<64x256xbf16>, vector<4x256xf32> -> vector<4x256xf32>
    %276 = vector.extract_strided_slice %271 {offsets = [0, 64], sizes = [4, 64], strides = [1, 1]} : vector<4x128xf32> to vector<4x64xf32>
    %277 = arith.truncf %276 : vector<4x64xf32> to vector<4x64xbf16>
    %cst_246 = arith.constant dense<0.000000e+00> : vector<4x256xf32>
    %278 = tpu.matmul %277, %272, %cst_246 {dimension_numbers = #tpu.dot_dimension_numbers<[1], [0], [0], [1], [0, 0, 1, 1], [], []>} : vector<4x64xbf16>, vector<64x256xbf16>, vector<4x256xf32> -> vector<4x256xf32>
    %279 = tpu.concatenate %275, %278 in 1 : vector<4x256xf32>, vector<4x256xf32> -> vector<4x512xf32>
    %c0_247 = arith.constant 0 : index
    %c0_248 = arith.constant 0 : index
    %c0_249 = arith.constant 0 : index
    %280 = vector.load %arg3[%c0_247, %c0_248, %c0_249] : memref<1x4x512xf32, #tpu.memory_space<vmem>>, vector<1x4x512xf32>
    %281 = vector.shape_cast %280 : vector<1x4x512xf32> to vector<4x512xf32>
    %282 = arith.subf %281, %279 : vector<4x512xf32>
    %c0_250 = arith.constant 0 : index
    %c0_251 = arith.constant 0 : index
    %c0_252 = arith.constant 0 : index
    %283 = vector.load %arg4[%c0_250, %c0_251, %c0_252] : memref<1x4x512xf32, #tpu.memory_space<vmem>>, vector<1x4x512xf32>
    %284 = vector.shape_cast %283 : vector<1x4x512xf32> to vector<4x512xf32>
    %285 = arith.subf %282, %284 : vector<4x512xf32>
    %c0_253 = arith.constant 0 : index
    %c0_254 = arith.constant 0 : index
    %c0_255 = arith.constant 0 : index
    %286 = vector.load %arg13[%c0_253, %c0_254, %c0_255] : memref<2x8x256xf32, #tpu.memory_space<vmem>>, vector<2x8x256xf32>
    %287 = vector.extract_strided_slice %286 {offsets = [0, 0, 0], sizes = [1, 4, 256], strides = [1, 1, 1]} : vector<2x8x256xf32> to vector<1x4x256xf32>
    %288 = vector.shape_cast %287 : vector<1x4x256xf32> to vector<4x256xf32>
    %289 = vector.extract_strided_slice %286 {offsets = [1, 0, 0], sizes = [1, 4, 256], strides = [1, 1, 1]} : vector<2x8x256xf32> to vector<1x4x256xf32>
    %290 = vector.shape_cast %289 : vector<1x4x256xf32> to vector<4x256xf32>
    %291 = vector.extract_strided_slice %285 {offsets = [0, 0], sizes = [4, 256], strides = [1, 1]} : vector<4x512xf32> to vector<4x256xf32>
    %c0_256 = arith.constant 0 : index
    %c128_257 = arith.constant 128 : index
    %292 = vector.load %arg17[%c0_256, %c128_257] : memref<8x896xf32, #tpu.memory_space<vmem>>, vector<4x256xf32>
    tpu.vector_store %arg17[%c0_256, %c128_257], %291 {strides = array<i32>} : memref<8x896xf32, #tpu.memory_space<vmem>>, vector<4x256xf32>,
    %293 = vector.extract_strided_slice %285 {offsets = [0, 256], sizes = [4, 256], strides = [1, 1]} : vector<4x512xf32> to vector<4x256xf32>
    %c0_258 = arith.constant 0 : index
    %c512_259 = arith.constant 512 : index
    %294 = vector.load %arg17[%c0_258, %c512_259] : memref<8x896xf32, #tpu.memory_space<vmem>>, vector<4x256xf32>
    tpu.vector_store %arg17[%c0_258, %c512_259], %293 {strides = array<i32>} : memref<8x896xf32, #tpu.memory_space<vmem>>, vector<4x256xf32>,
    %c0_260 = arith.constant 0 : index
    %c111_261 = arith.constant 111 : index
    %295 = vector.load %arg17[%c0_260, %c111_261] : memref<8x896xf32, #tpu.memory_space<vmem>>, vector<4x256xf32>
    %296 = arith.mulf %295, %288 : vector<4x256xf32>
    %c0_262 = arith.constant 0 : index
    %c495_263 = arith.constant 495 : index
    %297 = vector.load %arg17[%c0_262, %c495_263] : memref<8x896xf32, #tpu.memory_space<vmem>>, vector<4x256xf32>
    %298 = arith.mulf %297, %288 : vector<4x256xf32>
    %299 = tpu.concatenate %296, %298 in 1 : vector<4x256xf32>, vector<4x256xf32> -> vector<4x512xf32>
    %c0_264 = arith.constant 0 : index
    %c0_265 = arith.constant 0 : index
    %300 = vector.load %arg19[%c0_264, %c0_265] : memref<40x512xf32, #tpu.memory_space<vmem>>, vector<4x512xf32>
    tpu.vector_store %arg19[%c0_264, %c0_265], %299 {strides = array<i32>} : memref<40x512xf32, #tpu.memory_space<vmem>>, vector<4x512xf32>,
    %c0_266 = arith.constant 0 : index
    %c127_267 = arith.constant 127 : index
    %301 = vector.load %arg17[%c0_266, %c127_267] : memref<8x896xf32, #tpu.memory_space<vmem>>, vector<4x256xf32>
    %302 = arith.mulf %301, %288 : vector<4x256xf32>
    %c0_268 = arith.constant 0 : index
    %c511_269 = arith.constant 511 : index
    %303 = vector.load %arg17[%c0_268, %c511_269] : memref<8x896xf32, #tpu.memory_space<vmem>>, vector<4x256xf32>
    %304 = arith.mulf %303, %288 : vector<4x256xf32>
    %305 = tpu.concatenate %302, %304 in 1 : vector<4x256xf32>, vector<4x256xf32> -> vector<4x512xf32>
    %c4_270 = arith.constant 4 : index
    %c0_271 = arith.constant 0 : index
    %306 = vector.load %arg19[%c4_270, %c0_271] : memref<40x512xf32, #tpu.memory_space<vmem>>, vector<4x512xf32>
    tpu.vector_store %arg19[%c4_270, %c0_271], %305 {strides = array<i32>} : memref<40x512xf32, #tpu.memory_space<vmem>>, vector<4x512xf32>,
    %c0_272 = arith.constant 0 : index
    %c143_273 = arith.constant 143 : index
    %307 = vector.load %arg17[%c0_272, %c143_273] : memref<8x896xf32, #tpu.memory_space<vmem>>, vector<4x256xf32>
    %308 = arith.mulf %307, %288 : vector<4x256xf32>
    %c0_274 = arith.constant 0 : index
    %c527_275 = arith.constant 527 : index
    %309 = vector.load %arg17[%c0_274, %c527_275] : memref<8x896xf32, #tpu.memory_space<vmem>>, vector<4x256xf32>
    %310 = arith.mulf %309, %288 : vector<4x256xf32>
    %311 = tpu.concatenate %308, %310 in 1 : vector<4x256xf32>, vector<4x256xf32> -> vector<4x512xf32>
    %c8_276 = arith.constant 8 : index
    %c0_277 = arith.constant 0 : index
    %312 = vector.load %arg19[%c8_276, %c0_277] : memref<40x512xf32, #tpu.memory_space<vmem>>, vector<4x512xf32>
    tpu.vector_store %arg19[%c8_276, %c0_277], %311 {strides = array<i32>} : memref<40x512xf32, #tpu.memory_space<vmem>>, vector<4x512xf32>,
    %c0_278 = arith.constant 0 : index
    %c112_279 = arith.constant 112 : index
    %313 = vector.load %arg17[%c0_278, %c112_279] : memref<8x896xf32, #tpu.memory_space<vmem>>, vector<4x256xf32>
    %c0_280 = arith.constant 0 : index
    %c496_281 = arith.constant 496 : index
    %314 = vector.load %arg17[%c0_280, %c496_281] : memref<8x896xf32, #tpu.memory_space<vmem>>, vector<4x256xf32>
    %315 = tpu.concatenate %313, %314 in 1 : vector<4x256xf32>, vector<4x256xf32> -> vector<4x512xf32>
    %c12_282 = arith.constant 12 : index
    %c0_283 = arith.constant 0 : index
    %316 = vector.load %arg19[%c12_282, %c0_283] : memref<40x512xf32, #tpu.memory_space<vmem>>, vector<4x512xf32>
    tpu.vector_store %arg19[%c12_282, %c0_283], %315 {strides = array<i32>} : memref<40x512xf32, #tpu.memory_space<vmem>>, vector<4x512xf32>,
    %c0_284 = arith.constant 0 : index
    %c128_285 = arith.constant 128 : index
    %317 = vector.load %arg17[%c0_284, %c128_285] : memref<8x896xf32, #tpu.memory_space<vmem>>, vector<4x256xf32>
    %c0_286 = arith.constant 0 : index
    %c512_287 = arith.constant 512 : index
    %318 = vector.load %arg17[%c0_286, %c512_287] : memref<8x896xf32, #tpu.memory_space<vmem>>, vector<4x256xf32>
    %319 = tpu.concatenate %317, %318 in 1 : vector<4x256xf32>, vector<4x256xf32> -> vector<4x512xf32>
    %c16_288 = arith.constant 16 : index
    %c0_289 = arith.constant 0 : index
    %320 = vector.load %arg19[%c16_288, %c0_289] : memref<40x512xf32, #tpu.memory_space<vmem>>, vector<4x512xf32>
    tpu.vector_store %arg19[%c16_288, %c0_289], %319 {strides = array<i32>} : memref<40x512xf32, #tpu.memory_space<vmem>>, vector<4x512xf32>,
    %c0_290 = arith.constant 0 : index
    %c144_291 = arith.constant 144 : index
    %321 = vector.load %arg17[%c0_290, %c144_291] : memref<8x896xf32, #tpu.memory_space<vmem>>, vector<4x256xf32>
    %c0_292 = arith.constant 0 : index
    %c528_293 = arith.constant 528 : index
    %322 = vector.load %arg17[%c0_292, %c528_293] : memref<8x896xf32, #tpu.memory_space<vmem>>, vector<4x256xf32>
    %323 = tpu.concatenate %321, %322 in 1 : vector<4x256xf32>, vector<4x256xf32> -> vector<4x512xf32>
    %c20_294 = arith.constant 20 : index
    %c0_295 = arith.constant 0 : index
    %324 = vector.load %arg19[%c20_294, %c0_295] : memref<40x512xf32, #tpu.memory_space<vmem>>, vector<4x512xf32>
    tpu.vector_store %arg19[%c20_294, %c0_295], %323 {strides = array<i32>} : memref<40x512xf32, #tpu.memory_space<vmem>>, vector<4x512xf32>,
    %c0_296 = arith.constant 0 : index
    %c113_297 = arith.constant 113 : index
    %325 = vector.load %arg17[%c0_296, %c113_297] : memref<8x896xf32, #tpu.memory_space<vmem>>, vector<4x256xf32>
    %326 = arith.mulf %325, %290 : vector<4x256xf32>
    %c0_298 = arith.constant 0 : index
    %c497_299 = arith.constant 497 : index
    %327 = vector.load %arg17[%c0_298, %c497_299] : memref<8x896xf32, #tpu.memory_space<vmem>>, vector<4x256xf32>
    %328 = arith.mulf %327, %290 : vector<4x256xf32>
    %329 = tpu.concatenate %326, %328 in 1 : vector<4x256xf32>, vector<4x256xf32> -> vector<4x512xf32>
    %c24_300 = arith.constant 24 : index
    %c0_301 = arith.constant 0 : index
    %330 = vector.load %arg19[%c24_300, %c0_301] : memref<40x512xf32, #tpu.memory_space<vmem>>, vector<4x512xf32>
    tpu.vector_store %arg19[%c24_300, %c0_301], %329 {strides = array<i32>} : memref<40x512xf32, #tpu.memory_space<vmem>>, vector<4x512xf32>,
    %c0_302 = arith.constant 0 : index
    %c129_303 = arith.constant 129 : index
    %331 = vector.load %arg17[%c0_302, %c129_303] : memref<8x896xf32, #tpu.memory_space<vmem>>, vector<4x256xf32>
    %332 = arith.mulf %331, %290 : vector<4x256xf32>
    %c0_304 = arith.constant 0 : index
    %c513_305 = arith.constant 513 : index
    %333 = vector.load %arg17[%c0_304, %c513_305] : memref<8x896xf32, #tpu.memory_space<vmem>>, vector<4x256xf32>
    %334 = arith.mulf %333, %290 : vector<4x256xf32>
    %335 = tpu.concatenate %332, %334 in 1 : vector<4x256xf32>, vector<4x256xf32> -> vector<4x512xf32>
    %c28_306 = arith.constant 28 : index
    %c0_307 = arith.constant 0 : index
    %336 = vector.load %arg19[%c28_306, %c0_307] : memref<40x512xf32, #tpu.memory_space<vmem>>, vector<4x512xf32>
    tpu.vector_store %arg19[%c28_306, %c0_307], %335 {strides = array<i32>} : memref<40x512xf32, #tpu.memory_space<vmem>>, vector<4x512xf32>,
    %c0_308 = arith.constant 0 : index
    %c145_309 = arith.constant 145 : index
    %337 = vector.load %arg17[%c0_308, %c145_309] : memref<8x896xf32, #tpu.memory_space<vmem>>, vector<4x256xf32>
    %338 = arith.mulf %337, %290 : vector<4x256xf32>
    %c0_310 = arith.constant 0 : index
    %c529_311 = arith.constant 529 : index
    %339 = vector.load %arg17[%c0_310, %c529_311] : memref<8x896xf32, #tpu.memory_space<vmem>>, vector<4x256xf32>
    %340 = arith.mulf %339, %290 : vector<4x256xf32>
    %341 = tpu.concatenate %338, %340 in 1 : vector<4x256xf32>, vector<4x256xf32> -> vector<4x512xf32>
    %c32_312 = arith.constant 32 : index
    %c0_313 = arith.constant 0 : index
    %342 = vector.load %arg19[%c32_312, %c0_313] : memref<40x512xf32, #tpu.memory_space<vmem>>, vector<4x512xf32>
    tpu.vector_store %arg19[%c32_312, %c0_313], %341 {strides = array<i32>} : memref<40x512xf32, #tpu.memory_space<vmem>>, vector<4x512xf32>,
    %c0_314 = arith.constant 0 : index
    %c0_315 = arith.constant 0 : index
    %343 = vector.load %arg9[%c0_314, %c0_315] : memref<8x40xbf16, #tpu.memory_space<vmem>>, vector<8x40xbf16>
    %c0_316 = arith.constant 0 : index
    %c0_317 = arith.constant 0 : index
    %344 = vector.load %arg19[%c0_316, %c0_317] : memref<40x512xf32, #tpu.memory_space<vmem>>, vector<40x512xf32>
    %345 = arith.truncf %344 : vector<40x512xf32> to vector<40x512xbf16>
    %cst_318 = arith.constant dense<0.000000e+00> : vector<8x512xf32>
    %346 = tpu.matmul %343, %345, %cst_318 {dimension_numbers = #tpu.dot_dimension_numbers<[1], [0], [0], [1], [0, 0, 1, 1], [], []>} : vector<8x40xbf16>, vector<40x512xbf16>, vector<8x512xf32> -> vector<8x512xf32>
    %cst_319 = arith.constant 0.000000e+00 : f32
    %347 = vector.broadcast %cst_319 : f32 to vector<8x512xf32>
    %348 = arith.maximumf %346, %347 : vector<8x512xf32>
    %c0_320 = arith.constant 0 : index
    %c0_321 = arith.constant 0 : index
    %c0_322 = arith.constant 0 : index
    %349 = vector.load %arg13[%c0_320, %c0_321, %c0_322] : memref<2x8x256xf32, #tpu.memory_space<vmem>>, vector<2x8x256xf32>
    %350 = vector.extract_strided_slice %349 {offsets = [0, 0, 0], sizes = [1, 8, 256], strides = [1, 1, 1]} : vector<2x8x256xf32> to vector<1x8x256xf32>
    %351 = vector.shape_cast %350 : vector<1x8x256xf32> to vector<8x256xf32>
    %352 = vector.extract_strided_slice %349 {offsets = [1, 0, 0], sizes = [1, 8, 256], strides = [1, 1, 1]} : vector<2x8x256xf32> to vector<1x8x256xf32>
    %353 = vector.shape_cast %352 : vector<1x8x256xf32> to vector<8x256xf32>
    %354 = vector.extract_strided_slice %348 {offsets = [0, 0], sizes = [8, 256], strides = [1, 1]} : vector<8x512xf32> to vector<8x256xf32>
    %c0_323 = arith.constant 0 : index
    %c128_324 = arith.constant 128 : index
    %355 = vector.load %arg17[%c0_323, %c128_324] : memref<8x896xf32, #tpu.memory_space<vmem>>, vector<8x256xf32>
    tpu.vector_store %arg17[%c0_323, %c128_324], %354 {strides = array<i32>} : memref<8x896xf32, #tpu.memory_space<vmem>>, vector<8x256xf32>,
    %356 = vector.extract_strided_slice %348 {offsets = [0, 256], sizes = [8, 256], strides = [1, 1]} : vector<8x512xf32> to vector<8x256xf32>
    %c0_325 = arith.constant 0 : index
    %c512_326 = arith.constant 512 : index
    %357 = vector.load %arg17[%c0_325, %c512_326] : memref<8x896xf32, #tpu.memory_space<vmem>>, vector<8x256xf32>
    tpu.vector_store %arg17[%c0_325, %c512_326], %356 {strides = array<i32>} : memref<8x896xf32, #tpu.memory_space<vmem>>, vector<8x256xf32>,
    %c0_327 = arith.constant 0 : index
    %c111_328 = arith.constant 111 : index
    %358 = vector.load %arg17[%c0_327, %c111_328] : memref<8x896xf32, #tpu.memory_space<vmem>>, vector<8x256xf32>
    %359 = arith.mulf %358, %351 : vector<8x256xf32>
    %c0_329 = arith.constant 0 : index
    %c495_330 = arith.constant 495 : index
    %360 = vector.load %arg17[%c0_329, %c495_330] : memref<8x896xf32, #tpu.memory_space<vmem>>, vector<8x256xf32>
    %361 = arith.mulf %360, %351 : vector<8x256xf32>
    %362 = tpu.concatenate %359, %361 in 1 : vector<8x256xf32>, vector<8x256xf32> -> vector<8x512xf32>
    %c0_331 = arith.constant 0 : index
    %c0_332 = arith.constant 0 : index
    %363 = vector.load %arg20[%c0_331, %c0_332] : memref<72x512xf32, #tpu.memory_space<vmem>>, vector<8x512xf32>
    tpu.vector_store %arg20[%c0_331, %c0_332], %362 {strides = array<i32>} : memref<72x512xf32, #tpu.memory_space<vmem>>, vector<8x512xf32>,
    %c0_333 = arith.constant 0 : index
    %c127_334 = arith.constant 127 : index
    %364 = vector.load %arg17[%c0_333, %c127_334] : memref<8x896xf32, #tpu.memory_space<vmem>>, vector<8x256xf32>
    %365 = arith.mulf %364, %351 : vector<8x256xf32>
    %c0_335 = arith.constant 0 : index
    %c511_336 = arith.constant 511 : index
    %366 = vector.load %arg17[%c0_335, %c511_336] : memref<8x896xf32, #tpu.memory_space<vmem>>, vector<8x256xf32>
    %367 = arith.mulf %366, %351 : vector<8x256xf32>
    %368 = tpu.concatenate %365, %367 in 1 : vector<8x256xf32>, vector<8x256xf32> -> vector<8x512xf32>
    %c8_337 = arith.constant 8 : index
    %c0_338 = arith.constant 0 : index
    %369 = vector.load %arg20[%c8_337, %c0_338] : memref<72x512xf32, #tpu.memory_space<vmem>>, vector<8x512xf32>
    tpu.vector_store %arg20[%c8_337, %c0_338], %368 {strides = array<i32>} : memref<72x512xf32, #tpu.memory_space<vmem>>, vector<8x512xf32>,
    %c0_339 = arith.constant 0 : index
    %c143_340 = arith.constant 143 : index
    %370 = vector.load %arg17[%c0_339, %c143_340] : memref<8x896xf32, #tpu.memory_space<vmem>>, vector<8x256xf32>
    %371 = arith.mulf %370, %351 : vector<8x256xf32>
    %c0_341 = arith.constant 0 : index
    %c527_342 = arith.constant 527 : index
    %372 = vector.load %arg17[%c0_341, %c527_342] : memref<8x896xf32, #tpu.memory_space<vmem>>, vector<8x256xf32>
    %373 = arith.mulf %372, %351 : vector<8x256xf32>
    %374 = tpu.concatenate %371, %373 in 1 : vector<8x256xf32>, vector<8x256xf32> -> vector<8x512xf32>
    %c16_343 = arith.constant 16 : index
    %c0_344 = arith.constant 0 : index
    %375 = vector.load %arg20[%c16_343, %c0_344] : memref<72x512xf32, #tpu.memory_space<vmem>>, vector<8x512xf32>
    tpu.vector_store %arg20[%c16_343, %c0_344], %374 {strides = array<i32>} : memref<72x512xf32, #tpu.memory_space<vmem>>, vector<8x512xf32>,
    %c0_345 = arith.constant 0 : index
    %c112_346 = arith.constant 112 : index
    %376 = vector.load %arg17[%c0_345, %c112_346] : memref<8x896xf32, #tpu.memory_space<vmem>>, vector<8x256xf32>
    %c0_347 = arith.constant 0 : index
    %c496_348 = arith.constant 496 : index
    %377 = vector.load %arg17[%c0_347, %c496_348] : memref<8x896xf32, #tpu.memory_space<vmem>>, vector<8x256xf32>
    %378 = tpu.concatenate %376, %377 in 1 : vector<8x256xf32>, vector<8x256xf32> -> vector<8x512xf32>
    %c24_349 = arith.constant 24 : index
    %c0_350 = arith.constant 0 : index
    %379 = vector.load %arg20[%c24_349, %c0_350] : memref<72x512xf32, #tpu.memory_space<vmem>>, vector<8x512xf32>
    tpu.vector_store %arg20[%c24_349, %c0_350], %378 {strides = array<i32>} : memref<72x512xf32, #tpu.memory_space<vmem>>, vector<8x512xf32>,
    %c0_351 = arith.constant 0 : index
    %c128_352 = arith.constant 128 : index
    %380 = vector.load %arg17[%c0_351, %c128_352] : memref<8x896xf32, #tpu.memory_space<vmem>>, vector<8x256xf32>
    %c0_353 = arith.constant 0 : index
    %c512_354 = arith.constant 512 : index
    %381 = vector.load %arg17[%c0_353, %c512_354] : memref<8x896xf32, #tpu.memory_space<vmem>>, vector<8x256xf32>
    %382 = tpu.concatenate %380, %381 in 1 : vector<8x256xf32>, vector<8x256xf32> -> vector<8x512xf32>
    %c32_355 = arith.constant 32 : index
    %c0_356 = arith.constant 0 : index
    %383 = vector.load %arg20[%c32_355, %c0_356] : memref<72x512xf32, #tpu.memory_space<vmem>>, vector<8x512xf32>
    tpu.vector_store %arg20[%c32_355, %c0_356], %382 {strides = array<i32>} : memref<72x512xf32, #tpu.memory_space<vmem>>, vector<8x512xf32>,
    %c0_357 = arith.constant 0 : index
    %c144_358 = arith.constant 144 : index
    %384 = vector.load %arg17[%c0_357, %c144_358] : memref<8x896xf32, #tpu.memory_space<vmem>>, vector<8x256xf32>
    %c0_359 = arith.constant 0 : index
    %c528_360 = arith.constant 528 : index
    %385 = vector.load %arg17[%c0_359, %c528_360] : memref<8x896xf32, #tpu.memory_space<vmem>>, vector<8x256xf32>
    %386 = tpu.concatenate %384, %385 in 1 : vector<8x256xf32>, vector<8x256xf32> -> vector<8x512xf32>
    %c40_361 = arith.constant 40 : index
    %c0_362 = arith.constant 0 : index
    %387 = vector.load %arg20[%c40_361, %c0_362] : memref<72x512xf32, #tpu.memory_space<vmem>>, vector<8x512xf32>
    tpu.vector_store %arg20[%c40_361, %c0_362], %386 {strides = array<i32>} : memref<72x512xf32, #tpu.memory_space<vmem>>, vector<8x512xf32>,
    %c0_363 = arith.constant 0 : index
    %c113_364 = arith.constant 113 : index
    %388 = vector.load %arg17[%c0_363, %c113_364] : memref<8x896xf32, #tpu.memory_space<vmem>>, vector<8x256xf32>
    %389 = arith.mulf %388, %353 : vector<8x256xf32>
    %c0_365 = arith.constant 0 : index
    %c497_366 = arith.constant 497 : index
    %390 = vector.load %arg17[%c0_365, %c497_366] : memref<8x896xf32, #tpu.memory_space<vmem>>, vector<8x256xf32>
    %391 = arith.mulf %390, %353 : vector<8x256xf32>
    %392 = tpu.concatenate %389, %391 in 1 : vector<8x256xf32>, vector<8x256xf32> -> vector<8x512xf32>
    %c48_367 = arith.constant 48 : index
    %c0_368 = arith.constant 0 : index
    %393 = vector.load %arg20[%c48_367, %c0_368] : memref<72x512xf32, #tpu.memory_space<vmem>>, vector<8x512xf32>
    tpu.vector_store %arg20[%c48_367, %c0_368], %392 {strides = array<i32>} : memref<72x512xf32, #tpu.memory_space<vmem>>, vector<8x512xf32>,
    %c0_369 = arith.constant 0 : index
    %c129_370 = arith.constant 129 : index
    %394 = vector.load %arg17[%c0_369, %c129_370] : memref<8x896xf32, #tpu.memory_space<vmem>>, vector<8x256xf32>
    %395 = arith.mulf %394, %353 : vector<8x256xf32>
    %c0_371 = arith.constant 0 : index
    %c513_372 = arith.constant 513 : index
    %396 = vector.load %arg17[%c0_371, %c513_372] : memref<8x896xf32, #tpu.memory_space<vmem>>, vector<8x256xf32>
    %397 = arith.mulf %396, %353 : vector<8x256xf32>
    %398 = tpu.concatenate %395, %397 in 1 : vector<8x256xf32>, vector<8x256xf32> -> vector<8x512xf32>
    %c56_373 = arith.constant 56 : index
    %c0_374 = arith.constant 0 : index
    %399 = vector.load %arg20[%c56_373, %c0_374] : memref<72x512xf32, #tpu.memory_space<vmem>>, vector<8x512xf32>
    tpu.vector_store %arg20[%c56_373, %c0_374], %398 {strides = array<i32>} : memref<72x512xf32, #tpu.memory_space<vmem>>, vector<8x512xf32>,
    %c0_375 = arith.constant 0 : index
    %c145_376 = arith.constant 145 : index
    %400 = vector.load %arg17[%c0_375, %c145_376] : memref<8x896xf32, #tpu.memory_space<vmem>>, vector<8x256xf32>
    %401 = arith.mulf %400, %353 : vector<8x256xf32>
    %c0_377 = arith.constant 0 : index
    %c529_378 = arith.constant 529 : index
    %402 = vector.load %arg17[%c0_377, %c529_378] : memref<8x896xf32, #tpu.memory_space<vmem>>, vector<8x256xf32>
    %403 = arith.mulf %402, %353 : vector<8x256xf32>
    %404 = tpu.concatenate %401, %403 in 1 : vector<8x256xf32>, vector<8x256xf32> -> vector<8x512xf32>
    %c64_379 = arith.constant 64 : index
    %c0_380 = arith.constant 0 : index
    %405 = vector.load %arg20[%c64_379, %c0_380] : memref<72x512xf32, #tpu.memory_space<vmem>>, vector<8x512xf32>
    tpu.vector_store %arg20[%c64_379, %c0_380], %404 {strides = array<i32>} : memref<72x512xf32, #tpu.memory_space<vmem>>, vector<8x512xf32>,
    %c0_381 = arith.constant 0 : index
    %c0_382 = arith.constant 0 : index
    %406 = vector.load %arg10[%c0_381, %c0_382] : memref<4x72xbf16, #tpu.memory_space<vmem>>, vector<4x72xbf16>
    %c0_383 = arith.constant 0 : index
    %c0_384 = arith.constant 0 : index
    %407 = vector.load %arg20[%c0_383, %c0_384] : memref<72x512xf32, #tpu.memory_space<vmem>>, vector<72x512xf32>
    %408 = arith.truncf %407 : vector<72x512xf32> to vector<72x512xbf16>
    %cst_385 = arith.constant dense<0.000000e+00> : vector<4x512xf32>
    %409 = tpu.matmul %406, %408, %cst_385 {dimension_numbers = #tpu.dot_dimension_numbers<[1], [0], [0], [1], [0, 0, 1, 1], [], []>} : vector<4x72xbf16>, vector<72x512xbf16>, vector<4x512xf32> -> vector<4x512xf32>
    %c0_386 = arith.constant 0 : index
    %c0_387 = arith.constant 0 : index
    %c0_388 = arith.constant 0 : index
    %410 = vector.load %arg15[%c0_386, %c0_387, %c0_388] : memref<1x4x512xf32, #tpu.memory_space<vmem>>, vector<1x4x512xf32>
    %411 = vector.shape_cast %410 : vector<1x4x512xf32> to vector<4x512xf32>
    %412 = vector.shape_cast %409 : vector<4x512xf32> to vector<1x4x512xf32>
    tpu.vector_store %arg15[%c0_386, %c0_387, %c0_388], %412 {strides = array<i32>} : memref<1x4x512xf32, #tpu.memory_space<vmem>>, vector<1x4x512xf32>,
    %c0_389 = arith.constant 0 : index
    %c0_390 = arith.constant 0 : index
    %c0_391 = arith.constant 0 : index
    %413 = vector.load %arg16[%c0_389, %c0_390, %c0_391] : memref<1x4x128xf32, #tpu.memory_space<vmem>>, vector<1x4x128xf32>
    %414 = vector.shape_cast %413 : vector<1x4x128xf32> to vector<4x128xf32>
    %415 = vector.shape_cast %271 : vector<4x128xf32> to vector<1x4x128xf32>
    tpu.vector_store %arg16[%c0_389, %c0_390, %c0_391], %415 {strides = array<i32>} : memref<1x4x128xf32, #tpu.memory_space<vmem>>, vector<1x4x128xf32>,
    return
  }
  func.func @transform_0(%arg0: i32) -> (i32, i32, i32) {
    %c0_i32 = arith.constant 0 : i32
    %c0_i32_0 = arith.constant 0 : i32
    %c0_i32_1 = arith.constant 0 : i32
    return %arg0, %c0_i32, %c0_i32_0 : i32, i32, i32
  }
  func.func @transform_1(%arg0: i32) -> (i32, i32, i32) {
    %c0_i32 = arith.constant 0 : i32
    %c0_i32_0 = arith.constant 0 : i32
    %c0_i32_1 = arith.constant 0 : i32
    return %arg0, %c0_i32, %c0_i32_0 : i32, i32, i32
  }
  func.func @transform_2(%arg0: i32) -> (i32, i32, i32) {
    %c0_i32 = arith.constant 0 : i32
    %c0_i32_0 = arith.constant 0 : i32
    %c0_i32_1 = arith.constant 0 : i32
    return %arg0, %c0_i32, %c0_i32_0 : i32, i32, i32
  }
  func.func @transform_3(%arg0: i32) -> (i32, i32, i32) {
    %c0_i32 = arith.constant 0 : i32
    %c0_i32_0 = arith.constant 0 : i32
    %c0_i32_1 = arith.constant 0 : i32
    return %arg0, %c0_i32, %c0_i32_0 : i32, i32, i32
  }
  func.func @transform_4(%arg0: i32) -> (i32, i32) {
    %c0_i32 = arith.constant 0 : i32
    %c0_i32_0 = arith.constant 0 : i32
    %c0_i32_1 = arith.constant 0 : i32
    return %c0_i32, %c0_i32_0 : i32, i32
  }
  func.func @transform_5(%arg0: i32) -> (i32, i32) {
    %c0_i32 = arith.constant 0 : i32
    %c0_i32_0 = arith.constant 0 : i32
    %c0_i32_1 = arith.constant 0 : i32
    return %c0_i32, %c0_i32_0 : i32, i32
  }
  func.func @transform_6(%arg0: i32) -> (i32, i32) {
    %c0_i32 = arith.constant 0 : i32
    %c0_i32_0 = arith.constant 0 : i32
    %c0_i32_1 = arith.constant 0 : i32
    return %c0_i32, %c0_i32_0 : i32, i32
  }
  func.func @transform_7(%arg0: i32) -> (i32, i32) {
    %c0_i32 = arith.constant 0 : i32
    %c0_i32_0 = arith.constant 0 : i32
    %c0_i32_1 = arith.constant 0 : i32
    return %c0_i32, %c0_i32_0 : i32, i32
  }
  func.func @transform_8(%arg0: i32) -> (i32, i32) {
    %c0_i32 = arith.constant 0 : i32
    %c0_i32_0 = arith.constant 0 : i32
    %c0_i32_1 = arith.constant 0 : i32
    return %c0_i32, %c0_i32_0 : i32, i32
  }
  func.func @transform_9(%arg0: i32) -> (i32, i32) {
    %c0_i32 = arith.constant 0 : i32
    %c0_i32_0 = arith.constant 0 : i32
    %c0_i32_1 = arith.constant 0 : i32
    return %c0_i32, %c0_i32_0 : i32, i32
  }
  func.func @transform_10(%arg0: i32) -> (i32, i32) {
    %c0_i32 = arith.constant 0 : i32
    %c0_i32_0 = arith.constant 0 : i32
    %c0_i32_1 = arith.constant 0 : i32
    return %c0_i32, %c0_i32_0 : i32, i32
  }
  func.func @transform_11(%arg0: i32) -> (i32, i32) {
    %c0_i32 = arith.constant 0 : i32
    %c0_i32_0 = arith.constant 0 : i32
    %c0_i32_1 = arith.constant 0 : i32
    return %c0_i32, %c0_i32_0 : i32, i32
  }
  func.func @transform_12(%arg0: i32) -> (i32, i32, i32) {
    %c0_i32 = arith.constant 0 : i32
    %c0_i32_0 = arith.constant 0 : i32
    %c0_i32_1 = arith.constant 0 : i32
    %c0_i32_2 = arith.constant 0 : i32
    return %c0_i32, %c0_i32_0, %c0_i32_1 : i32, i32, i32
  }
  func.func @transform_13(%arg0: i32) -> (i32, i32, i32) {
    %c0_i32 = arith.constant 0 : i32
    %c0_i32_0 = arith.constant 0 : i32
    %c0_i32_1 = arith.constant 0 : i32
    %c0_i32_2 = arith.constant 0 : i32
    return %c0_i32, %c0_i32_0, %c0_i32_1 : i32, i32, i32
  }
  func.func @transform_14(%arg0: i32) -> (i32, i32, i32) {
    %c0_i32 = arith.constant 0 : i32
    %c0_i32_0 = arith.constant 0 : i32
    %c0_i32_1 = arith.constant 0 : i32
    return %arg0, %c0_i32, %c0_i32_0 : i32, i32, i32
  }
  func.func @transform_15(%arg0: i32) -> (i32, i32, i32) {
    %c0_i32 = arith.constant 0 : i32
    %c0_i32_0 = arith.constant 0 : i32
    %c0_i32_1 = arith.constant 0 : i32
    return %arg0, %c0_i32, %c0_i32_0 : i32, i32, i32
  }
}

</mosaic_0001>

<llo_original>
// kernel: lr_block.1
$region0: #{lr_block.1}
  #allocation0 [shape = 'u32[]', space=smem, size = 0x4, offset = 0x4, fixed_abs, tag = 'smem constant byte address 0x4 - core index']
  #allocation1 [shape = 'u32[144,128]{1,0:T(1,128)}', space=vmem, size = 0x12000, scoped, tag = 'internal scratch']
  #allocation2 [shape = 'f32[8,896]{1,0:T(8,128)}', space=vmem, size = 0x7000, scoped, tag = 'scratch operand']
  #allocation3 [shape = 'f32[8,384]{1,0:T(8,128)}', space=vmem, size = 0x3000, scoped, tag = 'scratch operand']
  #allocation4 [shape = 'f32[40,512]{1,0:T(8,128)}', space=vmem, size = 0x14000, scoped, tag = 'scratch operand']
  #allocation5 [shape = 'f32[72,512]{1,0:T(8,128)}', space=vmem, size = 0x24000, scoped, tag = 'scratch operand']
  #allocation6 [shape = 'f32[40,128]{1,0:T(8,128)}', space=vmem, size = 0x5000, scoped, tag = 'scratch operand']
  #allocation7 [shape = 'f32[72,128]{1,0:T(8,128)}', space=vmem, size = 0x9000, scoped, tag = 'scratch operand']
  %s0 = inlined_call_operand.vmem [shape: f32[1,4,512], index: 0, kind: input, shape index: {}]
  %s1 = inlined_call_operand.vmem [shape: f32[1,4,128], index: 1, kind: input, shape index: {}]
  %s2 = inlined_call_operand.vmem [shape: f32[1,4,512], index: 2, kind: input, shape index: {}]
  %s3 = inlined_call_operand.vmem [shape: f32[1,4,512], index: 3, kind: input, shape index: {}]
  %s4 = inlined_call_operand.vmem [shape: bf16[8,40], index: 4, kind: input, shape index: {}]
  %s5 = inlined_call_operand.vmem [shape: bf16[4,72], index: 5, kind: input, shape index: {}]
  %s6 = inlined_call_operand.vmem [shape: bf16[8,40], index: 6, kind: input, shape index: {}]
  %s7 = inlined_call_operand.vmem [shape: bf16[4,72], index: 7, kind: input, shape index: {}]
  %s8 = inlined_call_operand.vmem [shape: bf16[8,40], index: 8, kind: input, shape index: {}]
  %s9 = inlined_call_operand.vmem [shape: bf16[4,72], index: 9, kind: input, shape index: {}]
  %s10 = inlined_call_operand.vmem [shape: bf16[256,64], index: 10, kind: input, shape index: {}]
  %s11 = inlined_call_operand.vmem [shape: bf16[64,256], index: 11, kind: input, shape index: {}]
  %s12 = inlined_call_operand.vmem [shape: f32[2,8,256], index: 12, kind: input, shape index: {}]
  %s13 = inlined_call_operand.vmem [shape: f32[2,8,64], index: 13, kind: input, shape index: {}]
  %s14 = inlined_call_operand.vmem [shape: f32[1,4,512], index: 14, kind: output, shape index: {0}]
  %s15 = inlined_call_operand.vmem [shape: f32[1,4,128], index: 15, kind: output, shape index: {1}]
  %16 = xla_tuple %s14, %s15
  %s17 = sld [smem:[#allocation0]]
  $region74: #{lr_block.1} parent=0
    _
  %s19 = ssub.s32 1, %s17
  %s20 = scalar_select 0, %s19, %s17
  // Predicated region
  $region2: #{lr_block.1} parent=0 // pred_check
    _
  $region3: #{lr_block.1} parent=0 // pred_check_branch
    %22 = sbr.rel (0) target = $region5
  $region4: #{lr_block.1} parent=0 // pred_region
    _
  $region5: #{lr_block.1} parent=0 // pred_fallthru
    _
  // Predicated region
  $region6: #{lr_block.1} parent=0 // pred_check
    _
  $region7: #{lr_block.1} parent=0 // pred_check_branch
    %24 = sbr.rel (0) target = $region9
  $region8: #{lr_block.1} parent=0 // pred_region
    _
  $region9: #{lr_block.1} parent=0 // pred_fallthru
    _
  // Predicated region
  $region10: #{lr_block.1} parent=0 // pred_check
    _
  $region11: #{lr_block.1} parent=0 // pred_check_branch
    %26 = sbr.rel (0) target = $region13
  $region12: #{lr_block.1} parent=0 // pred_region
    _
  $region13: #{lr_block.1} parent=0 // pred_fallthru
    _
  // Predicated region
  $region14: #{lr_block.1} parent=0 // pred_check
    _
  $region15: #{lr_block.1} parent=0 // pred_check_branch
    %28 = sbr.rel (0) target = $region17
  $region16: #{lr_block.1} parent=0 // pred_region
    _
  $region17: #{lr_block.1} parent=0 // pred_fallthru
    _
  // Predicated region
  $region18: #{lr_block.1} parent=0 // pred_check
    _
  $region19: #{lr_block.1} parent=0 // pred_check_branch
    %30 = sbr.rel (0) target = $region21
  $region20: #{lr_block.1} parent=0 // pred_region
    _
  $region21: #{lr_block.1} parent=0 // pred_fallthru
    _
  // Predicated region
  $region22: #{lr_block.1} parent=0 // pred_check
    _
  $region23: #{lr_block.1} parent=0 // pred_check_branch
    %32 = sbr.rel (0) target = $region25
  $region24: #{lr_block.1} parent=0 // pred_region
    _
  $region25: #{lr_block.1} parent=0 // pred_fallthru
    _
  // Predicated region
  $region26: #{lr_block.1} parent=0 // pred_check
    _
  $region27: #{lr_block.1} parent=0 // pred_check_branch
    %34 = sbr.rel (0) target = $region29
  $region28: #{lr_block.1} parent=0 // pred_region
    _
  $region29: #{lr_block.1} parent=0 // pred_fallthru
    _
  // Predicated region
  $region30: #{lr_block.1} parent=0 // pred_check
    _
  $region31: #{lr_block.1} parent=0 // pred_check_branch
    %36 = sbr.rel (0) target = $region33
  $region32: #{lr_block.1} parent=0 // pred_region
    _
  $region33: #{lr_block.1} parent=0 // pred_fallthru
    _
  // Predicated region
  $region34: #{lr_block.1} parent=0 // pred_check
    _
  $region35: #{lr_block.1} parent=0 // pred_check_branch
    %38 = sbr.rel (0) target = $region37
  $region36: #{lr_block.1} parent=0 // pred_region
    _
  $region37: #{lr_block.1} parent=0 // pred_fallthru
    _
  // Predicated region
  $region38: #{lr_block.1} parent=0 // pred_check
    _
  $region39: #{lr_block.1} parent=0 // pred_check_branch
    %40 = sbr.rel (0) target = $region41
  $region40: #{lr_block.1} parent=0 // pred_region
    _
  $region41: #{lr_block.1} parent=0 // pred_fallthru
    _
  // Predicated region
  $region42: #{lr_block.1} parent=0 // pred_check
    _
  $region43: #{lr_block.1} parent=0 // pred_check_branch
    %42 = sbr.rel (0) target = $region45
  $region44: #{lr_block.1} parent=0 // pred_region
    _
  $region45: #{lr_block.1} parent=0 // pred_fallthru
    _
  // Predicated region
  $region46: #{lr_block.1} parent=0 // pred_check
    _
  $region47: #{lr_block.1} parent=0 // pred_check_branch
    %44 = sbr.rel (0) target = $region49
  $region48: #{lr_block.1} parent=0 // pred_region
    _
  $region49: #{lr_block.1} parent=0 // pred_fallthru
    _
  // Predicated region
  $region50: #{lr_block.1} parent=0 // pred_check
    _
  $region51: #{lr_block.1} parent=0 // pred_check_branch
    %46 = sbr.rel (0) target = $region53
  $region52: #{lr_block.1} parent=0 // pred_region
    _
  $region53: #{lr_block.1} parent=0 // pred_fallthru
    _
  // Predicated region
  $region54: #{lr_block.1} parent=0 // pred_check
    _
  $region55: #{lr_block.1} parent=0 // pred_check_branch
    %48 = sbr.rel (0) target = $region57
  $region56: #{lr_block.1} parent=0 // pred_region
    _
  $region57: #{lr_block.1} parent=0 // pred_fallthru
    _
  %50 = vst [vmem:[#allocation2] sm:$0xff] 0.0
  %51 = vst [vmem:[#allocation2 + $0x8] sm:$0xff] 0.0
  %52 = vst [vmem:[#allocation2 + $0x10] sm:$0xff] 0.0
  %53 = vst [vmem:[#allocation2 + $0x18] sm:$0xff] 0.0
  %54 = vst [vmem:[#allocation2 + $0x20] sm:$0xff] 0.0
  %55 = vst [vmem:[#allocation2 + $0x28] sm:$0xff] 0.0
  %56 = vst [vmem:[#allocation2 + $0x30] sm:$0xff] 0.0
  %57 = vst [vmem:[#allocation3] sm:$0xff] 0.0
  %58 = vst [vmem:[#allocation3 + $0x8] sm:$0xff] 0.0
  %59 = vst [vmem:[#allocation3 + $0x10] sm:$0xff] 0.0
  %60 = vst [vmem:[#allocation4 + $0x80] sm:$0xf0] 0.0
  %61 = vst [vmem:[#allocation4 + $0x88] sm:$0xf0] 0.0
  %62 = vst [vmem:[#allocation4 + $0x90] sm:$0xf0] 0.0
  %63 = vst [vmem:[#allocation4 + $0x98] sm:$0xf0] 0.0
  %64 = vst [vmem:[#allocation6 + $0x24] sm:$0xf] 0.0
  %v65 = vld [vmem:[%s0] sm:$0xff]
  %v66 = vld [vmem:[%s0 + $0x8] sm:$0xff]
  %v67 = vld [vmem:[%s2] sm:$0xff]
  %v68 = vld [vmem:[%s2 + $0x8] sm:$0xff]
  %v69 = vadd.f32 %v65, %v67
  %v70 = vadd.f32 %v66, %v68
  %v71 = vld [vmem:[%s12] sm:$0xff]
  %v72 = vld [vmem:[%s12 + $0x8] sm:$0xff]
  %v73 = vld [vmem:[%s12 + $0x10] sm:$0xff]
  %v74 = vld [vmem:[%s12 + $0x18] sm:$0xff]
  %v76 = vcombine.high %v69, %v69
  %78 = vst [vmem:[#allocation2 + $0x8] sm:$0xf] %v69
  %79 = vst [vmem:[#allocation2 + $0x10] sm:$0xf] %v76
  %v81 = vcombine.high %v70, %v70
  %83 = vst [vmem:[#allocation2 + $0x20] sm:$0xf] %v70
  %84 = vst [vmem:[#allocation2 + $0x28] sm:$0xf] %v81
  %v85 = vld [vmem:[#allocation2] sm:$0xf]
  %v86 = vld [vmem:[#allocation2 + $0x8] sm:$0xf]
  %v87 = vld [vmem:[#allocation2 + $0x10] sm:$0xf]
  %90 = vrot.lane.b32.xlu0 %v71, 111
  %v91 = vpop.permute.xlu0 %90
  %92 = vrot.lane.b32.xlu0 %v72, 111
  %v93 = vpop.permute.xlu0 %92
  %vm94 = vcmask 908288
  %v95 = vsel %vm94, %v91, %v93
  %v99 = vmul.f32 %v85, %v91
  %v100 = vmul.f32 %v86, %v95
  %v101 = vmul.f32 %v87, %v93
  %v102 = vld [vmem:[#allocation2 + $0x18] sm:$0xf]
  %v103 = vld [vmem:[#allocation2 + $0x20] sm:$0xf]
  %v104 = vld [vmem:[#allocation2 + $0x28] sm:$0xf]
  %v105 = vmul.f32 %v102, %v91
  %v106 = vmul.f32 %v103, %v95
  %v107 = vmul.f32 %v104, %v93
  %111 = vrot.lane.b32.xlu0 %v99, 17
  %v112 = vpop.permute.xlu0 %111
  %113 = vrot.lane.b32.xlu0 %v100, 17
  %v114 = vpop.permute.xlu0 %113
  %115 = vrot.lane.b32.xlu0 %v101, 17
  %v116 = vpop.permute.xlu0 %115
  %vm117 = vcmask 138240
  %v118 = vsel %vm117, %v112, %v114
  %v119 = vsel %vm117, %v114, %v116
  %125 = vrot.lane.b32.xlu0 %v105, 17
  %v126 = vpop.permute.xlu0 %125
  %127 = vrot.lane.b32.xlu0 %v106, 17
  %v128 = vpop.permute.xlu0 %127
  %129 = vrot.lane.b32.xlu0 %v107, 17
  %v130 = vpop.permute.xlu0 %129
  %v131 = vsel %vm117, %v126, %v128
  %v132 = vsel %vm117, %v128, %v130
  %135 = vst [vmem:[#allocation4] sm:$0xf] %v118
  %136 = vst [vmem:[#allocation4 + $0x8] sm:$0xf] %v119
  %137 = vst [vmem:[#allocation4 + $0x10] sm:$0xf] %v131
  %138 = vst [vmem:[#allocation4 + $0x18] sm:$0xf] %v132
  %v139 = vld [vmem:[#allocation2] sm:$0xf]
  %v140 = vld [vmem:[#allocation2 + $0x8] sm:$0xf]
  %v141 = vld [vmem:[#allocation2 + $0x10] sm:$0xf]
  %142 = vrot.lane.b32.xlu0 %v71, 127
  %v143 = vpop.permute.xlu0 %142
  %144 = vrot.lane.b32.xlu0 %v72, 127
  %v145 = vpop.permute.xlu0 %144
  %vm146 = vcmask 1039360
  %v147 = vsel %vm146, %v143, %v145
  %v151 = vmul.f32 %v139, %v143
  %v152 = vmul.f32 %v140, %v147
  %v153 = vmul.f32 %v141, %v145
  %v154 = vld [vmem:[#allocation2 + $0x18] sm:$0xf]
  %v155 = vld [vmem:[#allocation2 + $0x20] sm:$0xf]
  %v156 = vld [vmem:[#allocation2 + $0x28] sm:$0xf]
  %v157 = vmul.f32 %v154, %v143
  %v158 = vmul.f32 %v155, %v147
  %v159 = vmul.f32 %v156, %v145
  %163 = vrot.lane.b32.xlu0 %v151, 1
  %v164 = vpop.permute.xlu0 %163
  %165 = vrot.lane.b32.xlu0 %v152, 1
  %v166 = vpop.permute.xlu0 %165
  %167 = vrot.lane.b32.xlu0 %v153, 1
  %v168 = vpop.permute.xlu0 %167
  %vm169 = vcmask 7168
  %v170 = vsel %vm169, %v164, %v166
  %v171 = vsel %vm169, %v166, %v168
  %175 = vrot.lane.b32.xlu0 %v157, 1
  %v176 = vpop.permute.xlu0 %175
  %177 = vrot.lane.b32.xlu0 %v158, 1
  %v178 = vpop.permute.xlu0 %177
  %179 = vrot.lane.b32.xlu0 %v159, 1
  %v180 = vpop.permute.xlu0 %179
  %v181 = vsel %vm169, %v176, %v178
  %v182 = vsel %vm169, %v178, %v180
  %v183 = vrot.slane %v170, 4
  %v184 = vrot.slane %v171, 4
  %v185 = vrot.slane %v181, 4
  %v186 = vrot.slane %v182, 4
  %191 = vst [vmem:[#allocation4] sm:$0xf0] %v183
  %192 = vst [vmem:[#allocation4 + $0x8] sm:$0xf0] %v184
  %193 = vst [vmem:[#allocation4 + $0x10] sm:$0xf0] %v185
  %194 = vst [vmem:[#allocation4 + $0x18] sm:$0xf0] %v186
  %v195 = vld [vmem:[#allocation2 + $0x8] sm:$0xf]
  %v196 = vld [vmem:[#allocation2 + $0x10] sm:$0xf]
  %v197 = vld [vmem:[#allocation2 + $0x18] sm:$0xf]
  %198 = vrot.lane.b32.xlu0 %v71, 15
  %v199 = vpop.permute.xlu0 %198
  %200 = vrot.lane.b32.xlu0 %v72, 15
  %v201 = vpop.permute.xlu0 %200
  %vm202 = vcmask 121856
  %v203 = vsel %vm202, %v199, %v201
  %v207 = vmul.f32 %v195, %v199
  %v208 = vmul.f32 %v196, %v203
  %v209 = vmul.f32 %v197, %v201
  %v210 = vld [vmem:[#allocation2 + $0x20] sm:$0xf]
  %v211 = vld [vmem:[#allocation2 + $0x28] sm:$0xf]
  %v212 = vld [vmem:[#allocation2 + $0x30] sm:$0xf]
  %v213 = vmul.f32 %v210, %v199
  %v214 = vmul.f32 %v211, %v203
  %v215 = vmul.f32 %v212, %v201
  %219 = vrot.lane.b32.xlu0 %v207, 113
  %v220 = vpop.permute.xlu0 %219
  %221 = vrot.lane.b32.xlu0 %v208, 113
  %v222 = vpop.permute.xlu0 %221
  %223 = vrot.lane.b32.xlu0 %v209, 113
  %v224 = vpop.permute.xlu0 %223
  %vm225 = vcmask 924672
  %v226 = vsel %vm225, %v220, %v222
  %v227 = vsel %vm225, %v222, %v224
  %233 = vrot.lane.b32.xlu0 %v213, 113
  %v234 = vpop.permute.xlu0 %233
  %235 = vrot.lane.b32.xlu0 %v214, 113
  %v236 = vpop.permute.xlu0 %235
  %237 = vrot.lane.b32.xlu0 %v215, 113
  %v238 = vpop.permute.xlu0 %237
  %v239 = vsel %vm225, %v234, %v236
  %v240 = vsel %vm225, %v236, %v238
  %243 = vst [vmem:[#allocation4 + $0x20] sm:$0xf] %v226
  %244 = vst [vmem:[#allocation4 + $0x28] sm:$0xf] %v227
  %245 = vst [vmem:[#allocation4 + $0x30] sm:$0xf] %v239
  %246 = vst [vmem:[#allocation4 + $0x38] sm:$0xf] %v240
  %v247 = vld [vmem:[#allocation2] sm:$0xf]
  %v248 = vld [vmem:[#allocation2 + $0x8] sm:$0xf]
  %v249 = vld [vmem:[#allocation2 + $0x10] sm:$0xf]
  %v250 = vld [vmem:[#allocation2 + $0x18] sm:$0xf]
  %v251 = vld [vmem:[#allocation2 + $0x20] sm:$0xf]
  %v252 = vld [vmem:[#allocation2 + $0x28] sm:$0xf]
  %256 = vrot.lane.b32.xlu0 %v247, 16
  %v257 = vpop.permute.xlu0 %256
  %258 = vrot.lane.b32.xlu0 %v248, 16
  %v259 = vpop.permute.xlu0 %258
  %260 = vrot.lane.b32.xlu0 %v249, 16
  %v261 = vpop.permute.xlu0 %260
  %vm262 = vcmask 130048
  %v263 = vsel %vm262, %v257, %v259
  %v264 = vsel %vm262, %v259, %v261
  %268 = vrot.lane.b32.xlu0 %v250, 16
  %v269 = vpop.permute.xlu0 %268
  %270 = vrot.lane.b32.xlu0 %v251, 16
  %v271 = vpop.permute.xlu0 %270
  %272 = vrot.lane.b32.xlu0 %v252, 16
  %v273 = vpop.permute.xlu0 %272
  %v274 = vsel %vm262, %v269, %v271
  %v275 = vsel %vm262, %v271, %v273
  %v276 = vrot.slane %v263, 4
  %v277 = vrot.slane %v264, 4
  %v278 = vrot.slane %v274, 4
  %v279 = vrot.slane %v275, 4
  %284 = vst [vmem:[#allocation4 + $0x20] sm:$0xf0] %v276
  %285 = vst [vmem:[#allocation4 + $0x28] sm:$0xf0] %v277
  %286 = vst [vmem:[#allocation4 + $0x30] sm:$0xf0] %v278
  %287 = vst [vmem:[#allocation4 + $0x38] sm:$0xf0] %v279
  %v288 = vld [vmem:[#allocation2 + $0x8] sm:$0xf]
  %v289 = vld [vmem:[#allocation2 + $0x10] sm:$0xf]
  %v290 = vld [vmem:[#allocation2 + $0x20] sm:$0xf]
  %v291 = vld [vmem:[#allocation2 + $0x28] sm:$0xf]
  %292 = vst [vmem:[#allocation4 + $0x40] sm:$0xf] %v288
  %293 = vst [vmem:[#allocation4 + $0x48] sm:$0xf] %v289
  %294 = vst [vmem:[#allocation4 + $0x50] sm:$0xf] %v290
  %295 = vst [vmem:[#allocation4 + $0x58] sm:$0xf] %v291
  %v296 = vld [vmem:[#allocation2 + $0x8] sm:$0xf]
  %v297 = vld [vmem:[#allocation2 + $0x10] sm:$0xf]
  %v298 = vld [vmem:[#allocation2 + $0x18] sm:$0xf]
  %v299 = vld [vmem:[#allocation2 + $0x20] sm:$0xf]
  %v300 = vld [vmem:[#allocation2 + $0x28] sm:$0xf]
  %v301 = vld [vmem:[#allocation2 + $0x30] sm:$0xf]
  %305 = vrot.lane.b32.xlu0 %v296, 112
  %v306 = vpop.permute.xlu0 %305
  %307 = vrot.lane.b32.xlu0 %v297, 112
  %v308 = vpop.permute.xlu0 %307
  %309 = vrot.lane.b32.xlu0 %v298, 112
  %v310 = vpop.permute.xlu0 %309
  %vm311 = vcmask 916480
  %v312 = vsel %vm311, %v306, %v308
  %v313 = vsel %vm311, %v308, %v310
  %317 = vrot.lane.b32.xlu0 %v299, 112
  %v318 = vpop.permute.xlu0 %317
  %319 = vrot.lane.b32.xlu0 %v300, 112
  %v320 = vpop.permute.xlu0 %319
  %321 = vrot.lane.b32.xlu0 %v301, 112
  %v322 = vpop.permute.xlu0 %321
  %v323 = vsel %vm311, %v318, %v320
  %v324 = vsel %vm311, %v320, %v322
  %v325 = vrot.slane %v312, 4
  %v326 = vrot.slane %v313, 4
  %v327 = vrot.slane %v323, 4
  %v328 = vrot.slane %v324, 4
  %333 = vst [vmem:[#allocation4 + $0x40] sm:$0xf0] %v325
  %334 = vst [vmem:[#allocation4 + $0x48] sm:$0xf0] %v326
  %335 = vst [vmem:[#allocation4 + $0x50] sm:$0xf0] %v327
  %336 = vst [vmem:[#allocation4 + $0x58] sm:$0xf0] %v328
  %v337 = vld [vmem:[#allocation2] sm:$0xf]
  %v338 = vld [vmem:[#allocation2 + $0x8] sm:$0xf]
  %v339 = vld [vmem:[#allocation2 + $0x10] sm:$0xf]
  %342 = vrot.lane.b32.xlu0 %v73, 113
  %v343 = vpop.permute.xlu0 %342
  %344 = vrot.lane.b32.xlu0 %v74, 113
  %v345 = vpop.permute.xlu0 %344
  %v346 = vsel %vm225, %v343, %v345
  %v350 = vmul.f32 %v337, %v343
  %v351 = vmul.f32 %v338, %v346
  %v352 = vmul.f32 %v339, %v345
  %v353 = vld [vmem:[#allocation2 + $0x18] sm:$0xf]
  %v354 = vld [vmem:[#allocation2 + $0x20] sm:$0xf]
  %v355 = vld [vmem:[#allocation2 + $0x28] sm:$0xf]
  %v356 = vmul.f32 %v353, %v343
  %v357 = vmul.f32 %v354, %v346
  %v358 = vmul.f32 %v355, %v345
  %362 = vrot.lane.b32.xlu0 %v350, 15
  %v363 = vpop.permute.xlu0 %362
  %364 = vrot.lane.b32.xlu0 %v351, 15
  %v365 = vpop.permute.xlu0 %364
  %366 = vrot.lane.b32.xlu0 %v352, 15
  %v367 = vpop.permute.xlu0 %366
  %v368 = vsel %vm202, %v363, %v365
  %v369 = vsel %vm202, %v365, %v367
  %375 = vrot.lane.b32.xlu0 %v356, 15
  %v376 = vpop.permute.xlu0 %375
  %377 = vrot.lane.b32.xlu0 %v357, 15
  %v378 = vpop.permute.xlu0 %377
  %379 = vrot.lane.b32.xlu0 %v358, 15
  %v380 = vpop.permute.xlu0 %379
  %v381 = vsel %vm202, %v376, %v378
  %v382 = vsel %vm202, %v378, %v380
  %385 = vst [vmem:[#allocation4 + $0x60] sm:$0xf] %v368
  %386 = vst [vmem:[#allocation4 + $0x68] sm:$0xf] %v369
  %387 = vst [vmem:[#allocation4 + $0x70] sm:$0xf] %v381
  %388 = vst [vmem:[#allocation4 + $0x78] sm:$0xf] %v382
  %v389 = vld [vmem:[#allocation2 + $0x8] sm:$0xf]
  %v390 = vld [vmem:[#allocation2 + $0x10] sm:$0xf]
  %v391 = vld [vmem:[#allocation2 + $0x18] sm:$0xf]
  %392 = vrot.lane.b32.xlu0 %v73, 1
  %v393 = vpop.permute.xlu0 %392
  %394 = vrot.lane.b32.xlu0 %v74, 1
  %v395 = vpop.permute.xlu0 %394
  %v396 = vsel %vm169, %v393, %v395
  %v400 = vmul.f32 %v389, %v393
  %v401 = vmul.f32 %v390, %v396
  %v402 = vmul.f32 %v391, %v395
  %v403 = vld [vmem:[#allocation2 + $0x20] sm:$0xf]
  %v404 = vld [vmem:[#allocation2 + $0x28] sm:$0xf]
  %v405 = vld [vmem:[#allocation2 + $0x30] sm:$0xf]
  %v406 = vmul.f32 %v403, %v393
  %v407 = vmul.f32 %v404, %v396
  %v408 = vmul.f32 %v405, %v395
  %412 = vrot.lane.b32.xlu0 %v400, 127
  %v413 = vpop.permute.xlu0 %412
  %414 = vrot.lane.b32.xlu0 %v401, 127
  %v415 = vpop.permute.xlu0 %414
  %416 = vrot.lane.b32.xlu0 %v402, 127
  %v417 = vpop.permute.xlu0 %416
  %v418 = vsel %vm146, %v413, %v415
  %v419 = vsel %vm146, %v415, %v417
  %423 = vrot.lane.b32.xlu0 %v406, 127
  %v424 = vpop.permute.xlu0 %423
  %425 = vrot.lane.b32.xlu0 %v407, 127
  %v426 = vpop.permute.xlu0 %425
  %427 = vrot.lane.b32.xlu0 %v408, 127
  %v428 = vpop.permute.xlu0 %427
  %v429 = vsel %vm146, %v424, %v426
  %v430 = vsel %vm146, %v426, %v428
  %v431 = vrot.slane %v418, 4
  %v432 = vrot.slane %v419, 4
  %v433 = vrot.slane %v429, 4
  %v434 = vrot.slane %v430, 4
  %439 = vst [vmem:[#allocation4 + $0x60] sm:$0xf0] %v431
  %440 = vst [vmem:[#allocation4 + $0x68] sm:$0xf0] %v432
  %441 = vst [vmem:[#allocation4 + $0x70] sm:$0xf0] %v433
  %442 = vst [vmem:[#allocation4 + $0x78] sm:$0xf0] %v434
  %v443 = vld [vmem:[#allocation2 + $0x8] sm:$0xf]
  %v444 = vld [vmem:[#allocation2 + $0x10] sm:$0xf]
  %v445 = vld [vmem:[#allocation2 + $0x18] sm:$0xf]
  %446 = vrot.lane.b32.xlu0 %v73, 17
  %v447 = vpop.permute.xlu0 %446
  %448 = vrot.lane.b32.xlu0 %v74, 17
  %v449 = vpop.permute.xlu0 %448
  %v450 = vsel %vm117, %v447, %v449
  %v454 = vmul.f32 %v443, %v447
  %v455 = vmul.f32 %v444, %v450
  %v456 = vmul.f32 %v445, %v449
  %v457 = vld [vmem:[#allocation2 + $0x20] sm:$0xf]
  %v458 = vld [vmem:[#allocation2 + $0x28] sm:$0xf]
  %v459 = vld [vmem:[#allocation2 + $0x30] sm:$0xf]
  %v460 = vmul.f32 %v457, %v447
  %v461 = vmul.f32 %v458, %v450
  %v462 = vmul.f32 %v459, %v449
  %466 = vrot.lane.b32.xlu0 %v454, 111
  %v467 = vpop.permute.xlu0 %466
  %468 = vrot.lane.b32.xlu0 %v455, 111
  %v469 = vpop.permute.xlu0 %468
  %470 = vrot.lane.b32.xlu0 %v456, 111
  %v471 = vpop.permute.xlu0 %470
  %v472 = vsel %vm94, %v467, %v469
  %v473 = vsel %vm94, %v469, %v471
  %479 = vrot.lane.b32.xlu0 %v460, 111
  %v480 = vpop.permute.xlu0 %479
  %481 = vrot.lane.b32.xlu0 %v461, 111
  %v482 = vpop.permute.xlu0 %481
  %483 = vrot.lane.b32.xlu0 %v462, 111
  %v484 = vpop.permute.xlu0 %483
  %v485 = vsel %vm94, %v480, %v482
  %v486 = vsel %vm94, %v482, %v484
  %489 = vst [vmem:[#allocation4 + $0x80] sm:$0xf] %v472
  %490 = vst [vmem:[#allocation4 + $0x88] sm:$0xf] %v473
  %491 = vst [vmem:[#allocation4 + $0x90] sm:$0xf] %v485
  %492 = vst [vmem:[#allocation4 + $0x98] sm:$0xf] %v486
  %v493 = vld [vmem:[%s4] sm:$0xf]
  %v494 = vld [vmem:[#allocation4] sm:$0xff]
  %v495 = vld [vmem:[#allocation4 + $0x8] sm:$0xff]
  %v496 = vld [vmem:[#allocation4 + $0x10] sm:$0xff]
  %v497 = vld [vmem:[#allocation4 + $0x18] sm:$0xff]
  %v498 = vld [vmem:[#allocation4 + $0x20] sm:$0xff]
  %v499 = vld [vmem:[#allocation4 + $0x28] sm:$0xff]
  %v500 = vld [vmem:[#allocation4 + $0x30] sm:$0xff]
  %v501 = vld [vmem:[#allocation4 + $0x38] sm:$0xff]
  %v502 = vld [vmem:[#allocation4 + $0x40] sm:$0xff]
  %v503 = vld [vmem:[#allocation4 + $0x48] sm:$0xff]
  %v504 = vld [vmem:[#allocation4 + $0x50] sm:$0xff]
  %v505 = vld [vmem:[#allocation4 + $0x58] sm:$0xff]
  %v506 = vld [vmem:[#allocation4 + $0x60] sm:$0xff]
  %v507 = vld [vmem:[#allocation4 + $0x68] sm:$0xff]
  %v508 = vld [vmem:[#allocation4 + $0x70] sm:$0xff]
  %v509 = vld [vmem:[#allocation4 + $0x78] sm:$0xff]
  %v510 = vld [vmem:[#allocation4 + $0x80] sm:$0xff]
  %v511 = vld [vmem:[#allocation4 + $0x88] sm:$0xff]
  %v512 = vld [vmem:[#allocation4 + $0x90] sm:$0xff]
  %v513 = vld [vmem:[#allocation4 + $0x98] sm:$0xff]
  %v514 = vpack.c.bf16 %v498, %v494
  %v515 = vpack.c.bf16 %v499, %v495
  %v516 = vpack.c.bf16 %v500, %v496
  %v517 = vpack.c.bf16 %v501, %v497
  %v518 = vpack.c.bf16 %v506, %v502
  %v519 = vpack.c.bf16 %v507, %v503
  %v520 = vpack.c.bf16 %v508, %v504
  %v521 = vpack.c.bf16 %v509, %v505
  %v522 = vpack.c.bf16 %v510, %v510
  %v523 = vpack.c.bf16 %v511, %v511
  %v524 = vpack.c.bf16 %v512, %v512
  %v525 = vpack.c.bf16 %v513, %v513
  %vm526 = vcmask 326656
  %v528 = vsel %vm526, %v493, 0
  %vm530 = vcmask 1043456
  %v532 = vsel %vm530, %v522, 0
  %v535 = vsel %vm530, %v523, 0
  %v538 = vsel %vm530, %v524, 0
  %v541 = vsel %vm530, %v525, 0
  %543 = vmatprep.subr.bf16.mxu0 %v515
  %544 = vmatpush1.bf16.msra.mxu0 %v514
  %545 = vmatprep.subr.bf16.mxu0 %v519
  %546 = vmatpush1.bf16.msra.mxu0 %v518
  %547 = vmatprep.subr.bf16.mxu0 %v535
  %548 = vmatpush1.bf16.msra.mxu0 %v532
  %549 = vmatprep.subr.bf16.mxu0 0
  %550 = vmatpush1.bf16.msra.mxu0 0
  %551 = vmatprep.subr.bf16.mxu0 0
  %552 = vmatpush1.bf16.msra.mxu0 0
  %553 = vmatprep.subr.bf16.mxu0 0
  %554 = vmatpush1.bf16.msra.mxu0 0
  %555 = vmatprep.subr.bf16.mxu0 0
  %556 = vmatpush1.bf16.msra.mxu0 0
  %557 = vmatprep.subr.bf16.mxu0 0
  %558 = vmatpush1.bf16.msra.mxu0 0
  %559 = vmatprep.subr.bf16.mxu0 0
  %560 = vmatpush1.bf16.msra.mxu0 0
  %561 = vmatprep.subr.bf16.mxu0 0
  %562 = vmatpush1.bf16.msra.mxu0 0
  %563 = vmatprep.subr.bf16.mxu0 0
  %564 = vmatpush1.bf16.msra.mxu0 0
  %565 = vmatprep.subr.bf16.mxu0 0
  %566 = vmatpush1.bf16.msra.mxu0 0
  %567 = vmatprep.subr.bf16.mxu0 0
  %568 = vmatpush1.bf16.msra.mxu0 0
  %569 = vmatprep.subr.bf16.mxu0 0
  %570 = vmatpush1.bf16.msra.mxu0 0
  %571 = vmatprep.subr.bf16.mxu0 0
  %572 = vmatpush1.bf16.msra.mxu0 0
  %573 = vmatprep.subr.bf16.mxu0 0
  %574 = vmatpush1.bf16.msra.mxu0 0
  %575 = vmatprep.mubr.bf16.mxu0 0
  %576 = vmatmul.mubr.bf16.gmra.mrb[0].mxu0 %v528
  %v577 = vpop.f32.mrb[0].mxu0
  %v578 = vadd.f32 0.0, %v577
  %v579 = vpop.f32.mrb[0].mxu0
  %v580 = vadd.f32 0.0, %v579
  %v581 = vpop.f32.mrb[0].mxu0
  %v582 = vpop.f32.mrb[0].mxu0
  %583 = vdwg.mxu0
  %584 = vmatprep.subr.bf16.mxu0 %v517
  %585 = vmatpush1.bf16.msra.mxu0 %v516
  %586 = vmatprep.subr.bf16.mxu0 %v521
  %587 = vmatpush1.bf16.msra.mxu0 %v520
  %588 = vmatprep.subr.bf16.mxu0 %v541
  %589 = vmatpush1.bf16.msra.mxu0 %v538
  %590 = vmatprep.subr.bf16.mxu0 0
  %591 = vmatpush1.bf16.msra.mxu0 0
  %592 = vmatprep.subr.bf16.mxu0 0
  %593 = vmatpush1.bf16.msra.mxu0 0
  %594 = vmatprep.subr.bf16.mxu0 0
  %595 = vmatpush1.bf16.msra.mxu0 0
  %596 = vmatprep.subr.bf16.mxu0 0
  %597 = vmatpush1.bf16.msra.mxu0 0
  %598 = vmatprep.subr.bf16.mxu0 0
  %599 = vmatpush1.bf16.msra.mxu0 0
  %600 = vmatprep.subr.bf16.mxu0 0
  %601 = vmatpush1.bf16.msra.mxu0 0
  %602 = vmatprep.subr.bf16.mxu0 0
  %603 = vmatpush1.bf16.msra.mxu0 0
  %604 = vmatprep.subr.bf16.mxu0 0
  %605 = vmatpush1.bf16.msra.mxu0 0
  %606 = vmatprep.subr.bf16.mxu0 0
  %607 = vmatpush1.bf16.msra.mxu0 0
  %608 = vmatprep.subr.bf16.mxu0 0
  %609 = vmatpush1.bf16.msra.mxu0 0
  %610 = vmatprep.subr.bf16.mxu0 0
  %611 = vmatpush1.bf16.msra.mxu0 0
  %612 = vmatprep.subr.bf16.mxu0 0
  %613 = vmatpush1.bf16.msra.mxu0 0
  %614 = vmatprep.subr.bf16.mxu0 0
  %615 = vmatpush1.bf16.msra.mxu0 0
  %616 = vmatprep.mubr.bf16.mxu0 0
  %617 = vmatmul.mubr.bf16.gmra.mrb[0].mxu0 %v528
  %v618 = vpop.f32.mrb[0].mxu0
  %v619 = vadd.f32 0.0, %v618
  %v620 = vpop.f32.mrb[0].mxu0
  %v621 = vadd.f32 0.0, %v620
  %v622 = vpop.f32.mrb[0].mxu0
  %v623 = vpop.f32.mrb[0].mxu0
  %624 = vdwg.mxu0
  %v625 = vmax.f32 %v578, 0.0
  %v626 = vmax.f32 %v580, 0.0
  %v627 = vmax.f32 %v619, 0.0
  %v628 = vmax.f32 %v621, 0.0
  %v629 = vld [vmem:[%s12] sm:$0xff]
  %v630 = vld [vmem:[%s12 + $0x8] sm:$0xff]
  %v631 = vld [vmem:[%s12 + $0x10] sm:$0xff]
  %v632 = vld [vmem:[%s12 + $0x18] sm:$0xff]
  %633 = vst [vmem:[#allocation2 + $0x8] sm:$0xff] %v625
  %634 = vst [vmem:[#allocation2 + $0x10] sm:$0xff] %v626
  %635 = vst [vmem:[#allocation2 + $0x20] sm:$0xff] %v627
  %636 = vst [vmem:[#allocation2 + $0x28] sm:$0xff] %v628
  %v637 = vld [vmem:[#allocation2] sm:$0xff]
  %v638 = vld [vmem:[#allocation2 + $0x8] sm:$0xff]
  %v639 = vld [vmem:[#allocation2 + $0x10] sm:$0xff]
  %642 = vrot.lane.b32.xlu0 %v629, 111
  %v643 = vpop.permute.xlu0 %642
  %644 = vrot.lane.b32.xlu0 %v630, 111
  %v645 = vpop.permute.xlu0 %644
  %v646 = vsel %vm94, %v643, %v645
  %v650 = vmul.f32 %v637, %v643
  %v651 = vmul.f32 %v638, %v646
  %v652 = vmul.f32 %v639, %v645
  %v653 = vld [vmem:[#allocation2 + $0x18] sm:$0xff]
  %v654 = vld [vmem:[#allocation2 + $0x20] sm:$0xff]
  %v655 = vld [vmem:[#allocation2 + $0x28] sm:$0xff]
  %v656 = vmul.f32 %v653, %v643
  %v657 = vmul.f32 %v654, %v646
  %v658 = vmul.f32 %v655, %v645
  %662 = vrot.lane.b32.xlu0 %v650, 17
  %v663 = vpop.permute.xlu0 %662
  %664 = vrot.lane.b32.xlu0 %v651, 17
  %v665 = vpop.permute.xlu0 %664
  %666 = vrot.lane.b32.xlu0 %v652, 17
  %v667 = vpop.permute.xlu0 %666
  %v668 = vsel %vm117, %v663, %v665
  %v669 = vsel %vm117, %v665, %v667
  %675 = vrot.lane.b32.xlu0 %v656, 17
  %v676 = vpop.permute.xlu0 %675
  %677 = vrot.lane.b32.xlu0 %v657, 17
  %v678 = vpop.permute.xlu0 %677
  %679 = vrot.lane.b32.xlu0 %v658, 17
  %v680 = vpop.permute.xlu0 %679
  %v681 = vsel %vm117, %v676, %v678
  %v682 = vsel %vm117, %v678, %v680
  %685 = vst [vmem:[#allocation5] sm:$0xff] %v668
  %686 = vst [vmem:[#allocation5 + $0x8] sm:$0xff] %v669
  %687 = vst [vmem:[#allocation5 + $0x10] sm:$0xff] %v681
  %688 = vst [vmem:[#allocation5 + $0x18] sm:$0xff] %v682
  %v689 = vld [vmem:[#allocation2] sm:$0xff]
  %v690 = vld [vmem:[#allocation2 + $0x8] sm:$0xff]
  %v691 = vld [vmem:[#allocation2 + $0x10] sm:$0xff]
  %692 = vrot.lane.b32.xlu0 %v629, 127
  %v693 = vpop.permute.xlu0 %692
  %694 = vrot.lane.b32.xlu0 %v630, 127
  %v695 = vpop.permute.xlu0 %694
  %v696 = vsel %vm146, %v693, %v695
  %v700 = vmul.f32 %v689, %v693
  %v701 = vmul.f32 %v690, %v696
  %v702 = vmul.f32 %v691, %v695
  %v703 = vld [vmem:[#allocation2 + $0x18] sm:$0xff]
  %v704 = vld [vmem:[#allocation2 + $0x20] sm:$0xff]
  %v705 = vld [vmem:[#allocation2 + $0x28] sm:$0xff]
  %v706 = vmul.f32 %v703, %v693
  %v707 = vmul.f32 %v704, %v696
  %v708 = vmul.f32 %v705, %v695
  %712 = vrot.lane.b32.xlu0 %v700, 1
  %v713 = vpop.permute.xlu0 %712
  %714 = vrot.lane.b32.xlu0 %v701, 1
  %v715 = vpop.permute.xlu0 %714
  %716 = vrot.lane.b32.xlu0 %v702, 1
  %v717 = vpop.permute.xlu0 %716
  %v718 = vsel %vm169, %v713, %v715
  %v719 = vsel %vm169, %v715, %v717
  %725 = vrot.lane.b32.xlu0 %v706, 1
  %v726 = vpop.permute.xlu0 %725
  %727 = vrot.lane.b32.xlu0 %v707, 1
  %v728 = vpop.permute.xlu0 %727
  %729 = vrot.lane.b32.xlu0 %v708, 1
  %v730 = vpop.permute.xlu0 %729
  %v731 = vsel %vm169, %v726, %v728
  %v732 = vsel %vm169, %v728, %v730
  %735 = vst [vmem:[#allocation5 + $0x20] sm:$0xff] %v718
  %736 = vst [vmem:[#allocation5 + $0x28] sm:$0xff] %v719
  %737 = vst [vmem:[#allocation5 + $0x30] sm:$0xff] %v731
  %738 = vst [vmem:[#allocation5 + $0x38] sm:$0xff] %v732
  %v739 = vld [vmem:[#allocation2 + $0x8] sm:$0xff]
  %v740 = vld [vmem:[#allocation2 + $0x10] sm:$0xff]
  %v741 = vld [vmem:[#allocation2 + $0x18] sm:$0xff]
  %742 = vrot.lane.b32.xlu0 %v629, 15
  %v743 = vpop.permute.xlu0 %742
  %744 = vrot.lane.b32.xlu0 %v630, 15
  %v745 = vpop.permute.xlu0 %744
  %v746 = vsel %vm202, %v743, %v745
  %v750 = vmul.f32 %v739, %v743
  %v751 = vmul.f32 %v740, %v746
  %v752 = vmul.f32 %v741, %v745
  %v753 = vld [vmem:[#allocation2 + $0x20] sm:$0xff]
  %v754 = vld [vmem:[#allocation2 + $0x28] sm:$0xff]
  %v755 = vld [vmem:[#allocation2 + $0x30] sm:$0xff]
  %v756 = vmul.f32 %v753, %v743
  %v757 = vmul.f32 %v754, %v746
  %v758 = vmul.f32 %v755, %v745
  %762 = vrot.lane.b32.xlu0 %v750, 113
  %v763 = vpop.permute.xlu0 %762
  %764 = vrot.lane.b32.xlu0 %v751, 113
  %v765 = vpop.permute.xlu0 %764
  %766 = vrot.lane.b32.xlu0 %v752, 113
  %v767 = vpop.permute.xlu0 %766
  %v768 = vsel %vm225, %v763, %v765
  %v769 = vsel %vm225, %v765, %v767
  %775 = vrot.lane.b32.xlu0 %v756, 113
  %v776 = vpop.permute.xlu0 %775
  %777 = vrot.lane.b32.xlu0 %v757, 113
  %v778 = vpop.permute.xlu0 %777
  %779 = vrot.lane.b32.xlu0 %v758, 113
  %v780 = vpop.permute.xlu0 %779
  %v781 = vsel %vm225, %v776, %v778
  %v782 = vsel %vm225, %v778, %v780
  %785 = vst [vmem:[#allocation5 + $0x40] sm:$0xff] %v768
  %786 = vst [vmem:[#allocation5 + $0x48] sm:$0xff] %v769
  %787 = vst [vmem:[#allocation5 + $0x50] sm:$0xff] %v781
  %788 = vst [vmem:[#allocation5 + $0x58] sm:$0xff] %v782
  %v789 = vld [vmem:[#allocation2] sm:$0xff]
  %v790 = vld [vmem:[#allocation2 + $0x8] sm:$0xff]
  %v791 = vld [vmem:[#allocation2 + $0x10] sm:$0xff]
  %v792 = vld [vmem:[#allocation2 + $0x18] sm:$0xff]
  %v793 = vld [vmem:[#allocation2 + $0x20] sm:$0xff]
  %v794 = vld [vmem:[#allocation2 + $0x28] sm:$0xff]
  %798 = vrot.lane.b32.xlu0 %v789, 16
  %v799 = vpop.permute.xlu0 %798
  %800 = vrot.lane.b32.xlu0 %v790, 16
  %v801 = vpop.permute.xlu0 %800
  %802 = vrot.lane.b32.xlu0 %v791, 16
  %v803 = vpop.permute.xlu0 %802
  %v804 = vsel %vm262, %v799, %v801
  %v805 = vsel %vm262, %v801, %v803
  %811 = vrot.lane.b32.xlu0 %v792, 16
  %v812 = vpop.permute.xlu0 %811
  %813 = vrot.lane.b32.xlu0 %v793, 16
  %v814 = vpop.permute.xlu0 %813
  %815 = vrot.lane.b32.xlu0 %v794, 16
  %v816 = vpop.permute.xlu0 %815
  %v817 = vsel %vm262, %v812, %v814
  %v818 = vsel %vm262, %v814, %v816
  %821 = vst [vmem:[#allocation5 + $0x60] sm:$0xff] %v804
  %822 = vst [vmem:[#allocation5 + $0x68] sm:$0xff] %v805
  %823 = vst [vmem:[#allocation5 + $0x70] sm:$0xff] %v817
  %824 = vst [vmem:[#allocation5 + $0x78] sm:$0xff] %v818
  %v825 = vld [vmem:[#allocation2 + $0x8] sm:$0xff]
  %v826 = vld [vmem:[#allocation2 + $0x10] sm:$0xff]
  %v827 = vld [vmem:[#allocation2 + $0x20] sm:$0xff]
  %v828 = vld [vmem:[#allocation2 + $0x28] sm:$0xff]
  %829 = vst [vmem:[#allocation5 + $0x80] sm:$0xff] %v825
  %830 = vst [vmem:[#allocation5 + $0x88] sm:$0xff] %v826
  %831 = vst [vmem:[#allocation5 + $0x90] sm:$0xff] %v827
  %832 = vst [vmem:[#allocation5 + $0x98] sm:$0xff] %v828
  %v833 = vld [vmem:[#allocation2 + $0x8] sm:$0xff]
  %v834 = vld [vmem:[#allocation2 + $0x10] sm:$0xff]
  %v835 = vld [vmem:[#allocation2 + $0x18] sm:$0xff]
  %v836 = vld [vmem:[#allocation2 + $0x20] sm:$0xff]
  %v837 = vld [vmem:[#allocation2 + $0x28] sm:$0xff]
  %v838 = vld [vmem:[#allocation2 + $0x30] sm:$0xff]
  %842 = vrot.lane.b32.xlu0 %v833, 112
  %v843 = vpop.permute.xlu0 %842
  %844 = vrot.lane.b32.xlu0 %v834, 112
  %v845 = vpop.permute.xlu0 %844
  %846 = vrot.lane.b32.xlu0 %v835, 112
  %v847 = vpop.permute.xlu0 %846
  %v848 = vsel %vm311, %v843, %v845
  %v849 = vsel %vm311, %v845, %v847
  %855 = vrot.lane.b32.xlu0 %v836, 112
  %v856 = vpop.permute.xlu0 %855
  %857 = vrot.lane.b32.xlu0 %v837, 112
  %v858 = vpop.permute.xlu0 %857
  %859 = vrot.lane.b32.xlu0 %v838, 112
  %v860 = vpop.permute.xlu0 %859
  %v861 = vsel %vm311, %v856, %v858
  %v862 = vsel %vm311, %v858, %v860
  %865 = vst [vmem:[#allocation5 + $0xa0] sm:$0xff] %v848
  %866 = vst [vmem:[#allocation5 + $0xa8] sm:$0xff] %v849
  %867 = vst [vmem:[#allocation5 + $0xb0] sm:$0xff] %v861
  %868 = vst [vmem:[#allocation5 + $0xb8] sm:$0xff] %v862
  %v869 = vld [vmem:[#allocation2] sm:$0xff]
  %v870 = vld [vmem:[#allocation2 + $0x8] sm:$0xff]
  %v871 = vld [vmem:[#allocation2 + $0x10] sm:$0xff]
  %874 = vrot.lane.b32.xlu0 %v631, 113
  %v875 = vpop.permute.xlu0 %874
  %876 = vrot.lane.b32.xlu0 %v632, 113
  %v877 = vpop.permute.xlu0 %876
  %v878 = vsel %vm225, %v875, %v877
  %v882 = vmul.f32 %v869, %v875
  %v883 = vmul.f32 %v870, %v878
  %v884 = vmul.f32 %v871, %v877
  %v885 = vld [vmem:[#allocation2 + $0x18] sm:$0xff]
  %v886 = vld [vmem:[#allocation2 + $0x20] sm:$0xff]
  %v887 = vld [vmem:[#allocation2 + $0x28] sm:$0xff]
  %v888 = vmul.f32 %v885, %v875
  %v889 = vmul.f32 %v886, %v878
  %v890 = vmul.f32 %v887, %v877
  %894 = vrot.lane.b32.xlu0 %v882, 15
  %v895 = vpop.permute.xlu0 %894
  %896 = vrot.lane.b32.xlu0 %v883, 15
  %v897 = vpop.permute.xlu0 %896
  %898 = vrot.lane.b32.xlu0 %v884, 15
  %v899 = vpop.permute.xlu0 %898
  %v900 = vsel %vm202, %v895, %v897
  %v901 = vsel %vm202, %v897, %v899
  %907 = vrot.lane.b32.xlu0 %v888, 15
  %v908 = vpop.permute.xlu0 %907
  %909 = vrot.lane.b32.xlu0 %v889, 15
  %v910 = vpop.permute.xlu0 %909
  %911 = vrot.lane.b32.xlu0 %v890, 15
  %v912 = vpop.permute.xlu0 %911
  %v913 = vsel %vm202, %v908, %v910
  %v914 = vsel %vm202, %v910, %v912
  %917 = vst [vmem:[#allocation5 + $0xc0] sm:$0xff] %v900
  %918 = vst [vmem:[#allocation5 + $0xc8] sm:$0xff] %v901
  %919 = vst [vmem:[#allocation5 + $0xd0] sm:$0xff] %v913
  %920 = vst [vmem:[#allocation5 + $0xd8] sm:$0xff] %v914
  %v921 = vld [vmem:[#allocation2 + $0x8] sm:$0xff]
  %v922 = vld [vmem:[#allocation2 + $0x10] sm:$0xff]
  %v923 = vld [vmem:[#allocation2 + $0x18] sm:$0xff]
  %924 = vrot.lane.b32.xlu0 %v631, 1
  %v925 = vpop.permute.xlu0 %924
  %926 = vrot.lane.b32.xlu0 %v632, 1
  %v927 = vpop.permute.xlu0 %926
  %v928 = vsel %vm169, %v925, %v927
  %v932 = vmul.f32 %v921, %v925
  %v933 = vmul.f32 %v922, %v928
  %v934 = vmul.f32 %v923, %v927
  %v935 = vld [vmem:[#allocation2 + $0x20] sm:$0xff]
  %v936 = vld [vmem:[#allocation2 + $0x28] sm:$0xff]
  %v937 = vld [vmem:[#allocation2 + $0x30] sm:$0xff]
  %v938 = vmul.f32 %v935, %v925
  %v939 = vmul.f32 %v936, %v928
  %v940 = vmul.f32 %v937, %v927
  %944 = vrot.lane.b32.xlu0 %v932, 127
  %v945 = vpop.permute.xlu0 %944
  %946 = vrot.lane.b32.xlu0 %v933, 127
  %v947 = vpop.permute.xlu0 %946
  %948 = vrot.lane.b32.xlu0 %v934, 127
  %v949 = vpop.permute.xlu0 %948
  %v950 = vsel %vm146, %v945, %v947
  %v951 = vsel %vm146, %v947, %v949
  %957 = vrot.lane.b32.xlu0 %v938, 127
  %v958 = vpop.permute.xlu0 %957
  %959 = vrot.lane.b32.xlu0 %v939, 127
  %v960 = vpop.permute.xlu0 %959
  %961 = vrot.lane.b32.xlu0 %v940, 127
  %v962 = vpop.permute.xlu0 %961
  %v963 = vsel %vm146, %v958, %v960
  %v964 = vsel %vm146, %v960, %v962
  %967 = vst [vmem:[#allocation5 + $0xe0] sm:$0xff] %v950
  %968 = vst [vmem:[#allocation5 + $0xe8] sm:$0xff] %v951
  %969 = vst [vmem:[#allocation5 + $0xf0] sm:$0xff] %v963
  %970 = vst [vmem:[#allocation5 + $0xf8] sm:$0xff] %v964
  %v971 = vld [vmem:[#allocation2 + $0x8] sm:$0xff]
  %v972 = vld [vmem:[#allocation2 + $0x10] sm:$0xff]
  %v973 = vld [vmem:[#allocation2 + $0x18] sm:$0xff]
  %974 = vrot.lane.b32.xlu0 %v631, 17
  %v975 = vpop.permute.xlu0 %974
  %976 = vrot.lane.b32.xlu0 %v632, 17
  %v977 = vpop.permute.xlu0 %976
  %v978 = vsel %vm117, %v975, %v977
  %v982 = vmul.f32 %v971, %v975
  %v983 = vmul.f32 %v972, %v978
  %v984 = vmul.f32 %v973, %v977
  %v985 = vld [vmem:[#allocation2 + $0x20] sm:$0xff]
  %v986 = vld [vmem:[#allocation2 + $0x28] sm:$0xff]
  %v987 = vld [vmem:[#allocation2 + $0x30] sm:$0xff]
  %v988 = vmul.f32 %v985, %v975
  %v989 = vmul.f32 %v986, %v978
  %v990 = vmul.f32 %v987, %v977
  %994 = vrot.lane.b32.xlu0 %v982, 111
  %v995 = vpop.permute.xlu0 %994
  %996 = vrot.lane.b32.xlu0 %v983, 111
  %v997 = vpop.permute.xlu0 %996
  %998 = vrot.lane.b32.xlu0 %v984, 111
  %v999 = vpop.permute.xlu0 %998
  %v1000 = vsel %vm94, %v995, %v997
  %v1001 = vsel %vm94, %v997, %v999
  %1007 = vrot.lane.b32.xlu0 %v988, 111
  %v1008 = vpop.permute.xlu0 %1007
  %1009 = vrot.lane.b32.xlu0 %v989, 111
  %v1010 = vpop.permute.xlu0 %1009
  %1011 = vrot.lane.b32.xlu0 %v990, 111
  %v1012 = vpop.permute.xlu0 %1011
  %v1013 = vsel %vm94, %v1008, %v1010
  %v1014 = vsel %vm94, %v1010, %v1012
  %1017 = vst [vmem:[#allocation5 + $0x100] sm:$0xff] %v1000
  %1018 = vst [vmem:[#allocation5 + $0x108] sm:$0xff] %v1001
  %1019 = vst [vmem:[#allocation5 + $0x110] sm:$0xff] %v1013
  %1020 = vst [vmem:[#allocation5 + $0x118] sm:$0xff] %v1014
  %v1021 = vld [vmem:[%s5] sm:$0x3]
  %v1022 = vld [vmem:[#allocation5] sm:$0xff]
  %v1023 = vld [vmem:[#allocation5 + $0x8] sm:$0xff]
  %v1024 = vld [vmem:[#allocation5 + $0x10] sm:$0xff]
  %v1025 = vld [vmem:[#allocation5 + $0x18] sm:$0xff]
  %v1026 = vld [vmem:[#allocation5 + $0x20] sm:$0xff]
  %v1027 = vld [vmem:[#allocation5 + $0x28] sm:$0xff]
  %v1028 = vld [vmem:[#allocation5 + $0x30] sm:$0xff]
  %v1029 = vld [vmem:[#allocation5 + $0x38] sm:$0xff]
  %v1030 = vld [vmem:[#allocation5 + $0x40] sm:$0xff]
  %v1031 = vld [vmem:[#allocation5 + $0x48] sm:$0xff]
  %v1032 = vld [vmem:[#allocation5 + $0x50] sm:$0xff]
  %v1033 = vld [vmem:[#allocation5 + $0x58] sm:$0xff]
  %v1034 = vld [vmem:[#allocation5 + $0x60] sm:$0xff]
  %v1035 = vld [vmem:[#allocation5 + $0x68] sm:$0xff]
  %v1036 = vld [vmem:[#allocation5 + $0x70] sm:$0xff]
  %v1037 = vld [vmem:[#allocation5 + $0x78] sm:$0xff]
  %v1038 = vld [vmem:[#allocation5 + $0x80] sm:$0xff]
  %v1039 = vld [vmem:[#allocation5 + $0x88] sm:$0xff]
  %v1040 = vld [vmem:[#allocation5 + $0x90] sm:$0xff]
  %v1041 = vld [vmem:[#allocation5 + $0x98] sm:$0xff]
  %v1042 = vld [vmem:[#allocation5 + $0xa0] sm:$0xff]
  %v1043 = vld [vmem:[#allocation5 + $0xa8] sm:$0xff]
  %v1044 = vld [vmem:[#allocation5 + $0xb0] sm:$0xff]
  %v1045 = vld [vmem:[#allocation5 + $0xb8] sm:$0xff]
  %v1046 = vld [vmem:[#allocation5 + $0xc0] sm:$0xff]
  %v1047 = vld [vmem:[#allocation5 + $0xc8] sm:$0xff]
  %v1048 = vld [vmem:[#allocation5 + $0xd0] sm:$0xff]
  %v1049 = vld [vmem:[#allocation5 + $0xd8] sm:$0xff]
  %v1050 = vld [vmem:[#allocation5 + $0xe0] sm:$0xff]
  %v1051 = vld [vmem:[#allocation5 + $0xe8] sm:$0xff]
  %v1052 = vld [vmem:[#allocation5 + $0xf0] sm:$0xff]
  %v1053 = vld [vmem:[#allocation5 + $0xf8] sm:$0xff]
  %v1054 = vld [vmem:[#allocation5 + $0x100] sm:$0xff]
  %v1055 = vld [vmem:[#allocation5 + $0x108] sm:$0xff]
  %v1056 = vld [vmem:[#allocation5 + $0x110] sm:$0xff]
  %v1057 = vld [vmem:[#allocation5 + $0x118] sm:$0xff]
  %v1058 = vpack.c.bf16 %v1026, %v1022
  %v1059 = vpack.c.bf16 %v1027, %v1023
  %v1060 = vpack.c.bf16 %v1028, %v1024
  %v1061 = vpack.c.bf16 %v1029, %v1025
  %v1062 = vpack.c.bf16 %v1034, %v1030
  %v1063 = vpack.c.bf16 %v1035, %v1031
  %v1064 = vpack.c.bf16 %v1036, %v1032
  %v1065 = vpack.c.bf16 %v1037, %v1033
  %v1066 = vpack.c.bf16 %v1042, %v1038
  %v1067 = vpack.c.bf16 %v1043, %v1039
  %v1068 = vpack.c.bf16 %v1044, %v1040
  %v1069 = vpack.c.bf16 %v1045, %v1041
  %v1070 = vpack.c.bf16 %v1050, %v1046
  %v1071 = vpack.c.bf16 %v1051, %v1047
  %v1072 = vpack.c.bf16 %v1052, %v1048
  %v1073 = vpack.c.bf16 %v1053, %v1049
  %v1074 = vpack.c.bf16 %v1054, %v1054
  %v1075 = vpack.c.bf16 %v1055, %v1055
  %v1076 = vpack.c.bf16 %v1056, %v1056
  %v1077 = vpack.c.bf16 %v1057, %v1057
  %vm1078 = vcmask 588800
  %v1080 = vsel %vm1078, %v1021, 0
  %v1083 = vsel %vm530, %v1074, 0
  %v1086 = vsel %vm530, %v1075, 0
  %v1089 = vsel %vm530, %v1076, 0
  %v1092 = vsel %vm530, %v1077, 0
  %1094 = vmatprep.subr.bf16.mxu0 %v1059
  %1095 = vmatpush1.bf16.msra.mxu0 %v1058
  %1096 = vmatprep.subr.bf16.mxu0 %v1063
  %1097 = vmatpush1.bf16.msra.mxu0 %v1062
  %1098 = vmatprep.subr.bf16.mxu0 %v1067
  %1099 = vmatpush1.bf16.msra.mxu0 %v1066
  %1100 = vmatprep.subr.bf16.mxu0 %v1071
  %1101 = vmatpush1.bf16.msra.mxu0 %v1070
  %1102 = vmatprep.subr.bf16.mxu0 %v1086
  %1103 = vmatpush1.bf16.msra.mxu0 %v1083
  %1104 = vmatprep.subr.bf16.mxu0 0
  %1105 = vmatpush1.bf16.msra.mxu0 0
  %1106 = vmatprep.subr.bf16.mxu0 0
  %1107 = vmatpush1.bf16.msra.mxu0 0
  %1108 = vmatprep.subr.bf16.mxu0 0
  %1109 = vmatpush1.bf16.msra.mxu0 0
  %1110 = vmatprep.subr.bf16.mxu0 0
  %1111 = vmatpush1.bf16.msra.mxu0 0
  %1112 = vmatprep.subr.bf16.mxu0 0
  %1113 = vmatpush1.bf16.msra.mxu0 0
  %1114 = vmatprep.subr.bf16.mxu0 0
  %1115 = vmatpush1.bf16.msra.mxu0 0
  %1116 = vmatprep.subr.bf16.mxu0 0
  %1117 = vmatpush1.bf16.msra.mxu0 0
  %1118 = vmatprep.subr.bf16.mxu0 0
  %1119 = vmatpush1.bf16.msra.mxu0 0
  %1120 = vmatprep.subr.bf16.mxu0 0
  %1121 = vmatpush1.bf16.msra.mxu0 0
  %1122 = vmatprep.subr.bf16.mxu0 0
  %1123 = vmatpush1.bf16.msra.mxu0 0
  %1124 = vmatprep.subr.bf16.mxu0 0
  %1125 = vmatpush1.bf16.msra.mxu0 0
  %1126 = vmatprep.mubr.bf16.mxu0 0
  %1127 = vmatmul.mubr.bf16.gmra.mrb[0].mxu0 %v1080
  %v1128 = vpop.f32.mrb[0].mxu0
  %v1129 = vadd.f32 0.0, %v1128
  %v1130 = vpop.f32.mrb[0].mxu0
  %v1131 = vadd.f32 0.0, %v1130
  %v1132 = vpop.f32.mrb[0].mxu0
  %v1133 = vpop.f32.mrb[0].mxu0
  %1134 = vdwg.mxu0
  %1135 = vmatprep.subr.bf16.mxu0 %v1061
  %1136 = vmatpush1.bf16.msra.mxu0 %v1060
  %1137 = vmatprep.subr.bf16.mxu0 %v1065
  %1138 = vmatpush1.bf16.msra.mxu0 %v1064
  %1139 = vmatprep.subr.bf16.mxu0 %v1069
  %1140 = vmatpush1.bf16.msra.mxu0 %v1068
  %1141 = vmatprep.subr.bf16.mxu0 %v1073
  %1142 = vmatpush1.bf16.msra.mxu0 %v1072
  %1143 = vmatprep.subr.bf16.mxu0 %v1092
  %1144 = vmatpush1.bf16.msra.mxu0 %v1089
  %1145 = vmatprep.subr.bf16.mxu0 0
  %1146 = vmatpush1.bf16.msra.mxu0 0
  %1147 = vmatprep.subr.bf16.mxu0 0
  %1148 = vmatpush1.bf16.msra.mxu0 0
  %1149 = vmatprep.subr.bf16.mxu0 0
  %1150 = vmatpush1.bf16.msra.mxu0 0
  %1151 = vmatprep.subr.bf16.mxu0 0
  %1152 = vmatpush1.bf16.msra.mxu0 0
  %1153 = vmatprep.subr.bf16.mxu0 0
  %1154 = vmatpush1.bf16.msra.mxu0 0
  %1155 = vmatprep.subr.bf16.mxu0 0
  %1156 = vmatpush1.bf16.msra.mxu0 0
  %1157 = vmatprep.subr.bf16.mxu0 0
  %1158 = vmatpush1.bf16.msra.mxu0 0
  %1159 = vmatprep.subr.bf16.mxu0 0
  %1160 = vmatpush1.bf16.msra.mxu0 0
  %1161 = vmatprep.subr.bf16.mxu0 0
  %1162 = vmatpush1.bf16.msra.mxu0 0
  %1163 = vmatprep.subr.bf16.mxu0 0
  %1164 = vmatpush1.bf16.msra.mxu0 0
  %1165 = vmatprep.subr.bf16.mxu0 0
  %1166 = vmatpush1.bf16.msra.mxu0 0
  %1167 = vmatprep.mubr.bf16.mxu0 0
  %1168 = vmatmul.mubr.bf16.gmra.mrb[0].mxu0 %v1080
  %v1169 = vpop.f32.mrb[0].mxu0
  %v1170 = vadd.f32 0.0, %v1169
  %v1171 = vpop.f32.mrb[0].mxu0
  %v1172 = vadd.f32 0.0, %v1171
  %v1173 = vpop.f32.mrb[0].mxu0
  %v1174 = vpop.f32.mrb[0].mxu0
  %1175 = vdwg.mxu0
  %v1176 = vld [vmem:[%s10] sm:$0xf]
  %v1177 = vld [vmem:[%s10 + $0x4] sm:$0xf]
  %v1178 = vld [vmem:[%s10 + $0x8] sm:$0xf]
  %v1179 = vld [vmem:[%s10 + $0xc] sm:$0xf]
  %v1180 = vld [vmem:[%s10 + $0x10] sm:$0xf]
  %v1181 = vld [vmem:[%s10 + $0x14] sm:$0xf]
  %v1182 = vld [vmem:[%s10 + $0x18] sm:$0xf]
  %v1183 = vld [vmem:[%s10 + $0x1c] sm:$0xf]
  %v1184 = vld [vmem:[%s10 + $0x20] sm:$0xf]
  %v1185 = vld [vmem:[%s10 + $0x24] sm:$0xf]
  %v1186 = vld [vmem:[%s10 + $0x28] sm:$0xf]
  %v1187 = vld [vmem:[%s10 + $0x2c] sm:$0xf]
  %v1188 = vld [vmem:[%s10 + $0x30] sm:$0xf]
  %v1189 = vld [vmem:[%s10 + $0x34] sm:$0xf]
  %v1190 = vld [vmem:[%s10 + $0x38] sm:$0xf]
  %v1191 = vld [vmem:[%s10 + $0x3c] sm:$0xf]
  %v1192 = vld [vmem:[%s10 + $0x40] sm:$0xf]
  %v1193 = vld [vmem:[%s10 + $0x44] sm:$0xf]
  %v1194 = vld [vmem:[%s10 + $0x48] sm:$0xf]
  %v1195 = vld [vmem:[%s10 + $0x4c] sm:$0xf]
  %v1196 = vld [vmem:[%s10 + $0x50] sm:$0xf]
  %v1197 = vld [vmem:[%s10 + $0x54] sm:$0xf]
  %v1198 = vld [vmem:[%s10 + $0x58] sm:$0xf]
  %v1199 = vld [vmem:[%s10 + $0x5c] sm:$0xf]
  %v1200 = vld [vmem:[%s10 + $0x60] sm:$0xf]
  %v1201 = vld [vmem:[%s10 + $0x64] sm:$0xf]
  %v1202 = vld [vmem:[%s10 + $0x68] sm:$0xf]
  %v1203 = vld [vmem:[%s10 + $0x6c] sm:$0xf]
  %v1204 = vld [vmem:[%s10 + $0x70] sm:$0xf]
  %v1205 = vld [vmem:[%s10 + $0x74] sm:$0xf]
  %v1206 = vld [vmem:[%s10 + $0x78] sm:$0xf]
  %v1207 = vld [vmem:[%s10 + $0x7c] sm:$0xf]
  %v1208 = vpack.c.bf16 %v1129, %v1129
  %v1209 = vpack.c.bf16 %v1131, %v1131
  %v1242 = vunpack.c.l.b16 %v1176
  %v1243 = vunpack.c.l.b16 %v1177
  %v1244 = vunpack.c.l.b16 %v1178
  %v1245 = vunpack.c.l.b16 %v1179
  %v1246 = vunpack.c.l.b16 %v1180
  %v1247 = vunpack.c.l.b16 %v1181
  %v1248 = vunpack.c.l.b16 %v1182
  %v1249 = vunpack.c.l.b16 %v1183
  %v1250 = vunpack.c.l.b16 %v1184
  %v1251 = vunpack.c.l.b16 %v1185
  %v1252 = vunpack.c.l.b16 %v1186
  %v1253 = vunpack.c.l.b16 %v1187
  %v1254 = vunpack.c.l.b16 %v1188
  %v1255 = vunpack.c.l.b16 %v1189
  %v1256 = vunpack.c.l.b16 %v1190
  %v1257 = vunpack.c.l.b16 %v1191
  %v1258 = vunpack.c.l.b16 %v1192
  %v1259 = vunpack.c.l.b16 %v1193
  %v1260 = vunpack.c.l.b16 %v1194
  %v1261 = vunpack.c.l.b16 %v1195
  %v1262 = vunpack.c.l.b16 %v1196
  %v1263 = vunpack.c.l.b16 %v1197
  %v1264 = vunpack.c.l.b16 %v1198
  %v1265 = vunpack.c.l.b16 %v1199
  %v1266 = vunpack.c.l.b16 %v1200
  %v1267 = vunpack.c.l.b16 %v1201
  %v1268 = vunpack.c.l.b16 %v1202
  %v1269 = vunpack.c.l.b16 %v1203
  %v1270 = vunpack.c.l.b16 %v1204
  %v1271 = vunpack.c.l.b16 %v1205
  %v1272 = vunpack.c.l.b16 %v1206
  %v1273 = vunpack.c.l.b16 %v1207
  %v1274 = vpack.c.b16 %v1243, %v1242
  %v1275 = vpack.c.b16 %v1245, %v1244
  %v1276 = vpack.c.b16 %v1247, %v1246
  %v1277 = vpack.c.b16 %v1249, %v1248
  %v1278 = vpack.c.b16 %v1251, %v1250
  %v1279 = vpack.c.b16 %v1253, %v1252
  %v1280 = vpack.c.b16 %v1255, %v1254
  %v1281 = vpack.c.b16 %v1257, %v1256
  %v1282 = vpack.c.b16 %v1259, %v1258
  %v1283 = vpack.c.b16 %v1261, %v1260
  %v1284 = vpack.c.b16 %v1263, %v1262
  %v1285 = vpack.c.b16 %v1265, %v1264
  %v1286 = vpack.c.b16 %v1267, %v1266
  %v1287 = vpack.c.b16 %v1269, %v1268
  %v1288 = vpack.c.b16 %v1271, %v1270
  %v1289 = vpack.c.b16 %v1273, %v1272
  %1306 = vmatprep.subr.bf16.mxu0 0
  %1307 = vmatpush1.bf16.msra.mxu0 %v1274
  %1308 = vmatprep.subr.bf16.mxu0 0
  %1309 = vmatpush1.bf16.msra.mxu0 %v1275
  %1310 = vmatprep.subr.bf16.mxu0 0
  %1311 = vmatpush1.bf16.msra.mxu0 %v1276
  %1312 = vmatprep.subr.bf16.mxu0 0
  %1313 = vmatpush1.bf16.msra.mxu0 %v1277
  %1314 = vmatprep.subr.bf16.mxu0 0
  %1315 = vmatpush1.bf16.msra.mxu0 %v1278
  %1316 = vmatprep.subr.bf16.mxu0 0
  %1317 = vmatpush1.bf16.msra.mxu0 %v1279
  %1318 = vmatprep.subr.bf16.mxu0 0
  %1319 = vmatpush1.bf16.msra.mxu0 %v1280
  %1320 = vmatprep.subr.bf16.mxu0 0
  %1321 = vmatpush1.bf16.msra.mxu0 %v1281
  %1322 = vmatprep.subr.bf16.mxu0 0
  %1323 = vmatpush1.bf16.msra.mxu0 %v1282
  %1324 = vmatprep.subr.bf16.mxu0 0
  %1325 = vmatpush1.bf16.msra.mxu0 %v1283
  %1326 = vmatprep.subr.bf16.mxu0 0
  %1327 = vmatpush1.bf16.msra.mxu0 %v1284
  %1328 = vmatprep.subr.bf16.mxu0 0
  %1329 = vmatpush1.bf16.msra.mxu0 %v1285
  %1330 = vmatprep.subr.bf16.mxu0 0
  %1331 = vmatpush1.bf16.msra.mxu0 %v1286
  %1332 = vmatprep.subr.bf16.mxu0 0
  %1333 = vmatpush1.bf16.msra.mxu0 %v1287
  %1334 = vmatprep.subr.bf16.mxu0 0
  %1335 = vmatpush1.bf16.msra.mxu0 %v1288
  %1336 = vmatprep.subr.bf16.mxu0 0
  %1337 = vmatpush1.bf16.msra.mxu0 %v1289
  %1338 = vmatprep.mubr.bf16.mxu0 %v1209
  %1339 = vmatmul.mubr.bf16.gmra.mrb[0].mxu0 %v1208
  %v1340 = vpop.f32.mrb[0].mxu0
  %v1341 = vadd.f32 0.0, %v1340
  %v1342 = vpop.f32.mrb[0].mxu0
  %v1343 = vpop.f32.mrb[0].mxu0
  %v1344 = vpop.f32.mrb[0].mxu0
  %1345 = vdwg.mxu0
  %v1346 = vpack.c.bf16 %v1170, %v1170
  %v1347 = vpack.c.bf16 %v1172, %v1172
  %1348 = vmatprep.subr.bf16.mxu0 0
  %1349 = vmatpush1.bf16.msra.mxu0 %v1274
  %1350 = vmatprep.subr.bf16.mxu0 0
  %1351 = vmatpush1.bf16.msra.mxu0 %v1275
  %1352 = vmatprep.subr.bf16.mxu0 0
  %1353 = vmatpush1.bf16.msra.mxu0 %v1276
  %1354 = vmatprep.subr.bf16.mxu0 0
  %1355 = vmatpush1.bf16.msra.mxu0 %v1277
  %1356 = vmatprep.subr.bf16.mxu0 0
  %1357 = vmatpush1.bf16.msra.mxu0 %v1278
  %1358 = vmatprep.subr.bf16.mxu0 0
  %1359 = vmatpush1.bf16.msra.mxu0 %v1279
  %1360 = vmatprep.subr.bf16.mxu0 0
  %1361 = vmatpush1.bf16.msra.mxu0 %v1280
  %1362 = vmatprep.subr.bf16.mxu0 0
  %1363 = vmatpush1.bf16.msra.mxu0 %v1281
  %1364 = vmatprep.subr.bf16.mxu0 0
  %1365 = vmatpush1.bf16.msra.mxu0 %v1282
  %1366 = vmatprep.subr.bf16.mxu0 0
  %1367 = vmatpush1.bf16.msra.mxu0 %v1283
  %1368 = vmatprep.subr.bf16.mxu0 0
  %1369 = vmatpush1.bf16.msra.mxu0 %v1284
  %1370 = vmatprep.subr.bf16.mxu0 0
  %1371 = vmatpush1.bf16.msra.mxu0 %v1285
  %1372 = vmatprep.subr.bf16.mxu0 0
  %1373 = vmatpush1.bf16.msra.mxu0 %v1286
  %1374 = vmatprep.subr.bf16.mxu0 0
  %1375 = vmatpush1.bf16.msra.mxu0 %v1287
  %1376 = vmatprep.subr.bf16.mxu0 0
  %1377 = vmatpush1.bf16.msra.mxu0 %v1288
  %1378 = vmatprep.subr.bf16.mxu0 0
  %1379 = vmatpush1.bf16.msra.mxu0 %v1289
  %1380 = vmatprep.mubr.bf16.mxu0 %v1347
  %1381 = vmatmul.mubr.bf16.gmra.mrb[0].mxu0 %v1346
  %v1382 = vpop.f32.mrb[0].mxu0
  %v1383 = vadd.f32 0.0, %v1382
  %v1384 = vpop.f32.mrb[0].mxu0
  %v1385 = vpop.f32.mrb[0].mxu0
  %v1386 = vpop.f32.mrb[0].mxu0
  %1387 = vdwg.mxu0
  %1389 = vrot.lane.b32.xlu0 %v1383, 64
  %v1390 = vpop.permute.xlu0 %1389
  %vm1392 = vcmask 523264
  %v1393 = vsel %vm1392, %v1341, %v1390
  %v1394 = vld [vmem:[%s1] sm:$0xf]
  %v1395 = vsub.f32 %v1393, %v1394
  %v1396 = vld [vmem:[%s13] sm:$0xff]
  %v1397 = vld [vmem:[%s13 + $0x8] sm:$0xff]
  %vm1398 = vcmask 519168
  %1399 = vst.msk [vmem:[#allocation3 + $0x8] sm:$0xf] %vm1398, %v1395
  %1401 = vrot.lane.b32.xlu0 %v1395, 64
  %v1402 = vpop.permute.xlu0 %1401
  %1404 = vst.msk [vmem:[#allocation3 + $0x10] sm:$0xf] %vm1398, %v1402
  %v1405 = vld [vmem:[#allocation3] sm:$0xf]
  %v1406 = vld [vmem:[#allocation3 + $0x8] sm:$0xf]
  %1408 = vrot.lane.b32.xlu0 %v1396, 119
  %v1409 = vpop.permute.xlu0 %1408
  %v1411 = vmul.f32 %v1405, %v1409
  %v1412 = vmul.f32 %v1406, %v1409
  %v1413 = vld [vmem:[#allocation3 + $0x8] sm:$0xf]
  %v1414 = vld [vmem:[#allocation3 + $0x10] sm:$0xf]
  %v1415 = vmul.f32 %v1413, %v1409
  %v1416 = vmul.f32 %v1414, %v1409
  %1419 = vrot.lane.b32.xlu0 %v1411, 9
  %v1420 = vpop.permute.xlu0 %1419
  %1421 = vrot.lane.b32.xlu0 %v1412, 9
  %v1422 = vpop.permute.xlu0 %1421
  %vm1423 = vcmask 72704
  %v1424 = vsel %vm1423, %v1420, %v1422
  %1428 = vrot.lane.b32.xlu0 %v1415, 73
  %v1429 = vpop.permute.xlu0 %1428
  %1430 = vrot.lane.b32.xlu0 %v1416, 73
  %v1431 = vpop.permute.xlu0 %1430
  %vm1432 = vcmask 596992
  %v1433 = vsel %vm1432, %v1429, %v1431
  %v1435 = vsel %vm1392, %v1424, %v1433
  %1436 = vst [vmem:[#allocation6] sm:$0xf] %v1435
  %v1437 = vld [vmem:[#allocation3] sm:$0xf]
  %v1438 = vld [vmem:[#allocation3 + $0x8] sm:$0xf]
  %1439 = vrot.lane.b32.xlu0 %v1396, 127
  %v1440 = vpop.permute.xlu0 %1439
  %v1442 = vmul.f32 %v1437, %v1440
  %v1443 = vmul.f32 %v1438, %v1440
  %v1444 = vld [vmem:[#allocation3 + $0x8] sm:$0xf]
  %v1445 = vld [vmem:[#allocation3 + $0x10] sm:$0xf]
  %v1446 = vmul.f32 %v1444, %v1440
  %v1447 = vmul.f32 %v1445, %v1440
  %1450 = vrot.lane.b32.xlu0 %v1442, 1
  %v1451 = vpop.permute.xlu0 %1450
  %1452 = vrot.lane.b32.xlu0 %v1443, 1
  %v1453 = vpop.permute.xlu0 %1452
  %v1454 = vsel %vm169, %v1451, %v1453
  %1458 = vrot.lane.b32.xlu0 %v1446, 65
  %v1459 = vpop.permute.xlu0 %1458
  %1460 = vrot.lane.b32.xlu0 %v1447, 65
  %v1461 = vpop.permute.xlu0 %1460
  %vm1462 = vcmask 531456
  %v1463 = vsel %vm1462, %v1459, %v1461
  %v1465 = vsel %vm1392, %v1454, %v1463
  %1466 = vst [vmem:[#allocation6 + $0x4] sm:$0xf] %v1465
  %v1467 = vld [vmem:[#allocation3 + $0x8] sm:$0xf]
  %1468 = vrot.lane.b32.xlu0 %v1396, 7
  %v1469 = vpop.permute.xlu0 %1468
  %v1471 = vmul.f32 %v1467, %v1469
  %v1472 = vld [vmem:[#allocation3 + $0x10] sm:$0xf]
  %v1473 = vmul.f32 %v1472, %v1469
  %1475 = vrot.lane.b32.xlu0 %v1471, 121
  %v1476 = vpop.permute.xlu0 %1475
  %1479 = vrot.lane.b32.xlu0 %v1473, 57
  %v1480 = vpop.permute.xlu0 %1479
  %v1482 = vsel %vm1392, %v1476, %v1480
  %1483 = vst [vmem:[#allocation6 + $0x8] sm:$0xf] %v1482
  %v1484 = vld [vmem:[#allocation3] sm:$0xf]
  %v1485 = vld [vmem:[#allocation3 + $0x8] sm:$0xf]
  %v1486 = vld [vmem:[#allocation3 + $0x8] sm:$0xf]
  %v1487 = vld [vmem:[#allocation3 + $0x10] sm:$0xf]
  %1490 = vrot.lane.b32.xlu0 %v1484, 8
  %v1491 = vpop.permute.xlu0 %1490
  %1492 = vrot.lane.b32.xlu0 %v1485, 8
  %v1493 = vpop.permute.xlu0 %1492
  %vm1494 = vcmask 64512
  %v1495 = vsel %vm1494, %v1491, %v1493
  %1499 = vrot.lane.b32.xlu0 %v1486, 72
  %v1500 = vpop.permute.xlu0 %1499
  %1501 = vrot.lane.b32.xlu0 %v1487, 72
  %v1502 = vpop.permute.xlu0 %1501
  %v1503 = vsel %vm1078, %v1500, %v1502
  %v1505 = vsel %vm1392, %v1495, %v1503
  %1506 = vst [vmem:[#allocation6 + $0xc] sm:$0xf] %v1505
  %v1507 = vld [vmem:[#allocation3 + $0x8] sm:$0xf]
  %v1508 = vld [vmem:[#allocation3 + $0x10] sm:$0xf]
  %1510 = vrot.lane.b32.xlu0 %v1508, 64
  %v1511 = vpop.permute.xlu0 %1510
  %v1513 = vsel %vm1392, %v1507, %v1511
  %1514 = vst [vmem:[#allocation6 + $0x10] sm:$0xf] %v1513
  %v1515 = vld [vmem:[#allocation3 + $0x8] sm:$0xf]
  %v1516 = vld [vmem:[#allocation3 + $0x10] sm:$0xf]
  %1518 = vrot.lane.b32.xlu0 %v1515, 120
  %v1519 = vpop.permute.xlu0 %1518
  %1522 = vrot.lane.b32.xlu0 %v1516, 56
  %v1523 = vpop.permute.xlu0 %1522
  %v1525 = vsel %vm1392, %v1519, %v1523
  %1526 = vst [vmem:[#allocation6 + $0x14] sm:$0xf] %v1525
  %v1527 = vld [vmem:[#allocation3] sm:$0xf]
  %v1528 = vld [vmem:[#allocation3 + $0x8] sm:$0xf]
  %1530 = vrot.lane.b32.xlu0 %v1397, 121
  %v1531 = vpop.permute.xlu0 %1530
  %v1533 = vmul.f32 %v1527, %v1531
  %v1534 = vmul.f32 %v1528, %v1531
  %v1535 = vld [vmem:[#allocation3 + $0x8] sm:$0xf]
  %v1536 = vld [vmem:[#allocation3 + $0x10] sm:$0xf]
  %v1537 = vmul.f32 %v1535, %v1531
  %v1538 = vmul.f32 %v1536, %v1531
  %1541 = vrot.lane.b32.xlu0 %v1533, 7
  %v1542 = vpop.permute.xlu0 %1541
  %1543 = vrot.lane.b32.xlu0 %v1534, 7
  %v1544 = vpop.permute.xlu0 %1543
  %vm1545 = vcmask 56320
  %v1546 = vsel %vm1545, %v1542, %v1544
  %1550 = vrot.lane.b32.xlu0 %v1537, 71
  %v1551 = vpop.permute.xlu0 %1550
  %1552 = vrot.lane.b32.xlu0 %v1538, 71
  %v1553 = vpop.permute.xlu0 %1552
  %vm1554 = vcmask 580608
  %v1555 = vsel %vm1554, %v1551, %v1553
  %v1557 = vsel %vm1392, %v1546, %v1555
  %1558 = vst [vmem:[#allocation6 + $0x18] sm:$0xf] %v1557
  %v1559 = vld [vmem:[#allocation3 + $0x8] sm:$0xf]
  %1560 = vrot.lane.b32.xlu0 %v1397, 1
  %v1561 = vpop.permute.xlu0 %1560
  %v1563 = vmul.f32 %v1559, %v1561
  %v1564 = vld [vmem:[#allocation3 + $0x10] sm:$0xf]
  %v1565 = vmul.f32 %v1564, %v1561
  %1567 = vrot.lane.b32.xlu0 %v1563, 127
  %v1568 = vpop.permute.xlu0 %1567
  %1571 = vrot.lane.b32.xlu0 %v1565, 63
  %v1572 = vpop.permute.xlu0 %1571
  %v1574 = vsel %vm1392, %v1568, %v1572
  %1575 = vst [vmem:[#allocation6 + $0x1c] sm:$0xf] %v1574
  %v1576 = vld [vmem:[#allocation3 + $0x8] sm:$0xf]
  %1577 = vrot.lane.b32.xlu0 %v1397, 9
  %v1578 = vpop.permute.xlu0 %1577
  %v1580 = vmul.f32 %v1576, %v1578
  %v1581 = vld [vmem:[#allocation3 + $0x10] sm:$0xf]
  %v1582 = vmul.f32 %v1581, %v1578
  %1584 = vrot.lane.b32.xlu0 %v1580, 119
  %v1585 = vpop.permute.xlu0 %1584
  %1588 = vrot.lane.b32.xlu0 %v1582, 55
  %v1589 = vpop.permute.xlu0 %1588
  %v1591 = vsel %vm1392, %v1585, %v1589
  %1592 = vst [vmem:[#allocation6 + $0x20] sm:$0xf] %v1591
  %v1593 = vld [vmem:[%s6] sm:$0xf]
  %v1594 = vld [vmem:[#allocation6] sm:$0xff]
  %v1595 = vld [vmem:[#allocation6 + $0x8] sm:$0xff]
  %v1596 = vld [vmem:[#allocation6 + $0x10] sm:$0xff]
  %v1597 = vld [vmem:[#allocation6 + $0x18] sm:$0xff]
  %v1598 = vld [vmem:[#allocation6 + $0x20] sm:$0xff]
  %v1599 = vpack.c.bf16 %v1595, %v1594
  %v1600 = vpack.c.bf16 %v1597, %v1596
  %v1601 = vpack.c.bf16 %v1598, %v1598
  %v1603 = vsel %vm526, %v1593, 0
  %v1606 = vsel %vm530, %v1601, 0
  %1608 = vmatprep.subr.bf16.mxu0 0
  %1609 = vmatpush1.bf16.msra.mxu0 %v1599
  %1610 = vmatprep.subr.bf16.mxu0 0
  %1611 = vmatpush1.bf16.msra.mxu0 %v1600
  %1612 = vmatprep.subr.bf16.mxu0 0
  %1613 = vmatpush1.bf16.msra.mxu0 %v1606
  %1614 = vmatprep.subr.bf16.mxu0 0
  %1615 = vmatpush1.bf16.msra.mxu0 0
  %1616 = vmatprep.subr.bf16.mxu0 0
  %1617 = vmatpush1.bf16.msra.mxu0 0
  %1618 = vmatprep.subr.bf16.mxu0 0
  %1619 = vmatpush1.bf16.msra.mxu0 0
  %1620 = vmatprep.subr.bf16.mxu0 0
  %1621 = vmatpush1.bf16.msra.mxu0 0
  %1622 = vmatprep.subr.bf16.mxu0 0
  %1623 = vmatpush1.bf16.msra.mxu0 0
  %1624 = vmatprep.subr.bf16.mxu0 0
  %1625 = vmatpush1.bf16.msra.mxu0 0
  %1626 = vmatprep.subr.bf16.mxu0 0
  %1627 = vmatpush1.bf16.msra.mxu0 0
  %1628 = vmatprep.subr.bf16.mxu0 0
  %1629 = vmatpush1.bf16.msra.mxu0 0
  %1630 = vmatprep.subr.bf16.mxu0 0
  %1631 = vmatpush1.bf16.msra.mxu0 0
  %1632 = vmatprep.subr.bf16.mxu0 0
  %1633 = vmatpush1.bf16.msra.mxu0 0
  %1634 = vmatprep.subr.bf16.mxu0 0
  %1635 = vmatpush1.bf16.msra.mxu0 0
  %1636 = vmatprep.subr.bf16.mxu0 0
  %1637 = vmatpush1.bf16.msra.mxu0 0
  %1638 = vmatprep.subr.bf16.mxu0 0
  %1639 = vmatpush1.bf16.msra.mxu0 0
  %1640 = vmatprep.mubr.bf16.mxu0 0
  %1641 = vmatmul.mubr.bf16.gmra.mrb[0].mxu0 %v1603
  %v1642 = vpop.f32.mrb[0].mxu0
  %v1643 = vadd.f32 0.0, %v1642
  %v1644 = vpop.f32.mrb[0].mxu0
  %v1645 = vpop.f32.mrb[0].mxu0
  %v1646 = vpop.f32.mrb[0].mxu0
  %1647 = vdwg.mxu0
  %v1648 = vmax.f32 %v1643, 0.0
  %v1649 = vld [vmem:[%s13] sm:$0xff]
  %v1650 = vld [vmem:[%s13 + $0x8] sm:$0xff]
  %1651 = vst.msk [vmem:[#allocation3 + $0x8] sm:$0xff] %vm1392, %v1648
  %1653 = vrot.lane.b32.xlu0 %v1648, 64
  %v1654 = vpop.permute.xlu0 %1653
  %1656 = vst.msk [vmem:[#allocation3 + $0x10] sm:$0xff] %vm1392, %v1654
  %v1657 = vld [vmem:[#allocation3] sm:$0xff]
  %v1658 = vld [vmem:[#allocation3 + $0x8] sm:$0xff]
  %1660 = vrot.lane.b32.xlu0 %v1649, 119
  %v1661 = vpop.permute.xlu0 %1660
  %v1663 = vmul.f32 %v1657, %v1661
  %v1664 = vmul.f32 %v1658, %v1661
  %v1665 = vld [vmem:[#allocation3 + $0x8] sm:$0xff]
  %v1666 = vld [vmem:[#allocation3 + $0x10] sm:$0xff]
  %v1667 = vmul.f32 %v1665, %v1661
  %v1668 = vmul.f32 %v1666, %v1661
  %1671 = vrot.lane.b32.xlu0 %v1663, 9
  %v1672 = vpop.permute.xlu0 %1671
  %1673 = vrot.lane.b32.xlu0 %v1664, 9
  %v1674 = vpop.permute.xlu0 %1673
  %v1675 = vsel %vm1423, %v1672, %v1674
  %1679 = vrot.lane.b32.xlu0 %v1667, 73
  %v1680 = vpop.permute.xlu0 %1679
  %1681 = vrot.lane.b32.xlu0 %v1668, 73
  %v1682 = vpop.permute.xlu0 %1681
  %v1683 = vsel %vm1432, %v1680, %v1682
  %v1685 = vsel %vm1392, %v1675, %v1683
  %1686 = vst [vmem:[#allocation7] sm:$0xff] %v1685
  %v1687 = vld [vmem:[#allocation3] sm:$0xff]
  %v1688 = vld [vmem:[#allocation3 + $0x8] sm:$0xff]
  %1689 = vrot.lane.b32.xlu0 %v1649, 127
  %v1690 = vpop.permute.xlu0 %1689
  %v1692 = vmul.f32 %v1687, %v1690
  %v1693 = vmul.f32 %v1688, %v1690
  %v1694 = vld [vmem:[#allocation3 + $0x8] sm:$0xff]
  %v1695 = vld [vmem:[#allocation3 + $0x10] sm:$0xff]
  %v1696 = vmul.f32 %v1694, %v1690
  %v1697 = vmul.f32 %v1695, %v1690
  %1700 = vrot.lane.b32.xlu0 %v1692, 1
  %v1701 = vpop.permute.xlu0 %1700
  %1702 = vrot.lane.b32.xlu0 %v1693, 1
  %v1703 = vpop.permute.xlu0 %1702
  %v1704 = vsel %vm169, %v1701, %v1703
  %1708 = vrot.lane.b32.xlu0 %v1696, 65
  %v1709 = vpop.permute.xlu0 %1708
  %1710 = vrot.lane.b32.xlu0 %v1697, 65
  %v1711 = vpop.permute.xlu0 %1710
  %v1712 = vsel %vm1462, %v1709, %v1711
  %v1714 = vsel %vm1392, %v1704, %v1712
  %1715 = vst [vmem:[#allocation7 + $0x8] sm:$0xff] %v1714
  %v1716 = vld [vmem:[#allocation3 + $0x8] sm:$0xff]
  %1717 = vrot.lane.b32.xlu0 %v1649, 7
  %v1718 = vpop.permute.xlu0 %1717
  %v1720 = vmul.f32 %v1716, %v1718
  %v1721 = vld [vmem:[#allocation3 + $0x10] sm:$0xff]
  %v1722 = vmul.f32 %v1721, %v1718
  %1724 = vrot.lane.b32.xlu0 %v1720, 121
  %v1725 = vpop.permute.xlu0 %1724
  %1728 = vrot.lane.b32.xlu0 %v1722, 57
  %v1729 = vpop.permute.xlu0 %1728
  %v1731 = vsel %vm1392, %v1725, %v1729
  %1732 = vst [vmem:[#allocation7 + $0x10] sm:$0xff] %v1731
  %v1733 = vld [vmem:[#allocation3] sm:$0xff]
  %v1734 = vld [vmem:[#allocation3 + $0x8] sm:$0xff]
  %v1735 = vld [vmem:[#allocation3 + $0x8] sm:$0xff]
  %v1736 = vld [vmem:[#allocation3 + $0x10] sm:$0xff]
  %1739 = vrot.lane.b32.xlu0 %v1733, 8
  %v1740 = vpop.permute.xlu0 %1739
  %1741 = vrot.lane.b32.xlu0 %v1734, 8
  %v1742 = vpop.permute.xlu0 %1741
  %v1743 = vsel %vm1494, %v1740, %v1742
  %1747 = vrot.lane.b32.xlu0 %v1735, 72
  %v1748 = vpop.permute.xlu0 %1747
  %1749 = vrot.lane.b32.xlu0 %v1736, 72
  %v1750 = vpop.permute.xlu0 %1749
  %v1751 = vsel %vm1078, %v1748, %v1750
  %v1753 = vsel %vm1392, %v1743, %v1751
  %1754 = vst [vmem:[#allocation7 + $0x18] sm:$0xff] %v1753
  %v1755 = vld [vmem:[#allocation3 + $0x8] sm:$0xff]
  %v1756 = vld [vmem:[#allocation3 + $0x10] sm:$0xff]
  %1758 = vrot.lane.b32.xlu0 %v1756, 64
  %v1759 = vpop.permute.xlu0 %1758
  %v1761 = vsel %vm1392, %v1755, %v1759
  %1762 = vst [vmem:[#allocation7 + $0x20] sm:$0xff] %v1761
  %v1763 = vld [vmem:[#allocation3 + $0x8] sm:$0xff]
  %v1764 = vld [vmem:[#allocation3 + $0x10] sm:$0xff]
  %1766 = vrot.lane.b32.xlu0 %v1763, 120
  %v1767 = vpop.permute.xlu0 %1766
  %1770 = vrot.lane.b32.xlu0 %v1764, 56
  %v1771 = vpop.permute.xlu0 %1770
  %v1773 = vsel %vm1392, %v1767, %v1771
  %1774 = vst [vmem:[#allocation7 + $0x28] sm:$0xff] %v1773
  %v1775 = vld [vmem:[#allocation3] sm:$0xff]
  %v1776 = vld [vmem:[#allocation3 + $0x8] sm:$0xff]
  %1778 = vrot.lane.b32.xlu0 %v1650, 121
  %v1779 = vpop.permute.xlu0 %1778
  %v1781 = vmul.f32 %v1775, %v1779
  %v1782 = vmul.f32 %v1776, %v1779
  %v1783 = vld [vmem:[#allocation3 + $0x8] sm:$0xff]
  %v1784 = vld [vmem:[#allocation3 + $0x10] sm:$0xff]
  %v1785 = vmul.f32 %v1783, %v1779
  %v1786 = vmul.f32 %v1784, %v1779
  %1789 = vrot.lane.b32.xlu0 %v1781, 7
  %v1790 = vpop.permute.xlu0 %1789
  %1791 = vrot.lane.b32.xlu0 %v1782, 7
  %v1792 = vpop.permute.xlu0 %1791
  %v1793 = vsel %vm1545, %v1790, %v1792
  %1797 = vrot.lane.b32.xlu0 %v1785, 71
  %v1798 = vpop.permute.xlu0 %1797
  %1799 = vrot.lane.b32.xlu0 %v1786, 71
  %v1800 = vpop.permute.xlu0 %1799
  %v1801 = vsel %vm1554, %v1798, %v1800
  %v1803 = vsel %vm1392, %v1793, %v1801
  %1804 = vst [vmem:[#allocation7 + $0x30] sm:$0xff] %v1803
  %v1805 = vld [vmem:[#allocation3 + $0x8] sm:$0xff]
  %1806 = vrot.lane.b32.xlu0 %v1650, 1
  %v1807 = vpop.permute.xlu0 %1806
  %v1809 = vmul.f32 %v1805, %v1807
  %v1810 = vld [vmem:[#allocation3 + $0x10] sm:$0xff]
  %v1811 = vmul.f32 %v1810, %v1807
  %1813 = vrot.lane.b32.xlu0 %v1809, 127
  %v1814 = vpop.permute.xlu0 %1813
  %1817 = vrot.lane.b32.xlu0 %v1811, 63
  %v1818 = vpop.permute.xlu0 %1817
  %v1820 = vsel %vm1392, %v1814, %v1818
  %1821 = vst [vmem:[#allocation7 + $0x38] sm:$0xff] %v1820
  %v1822 = vld [vmem:[#allocation3 + $0x8] sm:$0xff]
  %1823 = vrot.lane.b32.xlu0 %v1650, 9
  %v1824 = vpop.permute.xlu0 %1823
  %v1826 = vmul.f32 %v1822, %v1824
  %v1827 = vld [vmem:[#allocation3 + $0x10] sm:$0xff]
  %v1828 = vmul.f32 %v1827, %v1824
  %1830 = vrot.lane.b32.xlu0 %v1826, 119
  %v1831 = vpop.permute.xlu0 %1830
  %1834 = vrot.lane.b32.xlu0 %v1828, 55
  %v1835 = vpop.permute.xlu0 %1834
  %v1837 = vsel %vm1392, %v1831, %v1835
  %1838 = vst [vmem:[#allocation7 + $0x40] sm:$0xff] %v1837
  %v1839 = vld [vmem:[%s7] sm:$0x3]
  %v1840 = vld [vmem:[#allocation7] sm:$0xff]
  %v1841 = vld [vmem:[#allocation7 + $0x8] sm:$0xff]
  %v1842 = vld [vmem:[#allocation7 + $0x10] sm:$0xff]
  %v1843 = vld [vmem:[#allocation7 + $0x18] sm:$0xff]
  %v1844 = vld [vmem:[#allocation7 + $0x20] sm:$0xff]
  %v1845 = vld [vmem:[#allocation7 + $0x28] sm:$0xff]
  %v1846 = vld [vmem:[#allocation7 + $0x30] sm:$0xff]
  %v1847 = vld [vmem:[#allocation7 + $0x38] sm:$0xff]
  %v1848 = vld [vmem:[#allocation7 + $0x40] sm:$0xff]
  %v1849 = vpack.c.bf16 %v1841, %v1840
  %v1850 = vpack.c.bf16 %v1843, %v1842
  %v1851 = vpack.c.bf16 %v1845, %v1844
  %v1852 = vpack.c.bf16 %v1847, %v1846
  %v1853 = vpack.c.bf16 %v1848, %v1848
  %v1855 = vsel %vm1078, %v1839, 0
  %v1858 = vsel %vm530, %v1853, 0
  %1860 = vmatprep.subr.bf16.mxu0 0
  %1861 = vmatpush1.bf16.msra.mxu0 %v1849
  %1862 = vmatprep.subr.bf16.mxu0 0
  %1863 = vmatpush1.bf16.msra.mxu0 %v1850
  %1864 = vmatprep.subr.bf16.mxu0 0
  %1865 = vmatpush1.bf16.msra.mxu0 %v1851
  %1866 = vmatprep.subr.bf16.mxu0 0
  %1867 = vmatpush1.bf16.msra.mxu0 %v1852
  %1868 = vmatprep.subr.bf16.mxu0 0
  %1869 = vmatpush1.bf16.msra.mxu0 %v1858
  %1870 = vmatprep.subr.bf16.mxu0 0
  %1871 = vmatpush1.bf16.msra.mxu0 0
  %1872 = vmatprep.subr.bf16.mxu0 0
  %1873 = vmatpush1.bf16.msra.mxu0 0
  %1874 = vmatprep.subr.bf16.mxu0 0
  %1875 = vmatpush1.bf16.msra.mxu0 0
  %1876 = vmatprep.subr.bf16.mxu0 0
  %1877 = vmatpush1.bf16.msra.mxu0 0
  %1878 = vmatprep.subr.bf16.mxu0 0
  %1879 = vmatpush1.bf16.msra.mxu0 0
  %1880 = vmatprep.subr.bf16.mxu0 0
  %1881 = vmatpush1.bf16.msra.mxu0 0
  %1882 = vmatprep.subr.bf16.mxu0 0
  %1883 = vmatpush1.bf16.msra.mxu0 0
  %1884 = vmatprep.subr.bf16.mxu0 0
  %1885 = vmatpush1.bf16.msra.mxu0 0
  %1886 = vmatprep.subr.bf16.mxu0 0
  %1887 = vmatpush1.bf16.msra.mxu0 0
  %1888 = vmatprep.subr.bf16.mxu0 0
  %1889 = vmatpush1.bf16.msra.mxu0 0
  %1890 = vmatprep.subr.bf16.mxu0 0
  %1891 = vmatpush1.bf16.msra.mxu0 0
  %1892 = vmatprep.mubr.bf16.mxu0 0
  %1893 = vmatmul.mubr.bf16.gmra.mrb[0].mxu0 %v1855
  %v1894 = vpop.f32.mrb[0].mxu0
  %v1895 = vadd.f32 0.0, %v1894
  %v1896 = vpop.f32.mrb[0].mxu0
  %v1897 = vpop.f32.mrb[0].mxu0
  %v1898 = vpop.f32.mrb[0].mxu0
  %1899 = vdwg.mxu0
  %v1900 = vld [vmem:[%s11] sm:$0xff]
  %v1901 = vld [vmem:[%s11 + $0x8] sm:$0xff]
  %v1902 = vld [vmem:[%s11 + $0x10] sm:$0xff]
  %v1903 = vld [vmem:[%s11 + $0x18] sm:$0xff]
  %v1904 = vld [vmem:[%s11 + $0x20] sm:$0xff]
  %v1905 = vld [vmem:[%s11 + $0x28] sm:$0xff]
  %v1906 = vld [vmem:[%s11 + $0x30] sm:$0xff]
  %v1907 = vld [vmem:[%s11 + $0x38] sm:$0xff]
  %v1908 = vpack.c.bf16 %v1895, %v1895
  %v1917 = vunpack.c.l.b16 %v1900
  %v1918 = vunpack.c.h.b16 %v1900
  %v1919 = vunpack.c.l.b16 %v1901
  %v1920 = vunpack.c.h.b16 %v1901
  %v1921 = vunpack.c.l.b16 %v1902
  %v1922 = vunpack.c.h.b16 %v1902
  %v1923 = vunpack.c.l.b16 %v1903
  %v1924 = vunpack.c.h.b16 %v1903
  %v1925 = vunpack.c.l.b16 %v1904
  %v1926 = vunpack.c.h.b16 %v1904
  %v1927 = vunpack.c.l.b16 %v1905
  %v1928 = vunpack.c.h.b16 %v1905
  %v1929 = vunpack.c.l.b16 %v1906
  %v1930 = vunpack.c.h.b16 %v1906
  %v1931 = vunpack.c.l.b16 %v1907
  %v1932 = vunpack.c.h.b16 %v1907
  %v1933 = vpack.c.b16 %v1919, %v1917
  %v1934 = vpack.c.b16 %v1920, %v1918
  %v1935 = vpack.c.b16 %v1923, %v1921
  %v1936 = vpack.c.b16 %v1924, %v1922
  %v1937 = vpack.c.b16 %v1927, %v1925
  %v1938 = vpack.c.b16 %v1928, %v1926
  %v1939 = vpack.c.b16 %v1931, %v1929
  %v1940 = vpack.c.b16 %v1932, %v1930
  %v1950 = vsel %vm1392, %v1908, 0
  %1952 = vmatprep.subr.bf16.mxu0 %v1934
  %1953 = vmatpush1.bf16.msra.mxu0 %v1933
  %1954 = vmatprep.subr.bf16.mxu0 %v1936
  %1955 = vmatpush1.bf16.msra.mxu0 %v1935
  %1956 = vmatprep.subr.bf16.mxu0 %v1938
  %1957 = vmatpush1.bf16.msra.mxu0 %v1937
  %1958 = vmatprep.subr.bf16.mxu0 %v1940
  %1959 = vmatpush1.bf16.msra.mxu0 %v1939
  %1960 = vmatprep.subr.bf16.mxu0 0
  %1961 = vmatpush1.bf16.msra.mxu0 0
  %1962 = vmatprep.subr.bf16.mxu0 0
  %1963 = vmatpush1.bf16.msra.mxu0 0
  %1964 = vmatprep.subr.bf16.mxu0 0
  %1965 = vmatpush1.bf16.msra.mxu0 0
  %1966 = vmatprep.subr.bf16.mxu0 0
  %1967 = vmatpush1.bf16.msra.mxu0 0
  %1968 = vmatprep.subr.bf16.mxu0 0
  %1969 = vmatpush1.bf16.msra.mxu0 0
  %1970 = vmatprep.subr.bf16.mxu0 0
  %1971 = vmatpush1.bf16.msra.mxu0 0
  %1972 = vmatprep.subr.bf16.mxu0 0
  %1973 = vmatpush1.bf16.msra.mxu0 0
  %1974 = vmatprep.subr.bf16.mxu0 0
  %1975 = vmatpush1.bf16.msra.mxu0 0
  %1976 = vmatprep.subr.bf16.mxu0 0
  %1977 = vmatpush1.bf16.msra.mxu0 0
  %1978 = vmatprep.subr.bf16.mxu0 0
  %1979 = vmatpush1.bf16.msra.mxu0 0
  %1980 = vmatprep.subr.bf16.mxu0 0
  %1981 = vmatpush1.bf16.msra.mxu0 0
  %1982 = vmatprep.subr.bf16.mxu0 0
  %1983 = vmatpush1.bf16.msra.mxu0 0
  %1984 = vmatprep.mubr.bf16.mxu0 0
  %1985 = vmatmul.mubr.bf16.gmra.mrb[0].mxu0 %v1950
  %v1986 = vpop.f32.mrb[0].mxu0
  %v1987 = vadd.f32 0.0, %v1986
  %v1988 = vpop.f32.mrb[0].mxu0
  %v1989 = vadd.f32 0.0, %v1988
  %v1990 = vpop.f32.mrb[0].mxu0
  %v1991 = vpop.f32.mrb[0].mxu0
  %1992 = vdwg.mxu0
  %1994 = vrot.lane.b32.xlu0 %v1908, 64
  %v1995 = vpop.permute.xlu0 %1994
  %v1997 = vsel %vm1392, %v1995, 0
  %1999 = vmatprep.subr.bf16.mxu0 %v1934
  %2000 = vmatpush1.bf16.msra.mxu0 %v1933
  %2001 = vmatprep.subr.bf16.mxu0 %v1936
  %2002 = vmatpush1.bf16.msra.mxu0 %v1935
  %2003 = vmatprep.subr.bf16.mxu0 %v1938
  %2004 = vmatpush1.bf16.msra.mxu0 %v1937
  %2005 = vmatprep.subr.bf16.mxu0 %v1940
  %2006 = vmatpush1.bf16.msra.mxu0 %v1939
  %2007 = vmatprep.subr.bf16.mxu0 0
  %2008 = vmatpush1.bf16.msra.mxu0 0
  %2009 = vmatprep.subr.bf16.mxu0 0
  %2010 = vmatpush1.bf16.msra.mxu0 0
  %2011 = vmatprep.subr.bf16.mxu0 0
  %2012 = vmatpush1.bf16.msra.mxu0 0
  %2013 = vmatprep.subr.bf16.mxu0 0
  %2014 = vmatpush1.bf16.msra.mxu0 0
  %2015 = vmatprep.subr.bf16.mxu0 0
  %2016 = vmatpush1.bf16.msra.mxu0 0
  %2017 = vmatprep.subr.bf16.mxu0 0
  %2018 = vmatpush1.bf16.msra.mxu0 0
  %2019 = vmatprep.subr.bf16.mxu0 0
  %2020 = vmatpush1.bf16.msra.mxu0 0
  %2021 = vmatprep.subr.bf16.mxu0 0
  %2022 = vmatpush1.bf16.msra.mxu0 0
  %2023 = vmatprep.subr.bf16.mxu0 0
  %2024 = vmatpush1.bf16.msra.mxu0 0
  %2025 = vmatprep.subr.bf16.mxu0 0
  %2026 = vmatpush1.bf16.msra.mxu0 0
  %2027 = vmatprep.subr.bf16.mxu0 0
  %2028 = vmatpush1.bf16.msra.mxu0 0
  %2029 = vmatprep.subr.bf16.mxu0 0
  %2030 = vmatpush1.bf16.msra.mxu0 0
  %2031 = vmatprep.mubr.bf16.mxu0 0
  %2032 = vmatmul.mubr.bf16.gmra.mrb[0].mxu0 %v1997
  %v2033 = vpop.f32.mrb[0].mxu0
  %v2034 = vadd.f32 0.0, %v2033
  %v2035 = vpop.f32.mrb[0].mxu0
  %v2036 = vadd.f32 0.0, %v2035
  %v2037 = vpop.f32.mrb[0].mxu0
  %v2038 = vpop.f32.mrb[0].mxu0
  %2039 = vdwg.mxu0
  %v2040 = vld [vmem:[%s2] sm:$0xff]
  %v2041 = vld [vmem:[%s2 + $0x8] sm:$0xff]
  %v2046 = vcombine.low %v1987, %v1989
  %v2047 = vcombine.low %v2034, %v2036
  %v2050 = vsub.f32 %v2040, %v2046
  %v2051 = vsub.f32 %v2041, %v2047
  %v2052 = vld [vmem:[%s3] sm:$0xff]
  %v2053 = vld [vmem:[%s3 + $0x8] sm:$0xff]
  %v2054 = vsub.f32 %v2050, %v2052
  %v2055 = vsub.f32 %v2051, %v2053
  %v2056 = vld [vmem:[%s12] sm:$0xff]
  %v2057 = vld [vmem:[%s12 + $0x8] sm:$0xff]
  %v2058 = vld [vmem:[%s12 + $0x10] sm:$0xff]
  %v2059 = vld [vmem:[%s12 + $0x18] sm:$0xff]
  %v2061 = vcombine.high %v2054, %v2054
  %2063 = vst [vmem:[#allocation2 + $0x8] sm:$0xf] %v2054
  %2064 = vst [vmem:[#allocation2 + $0x10] sm:$0xf] %v2061
  %v2066 = vcombine.high %v2055, %v2055
  %2068 = vst [vmem:[#allocation2 + $0x20] sm:$0xf] %v2055
  %2069 = vst [vmem:[#allocation2 + $0x28] sm:$0xf] %v2066
  %v2070 = vld [vmem:[#allocation2] sm:$0xf]
  %v2071 = vld [vmem:[#allocation2 + $0x8] sm:$0xf]
  %v2072 = vld [vmem:[#allocation2 + $0x10] sm:$0xf]
  %2075 = vrot.lane.b32.xlu0 %v2056, 111
  %v2076 = vpop.permute.xlu0 %2075
  %2077 = vrot.lane.b32.xlu0 %v2057, 111
  %v2078 = vpop.permute.xlu0 %2077
  %v2079 = vsel %vm94, %v2076, %v2078
  %v2083 = vmul.f32 %v2070, %v2076
  %v2084 = vmul.f32 %v2071, %v2079
  %v2085 = vmul.f32 %v2072, %v2078
  %v2086 = vld [vmem:[#allocation2 + $0x18] sm:$0xf]
  %v2087 = vld [vmem:[#allocation2 + $0x20] sm:$0xf]
  %v2088 = vld [vmem:[#allocation2 + $0x28] sm:$0xf]
  %v2089 = vmul.f32 %v2086, %v2076
  %v2090 = vmul.f32 %v2087, %v2079
  %v2091 = vmul.f32 %v2088, %v2078
  %2095 = vrot.lane.b32.xlu0 %v2083, 17
  %v2096 = vpop.permute.xlu0 %2095
  %2097 = vrot.lane.b32.xlu0 %v2084, 17
  %v2098 = vpop.permute.xlu0 %2097
  %2099 = vrot.lane.b32.xlu0 %v2085, 17
  %v2100 = vpop.permute.xlu0 %2099
  %v2101 = vsel %vm117, %v2096, %v2098
  %v2102 = vsel %vm117, %v2098, %v2100
  %2108 = vrot.lane.b32.xlu0 %v2089, 17
  %v2109 = vpop.permute.xlu0 %2108
  %2110 = vrot.lane.b32.xlu0 %v2090, 17
  %v2111 = vpop.permute.xlu0 %2110
  %2112 = vrot.lane.b32.xlu0 %v2091, 17
  %v2113 = vpop.permute.xlu0 %2112
  %v2114 = vsel %vm117, %v2109, %v2111
  %v2115 = vsel %vm117, %v2111, %v2113
  %2118 = vst [vmem:[#allocation4] sm:$0xf] %v2101
  %2119 = vst [vmem:[#allocation4 + $0x8] sm:$0xf] %v2102
  %2120 = vst [vmem:[#allocation4 + $0x10] sm:$0xf] %v2114
  %2121 = vst [vmem:[#allocation4 + $0x18] sm:$0xf] %v2115
  %v2122 = vld [vmem:[#allocation2] sm:$0xf]
  %v2123 = vld [vmem:[#allocation2 + $0x8] sm:$0xf]
  %v2124 = vld [vmem:[#allocation2 + $0x10] sm:$0xf]
  %2125 = vrot.lane.b32.xlu0 %v2056, 127
  %v2126 = vpop.permute.xlu0 %2125
  %2127 = vrot.lane.b32.xlu0 %v2057, 127
  %v2128 = vpop.permute.xlu0 %2127
  %v2129 = vsel %vm146, %v2126, %v2128
  %v2133 = vmul.f32 %v2122, %v2126
  %v2134 = vmul.f32 %v2123, %v2129
  %v2135 = vmul.f32 %v2124, %v2128
  %v2136 = vld [vmem:[#allocation2 + $0x18] sm:$0xf]
  %v2137 = vld [vmem:[#allocation2 + $0x20] sm:$0xf]
  %v2138 = vld [vmem:[#allocation2 + $0x28] sm:$0xf]
  %v2139 = vmul.f32 %v2136, %v2126
  %v2140 = vmul.f32 %v2137, %v2129
  %v2141 = vmul.f32 %v2138, %v2128
  %2145 = vrot.lane.b32.xlu0 %v2133, 1
  %v2146 = vpop.permute.xlu0 %2145
  %2147 = vrot.lane.b32.xlu0 %v2134, 1
  %v2148 = vpop.permute.xlu0 %2147
  %2149 = vrot.lane.b32.xlu0 %v2135, 1
  %v2150 = vpop.permute.xlu0 %2149
  %v2151 = vsel %vm169, %v2146, %v2148
  %v2152 = vsel %vm169, %v2148, %v2150
  %2156 = vrot.lane.b32.xlu0 %v2139, 1
  %v2157 = vpop.permute.xlu0 %2156
  %2158 = vrot.lane.b32.xlu0 %v2140, 1
  %v2159 = vpop.permute.xlu0 %2158
  %2160 = vrot.lane.b32.xlu0 %v2141, 1
  %v2161 = vpop.permute.xlu0 %2160
  %v2162 = vsel %vm169, %v2157, %v2159
  %v2163 = vsel %vm169, %v2159, %v2161
  %v2164 = vrot.slane %v2151, 4
  %v2165 = vrot.slane %v2152, 4
  %v2166 = vrot.slane %v2162, 4
  %v2167 = vrot.slane %v2163, 4
  %2172 = vst [vmem:[#allocation4] sm:$0xf0] %v2164
  %2173 = vst [vmem:[#allocation4 + $0x8] sm:$0xf0] %v2165
  %2174 = vst [vmem:[#allocation4 + $0x10] sm:$0xf0] %v2166
  %2175 = vst [vmem:[#allocation4 + $0x18] sm:$0xf0] %v2167
  %v2176 = vld [vmem:[#allocation2 + $0x8] sm:$0xf]
  %v2177 = vld [vmem:[#allocation2 + $0x10] sm:$0xf]
  %v2178 = vld [vmem:[#allocation2 + $0x18] sm:$0xf]
  %2179 = vrot.lane.b32.xlu0 %v2056, 15
  %v2180 = vpop.permute.xlu0 %2179
  %2181 = vrot.lane.b32.xlu0 %v2057, 15
  %v2182 = vpop.permute.xlu0 %2181
  %v2183 = vsel %vm202, %v2180, %v2182
  %v2187 = vmul.f32 %v2176, %v2180
  %v2188 = vmul.f32 %v2177, %v2183
  %v2189 = vmul.f32 %v2178, %v2182
  %v2190 = vld [vmem:[#allocation2 + $0x20] sm:$0xf]
  %v2191 = vld [vmem:[#allocation2 + $0x28] sm:$0xf]
  %v2192 = vld [vmem:[#allocation2 + $0x30] sm:$0xf]
  %v2193 = vmul.f32 %v2190, %v2180
  %v2194 = vmul.f32 %v2191, %v2183
  %v2195 = vmul.f32 %v2192, %v2182
  %2199 = vrot.lane.b32.xlu0 %v2187, 113
  %v2200 = vpop.permute.xlu0 %2199
  %2201 = vrot.lane.b32.xlu0 %v2188, 113
  %v2202 = vpop.permute.xlu0 %2201
  %2203 = vrot.lane.b32.xlu0 %v2189, 113
  %v2204 = vpop.permute.xlu0 %2203
  %v2205 = vsel %vm225, %v2200, %v2202
  %v2206 = vsel %vm225, %v2202, %v2204
  %2212 = vrot.lane.b32.xlu0 %v2193, 113
  %v2213 = vpop.permute.xlu0 %2212
  %2214 = vrot.lane.b32.xlu0 %v2194, 113
  %v2215 = vpop.permute.xlu0 %2214
  %2216 = vrot.lane.b32.xlu0 %v2195, 113
  %v2217 = vpop.permute.xlu0 %2216
  %v2218 = vsel %vm225, %v2213, %v2215
  %v2219 = vsel %vm225, %v2215, %v2217
  %2222 = vst [vmem:[#allocation4 + $0x20] sm:$0xf] %v2205
  %2223 = vst [vmem:[#allocation4 + $0x28] sm:$0xf] %v2206
  %2224 = vst [vmem:[#allocation4 + $0x30] sm:$0xf] %v2218
  %2225 = vst [vmem:[#allocation4 + $0x38] sm:$0xf] %v2219
  %v2226 = vld [vmem:[#allocation2] sm:$0xf]
  %v2227 = vld [vmem:[#allocation2 + $0x8] sm:$0xf]
  %v2228 = vld [vmem:[#allocation2 + $0x10] sm:$0xf]
  %v2229 = vld [vmem:[#allocation2 + $0x18] sm:$0xf]
  %v2230 = vld [vmem:[#allocation2 + $0x20] sm:$0xf]
  %v2231 = vld [vmem:[#allocation2 + $0x28] sm:$0xf]
  %2235 = vrot.lane.b32.xlu0 %v2226, 16
  %v2236 = vpop.permute.xlu0 %2235
  %2237 = vrot.lane.b32.xlu0 %v2227, 16
  %v2238 = vpop.permute.xlu0 %2237
  %2239 = vrot.lane.b32.xlu0 %v2228, 16
  %v2240 = vpop.permute.xlu0 %2239
  %v2241 = vsel %vm262, %v2236, %v2238
  %v2242 = vsel %vm262, %v2238, %v2240
  %2246 = vrot.lane.b32.xlu0 %v2229, 16
  %v2247 = vpop.permute.xlu0 %2246
  %2248 = vrot.lane.b32.xlu0 %v2230, 16
  %v2249 = vpop.permute.xlu0 %2248
  %2250 = vrot.lane.b32.xlu0 %v2231, 16
  %v2251 = vpop.permute.xlu0 %2250
  %v2252 = vsel %vm262, %v2247, %v2249
  %v2253 = vsel %vm262, %v2249, %v2251
  %v2254 = vrot.slane %v2241, 4
  %v2255 = vrot.slane %v2242, 4
  %v2256 = vrot.slane %v2252, 4
  %v2257 = vrot.slane %v2253, 4
  %2262 = vst [vmem:[#allocation4 + $0x20] sm:$0xf0] %v2254
  %2263 = vst [vmem:[#allocation4 + $0x28] sm:$0xf0] %v2255
  %2264 = vst [vmem:[#allocation4 + $0x30] sm:$0xf0] %v2256
  %2265 = vst [vmem:[#allocation4 + $0x38] sm:$0xf0] %v2257
  %v2266 = vld [vmem:[#allocation2 + $0x8] sm:$0xf]
  %v2267 = vld [vmem:[#allocation2 + $0x10] sm:$0xf]
  %v2268 = vld [vmem:[#allocation2 + $0x20] sm:$0xf]
  %v2269 = vld [vmem:[#allocation2 + $0x28] sm:$0xf]
  %2270 = vst [vmem:[#allocation4 + $0x40] sm:$0xf] %v2266
  %2271 = vst [vmem:[#allocation4 + $0x48] sm:$0xf] %v2267
  %2272 = vst [vmem:[#allocation4 + $0x50] sm:$0xf] %v2268
  %2273 = vst [vmem:[#allocation4 + $0x58] sm:$0xf] %v2269
  %v2274 = vld [vmem:[#allocation2 + $0x8] sm:$0xf]
  %v2275 = vld [vmem:[#allocation2 + $0x10] sm:$0xf]
  %v2276 = vld [vmem:[#allocation2 + $0x18] sm:$0xf]
  %v2277 = vld [vmem:[#allocation2 + $0x20] sm:$0xf]
  %v2278 = vld [vmem:[#allocation2 + $0x28] sm:$0xf]
  %v2279 = vld [vmem:[#allocation2 + $0x30] sm:$0xf]
  %2283 = vrot.lane.b32.xlu0 %v2274, 112
  %v2284 = vpop.permute.xlu0 %2283
  %2285 = vrot.lane.b32.xlu0 %v2275, 112
  %v2286 = vpop.permute.xlu0 %2285
  %2287 = vrot.lane.b32.xlu0 %v2276, 112
  %v2288 = vpop.permute.xlu0 %2287
  %v2289 = vsel %vm311, %v2284, %v2286
  %v2290 = vsel %vm311, %v2286, %v2288
  %2294 = vrot.lane.b32.xlu0 %v2277, 112
  %v2295 = vpop.permute.xlu0 %2294
  %2296 = vrot.lane.b32.xlu0 %v2278, 112
  %v2297 = vpop.permute.xlu0 %2296
  %2298 = vrot.lane.b32.xlu0 %v2279, 112
  %v2299 = vpop.permute.xlu0 %2298
  %v2300 = vsel %vm311, %v2295, %v2297
  %v2301 = vsel %vm311, %v2297, %v2299
  %v2302 = vrot.slane %v2289, 4
  %v2303 = vrot.slane %v2290, 4
  %v2304 = vrot.slane %v2300, 4
  %v2305 = vrot.slane %v2301, 4
  %2310 = vst [vmem:[#allocation4 + $0x40] sm:$0xf0] %v2302
  %2311 = vst [vmem:[#allocation4 + $0x48] sm:$0xf0] %v2303
  %2312 = vst [vmem:[#allocation4 + $0x50] sm:$0xf0] %v2304
  %2313 = vst [vmem:[#allocation4 + $0x58] sm:$0xf0] %v2305
  %v2314 = vld [vmem:[#allocation2] sm:$0xf]
  %v2315 = vld [vmem:[#allocation2 + $0x8] sm:$0xf]
  %v2316 = vld [vmem:[#allocation2 + $0x10] sm:$0xf]
  %2319 = vrot.lane.b32.xlu0 %v2058, 113
  %v2320 = vpop.permute.xlu0 %2319
  %2321 = vrot.lane.b32.xlu0 %v2059, 113
  %v2322 = vpop.permute.xlu0 %2321
  %v2323 = vsel %vm225, %v2320, %v2322
  %v2327 = vmul.f32 %v2314, %v2320
  %v2328 = vmul.f32 %v2315, %v2323
  %v2329 = vmul.f32 %v2316, %v2322
  %v2330 = vld [vmem:[#allocation2 + $0x18] sm:$0xf]
  %v2331 = vld [vmem:[#allocation2 + $0x20] sm:$0xf]
  %v2332 = vld [vmem:[#allocation2 + $0x28] sm:$0xf]
  %v2333 = vmul.f32 %v2330, %v2320
  %v2334 = vmul.f32 %v2331, %v2323
  %v2335 = vmul.f32 %v2332, %v2322
  %2339 = vrot.lane.b32.xlu0 %v2327, 15
  %v2340 = vpop.permute.xlu0 %2339
  %2341 = vrot.lane.b32.xlu0 %v2328, 15
  %v2342 = vpop.permute.xlu0 %2341
  %2343 = vrot.lane.b32.xlu0 %v2329, 15
  %v2344 = vpop.permute.xlu0 %2343
  %v2345 = vsel %vm202, %v2340, %v2342
  %v2346 = vsel %vm202, %v2342, %v2344
  %2352 = vrot.lane.b32.xlu0 %v2333, 15
  %v2353 = vpop.permute.xlu0 %2352
  %2354 = vrot.lane.b32.xlu0 %v2334, 15
  %v2355 = vpop.permute.xlu0 %2354
  %2356 = vrot.lane.b32.xlu0 %v2335, 15
  %v2357 = vpop.permute.xlu0 %2356
  %v2358 = vsel %vm202, %v2353, %v2355
  %v2359 = vsel %vm202, %v2355, %v2357
  %2362 = vst [vmem:[#allocation4 + $0x60] sm:$0xf] %v2345
  %2363 = vst [vmem:[#allocation4 + $0x68] sm:$0xf] %v2346
  %2364 = vst [vmem:[#allocation4 + $0x70] sm:$0xf] %v2358
  %2365 = vst [vmem:[#allocation4 + $0x78] sm:$0xf] %v2359
  %v2366 = vld [vmem:[#allocation2 + $0x8] sm:$0xf]
  %v2367 = vld [vmem:[#allocation2 + $0x10] sm:$0xf]
  %v2368 = vld [vmem:[#allocation2 + $0x18] sm:$0xf]
  %2369 = vrot.lane.b32.xlu0 %v2058, 1
  %v2370 = vpop.permute.xlu0 %2369
  %2371 = vrot.lane.b32.xlu0 %v2059, 1
  %v2372 = vpop.permute.xlu0 %2371
  %v2373 = vsel %vm169, %v2370, %v2372
  %v2377 = vmul.f32 %v2366, %v2370
  %v2378 = vmul.f32 %v2367, %v2373
  %v2379 = vmul.f32 %v2368, %v2372
  %v2380 = vld [vmem:[#allocation2 + $0x20] sm:$0xf]
  %v2381 = vld [vmem:[#allocation2 + $0x28] sm:$0xf]
  %v2382 = vld [vmem:[#allocation2 + $0x30] sm:$0xf]
  %v2383 = vmul.f32 %v2380, %v2370
  %v2384 = vmul.f32 %v2381, %v2373
  %v2385 = vmul.f32 %v2382, %v2372
  %2389 = vrot.lane.b32.xlu0 %v2377, 127
  %v2390 = vpop.permute.xlu0 %2389
  %2391 = vrot.lane.b32.xlu0 %v2378, 127
  %v2392 = vpop.permute.xlu0 %2391
  %2393 = vrot.lane.b32.xlu0 %v2379, 127
  %v2394 = vpop.permute.xlu0 %2393
  %v2395 = vsel %vm146, %v2390, %v2392
  %v2396 = vsel %vm146, %v2392, %v2394
  %2400 = vrot.lane.b32.xlu0 %v2383, 127
  %v2401 = vpop.permute.xlu0 %2400
  %2402 = vrot.lane.b32.xlu0 %v2384, 127
  %v2403 = vpop.permute.xlu0 %2402
  %2404 = vrot.lane.b32.xlu0 %v2385, 127
  %v2405 = vpop.permute.xlu0 %2404
  %v2406 = vsel %vm146, %v2401, %v2403
  %v2407 = vsel %vm146, %v2403, %v2405
  %v2408 = vrot.slane %v2395, 4
  %v2409 = vrot.slane %v2396, 4
  %v2410 = vrot.slane %v2406, 4
  %v2411 = vrot.slane %v2407, 4
  %2416 = vst [vmem:[#allocation4 + $0x60] sm:$0xf0] %v2408
  %2417 = vst [vmem:[#allocation4 + $0x68] sm:$0xf0] %v2409
  %2418 = vst [vmem:[#allocation4 + $0x70] sm:$0xf0] %v2410
  %2419 = vst [vmem:[#allocation4 + $0x78] sm:$0xf0] %v2411
  %v2420 = vld [vmem:[#allocation2 + $0x8] sm:$0xf]
  %v2421 = vld [vmem:[#allocation2 + $0x10] sm:$0xf]
  %v2422 = vld [vmem:[#allocation2 + $0x18] sm:$0xf]
  %2423 = vrot.lane.b32.xlu0 %v2058, 17
  %v2424 = vpop.permute.xlu0 %2423
  %2425 = vrot.lane.b32.xlu0 %v2059, 17
  %v2426 = vpop.permute.xlu0 %2425
  %v2427 = vsel %vm117, %v2424, %v2426
  %v2431 = vmul.f32 %v2420, %v2424
  %v2432 = vmul.f32 %v2421, %v2427
  %v2433 = vmul.f32 %v2422, %v2426
  %v2434 = vld [vmem:[#allocation2 + $0x20] sm:$0xf]
  %v2435 = vld [vmem:[#allocation2 + $0x28] sm:$0xf]
  %v2436 = vld [vmem:[#allocation2 + $0x30] sm:$0xf]
  %v2437 = vmul.f32 %v2434, %v2424
  %v2438 = vmul.f32 %v2435, %v2427
  %v2439 = vmul.f32 %v2436, %v2426
  %2443 = vrot.lane.b32.xlu0 %v2431, 111
  %v2444 = vpop.permute.xlu0 %2443
  %2445 = vrot.lane.b32.xlu0 %v2432, 111
  %v2446 = vpop.permute.xlu0 %2445
  %2447 = vrot.lane.b32.xlu0 %v2433, 111
  %v2448 = vpop.permute.xlu0 %2447
  %v2449 = vsel %vm94, %v2444, %v2446
  %v2450 = vsel %vm94, %v2446, %v2448
  %2456 = vrot.lane.b32.xlu0 %v2437, 111
  %v2457 = vpop.permute.xlu0 %2456
  %2458 = vrot.lane.b32.xlu0 %v2438, 111
  %v2459 = vpop.permute.xlu0 %2458
  %2460 = vrot.lane.b32.xlu0 %v2439, 111
  %v2461 = vpop.permute.xlu0 %2460
  %v2462 = vsel %vm94, %v2457, %v2459
  %v2463 = vsel %vm94, %v2459, %v2461
  %2466 = vst [vmem:[#allocation4 + $0x80] sm:$0xf] %v2449
  %2467 = vst [vmem:[#allocation4 + $0x88] sm:$0xf] %v2450
  %2468 = vst [vmem:[#allocation4 + $0x90] sm:$0xf] %v2462
  %2469 = vst [vmem:[#allocation4 + $0x98] sm:$0xf] %v2463
  %v2470 = vld [vmem:[%s8] sm:$0xf]
  %v2471 = vld [vmem:[#allocation4] sm:$0xff]
  %v2472 = vld [vmem:[#allocation4 + $0x8] sm:$0xff]
  %v2473 = vld [vmem:[#allocation4 + $0x10] sm:$0xff]
  %v2474 = vld [vmem:[#allocation4 + $0x18] sm:$0xff]
  %v2475 = vld [vmem:[#allocation4 + $0x20] sm:$0xff]
  %v2476 = vld [vmem:[#allocation4 + $0x28] sm:$0xff]
  %v2477 = vld [vmem:[#allocation4 + $0x30] sm:$0xff]
  %v2478 = vld [vmem:[#allocation4 + $0x38] sm:$0xff]
  %v2479 = vld [vmem:[#allocation4 + $0x40] sm:$0xff]
  %v2480 = vld [vmem:[#allocation4 + $0x48] sm:$0xff]
  %v2481 = vld [vmem:[#allocation4 + $0x50] sm:$0xff]
  %v2482 = vld [vmem:[#allocation4 + $0x58] sm:$0xff]
  %v2483 = vld [vmem:[#allocation4 + $0x60] sm:$0xff]
  %v2484 = vld [vmem:[#allocation4 + $0x68] sm:$0xff]
  %v2485 = vld [vmem:[#allocation4 + $0x70] sm:$0xff]
  %v2486 = vld [vmem:[#allocation4 + $0x78] sm:$0xff]
  %v2487 = vld [vmem:[#allocation4 + $0x80] sm:$0xff]
  %v2488 = vld [vmem:[#allocation4 + $0x88] sm:$0xff]
  %v2489 = vld [vmem:[#allocation4 + $0x90] sm:$0xff]
  %v2490 = vld [vmem:[#allocation4 + $0x98] sm:$0xff]
  %v2491 = vpack.c.bf16 %v2475, %v2471
  %v2492 = vpack.c.bf16 %v2476, %v2472
  %v2493 = vpack.c.bf16 %v2477, %v2473
  %v2494 = vpack.c.bf16 %v2478, %v2474
  %v2495 = vpack.c.bf16 %v2483, %v2479
  %v2496 = vpack.c.bf16 %v2484, %v2480
  %v2497 = vpack.c.bf16 %v2485, %v2481
  %v2498 = vpack.c.bf16 %v2486, %v2482
  %v2499 = vpack.c.bf16 %v2487, %v2487
  %v2500 = vpack.c.bf16 %v2488, %v2488
  %v2501 = vpack.c.bf16 %v2489, %v2489
  %v2502 = vpack.c.bf16 %v2490, %v2490
  %v2504 = vsel %vm526, %v2470, 0
  %v2507 = vsel %vm530, %v2499, 0
  %v2510 = vsel %vm530, %v2500, 0
  %v2513 = vsel %vm530, %v2501, 0
  %v2516 = vsel %vm530, %v2502, 0
  %2518 = vmatprep.subr.bf16.mxu0 %v2492
  %2519 = vmatpush1.bf16.msra.mxu0 %v2491
  %2520 = vmatprep.subr.bf16.mxu0 %v2496
  %2521 = vmatpush1.bf16.msra.mxu0 %v2495
  %2522 = vmatprep.subr.bf16.mxu0 %v2510
  %2523 = vmatpush1.bf16.msra.mxu0 %v2507
  %2524 = vmatprep.subr.bf16.mxu0 0
  %2525 = vmatpush1.bf16.msra.mxu0 0
  %2526 = vmatprep.subr.bf16.mxu0 0
  %2527 = vmatpush1.bf16.msra.mxu0 0
  %2528 = vmatprep.subr.bf16.mxu0 0
  %2529 = vmatpush1.bf16.msra.mxu0 0
  %2530 = vmatprep.subr.bf16.mxu0 0
  %2531 = vmatpush1.bf16.msra.mxu0 0
  %2532 = vmatprep.subr.bf16.mxu0 0
  %2533 = vmatpush1.bf16.msra.mxu0 0
  %2534 = vmatprep.subr.bf16.mxu0 0
  %2535 = vmatpush1.bf16.msra.mxu0 0
  %2536 = vmatprep.subr.bf16.mxu0 0
  %2537 = vmatpush1.bf16.msra.mxu0 0
  %2538 = vmatprep.subr.bf16.mxu0 0
  %2539 = vmatpush1.bf16.msra.mxu0 0
  %2540 = vmatprep.subr.bf16.mxu0 0
  %2541 = vmatpush1.bf16.msra.mxu0 0
  %2542 = vmatprep.subr.bf16.mxu0 0
  %2543 = vmatpush1.bf16.msra.mxu0 0
  %2544 = vmatprep.subr.bf16.mxu0 0
  %2545 = vmatpush1.bf16.msra.mxu0 0
  %2546 = vmatprep.subr.bf16.mxu0 0
  %2547 = vmatpush1.bf16.msra.mxu0 0
  %2548 = vmatprep.subr.bf16.mxu0 0
  %2549 = vmatpush1.bf16.msra.mxu0 0
  %2550 = vmatprep.mubr.bf16.mxu0 0
  %2551 = vmatmul.mubr.bf16.gmra.mrb[0].mxu0 %v2504
  %v2552 = vpop.f32.mrb[0].mxu0
  %v2553 = vadd.f32 0.0, %v2552
  %v2554 = vpop.f32.mrb[0].mxu0
  %v2555 = vadd.f32 0.0, %v2554
  %v2556 = vpop.f32.mrb[0].mxu0
  %v2557 = vpop.f32.mrb[0].mxu0
  %2558 = vdwg.mxu0
  %2559 = vmatprep.subr.bf16.mxu0 %v2494
  %2560 = vmatpush1.bf16.msra.mxu0 %v2493
  %2561 = vmatprep.subr.bf16.mxu0 %v2498
  %2562 = vmatpush1.bf16.msra.mxu0 %v2497
  %2563 = vmatprep.subr.bf16.mxu0 %v2516
  %2564 = vmatpush1.bf16.msra.mxu0 %v2513
  %2565 = vmatprep.subr.bf16.mxu0 0
  %2566 = vmatpush1.bf16.msra.mxu0 0
  %2567 = vmatprep.subr.bf16.mxu0 0
  %2568 = vmatpush1.bf16.msra.mxu0 0
  %2569 = vmatprep.subr.bf16.mxu0 0
  %2570 = vmatpush1.bf16.msra.mxu0 0
  %2571 = vmatprep.subr.bf16.mxu0 0
  %2572 = vmatpush1.bf16.msra.mxu0 0
  %2573 = vmatprep.subr.bf16.mxu0 0
  %2574 = vmatpush1.bf16.msra.mxu0 0
  %2575 = vmatprep.subr.bf16.mxu0 0
  %2576 = vmatpush1.bf16.msra.mxu0 0
  %2577 = vmatprep.subr.bf16.mxu0 0
  %2578 = vmatpush1.bf16.msra.mxu0 0
  %2579 = vmatprep.subr.bf16.mxu0 0
  %2580 = vmatpush1.bf16.msra.mxu0 0
  %2581 = vmatprep.subr.bf16.mxu0 0
  %2582 = vmatpush1.bf16.msra.mxu0 0
  %2583 = vmatprep.subr.bf16.mxu0 0
  %2584 = vmatpush1.bf16.msra.mxu0 0
  %2585 = vmatprep.subr.bf16.mxu0 0
  %2586 = vmatpush1.bf16.msra.mxu0 0
  %2587 = vmatprep.subr.bf16.mxu0 0
  %2588 = vmatpush1.bf16.msra.mxu0 0
  %2589 = vmatprep.subr.bf16.mxu0 0
  %2590 = vmatpush1.bf16.msra.mxu0 0
  %2591 = vmatprep.mubr.bf16.mxu0 0
  %2592 = vmatmul.mubr.bf16.gmra.mrb[0].mxu0 %v2504
  %v2593 = vpop.f32.mrb[0].mxu0
  %v2594 = vadd.f32 0.0, %v2593
  %v2595 = vpop.f32.mrb[0].mxu0
  %v2596 = vadd.f32 0.0, %v2595
  %v2597 = vpop.f32.mrb[0].mxu0
  %v2598 = vpop.f32.mrb[0].mxu0
  %2599 = vdwg.mxu0
  %v2600 = vmax.f32 %v2553, 0.0
  %v2601 = vmax.f32 %v2555, 0.0
  %v2602 = vmax.f32 %v2594, 0.0
  %v2603 = vmax.f32 %v2596, 0.0
  %v2604 = vld [vmem:[%s12] sm:$0xff]
  %v2605 = vld [vmem:[%s12 + $0x8] sm:$0xff]
  %v2606 = vld [vmem:[%s12 + $0x10] sm:$0xff]
  %v2607 = vld [vmem:[%s12 + $0x18] sm:$0xff]
  %2608 = vst [vmem:[#allocation2 + $0x8] sm:$0xff] %v2600
  %2609 = vst [vmem:[#allocation2 + $0x10] sm:$0xff] %v2601
  %2610 = vst [vmem:[#allocation2 + $0x20] sm:$0xff] %v2602
  %2611 = vst [vmem:[#allocation2 + $0x28] sm:$0xff] %v2603
  %v2612 = vld [vmem:[#allocation2] sm:$0xff]
  %v2613 = vld [vmem:[#allocation2 + $0x8] sm:$0xff]
  %v2614 = vld [vmem:[#allocation2 + $0x10] sm:$0xff]
  %2617 = vrot.lane.b32.xlu0 %v2604, 111
  %v2618 = vpop.permute.xlu0 %2617
  %2619 = vrot.lane.b32.xlu0 %v2605, 111
  %v2620 = vpop.permute.xlu0 %2619
  %v2621 = vsel %vm94, %v2618, %v2620
  %v2625 = vmul.f32 %v2612, %v2618
  %v2626 = vmul.f32 %v2613, %v2621
  %v2627 = vmul.f32 %v2614, %v2620
  %v2628 = vld [vmem:[#allocation2 + $0x18] sm:$0xff]
  %v2629 = vld [vmem:[#allocation2 + $0x20] sm:$0xff]
  %v2630 = vld [vmem:[#allocation2 + $0x28] sm:$0xff]
  %v2631 = vmul.f32 %v2628, %v2618
  %v2632 = vmul.f32 %v2629, %v2621
  %v2633 = vmul.f32 %v2630, %v2620
  %2637 = vrot.lane.b32.xlu0 %v2625, 17
  %v2638 = vpop.permute.xlu0 %2637
  %2639 = vrot.lane.b32.xlu0 %v2626, 17
  %v2640 = vpop.permute.xlu0 %2639
  %2641 = vrot.lane.b32.xlu0 %v2627, 17
  %v2642 = vpop.permute.xlu0 %2641
  %v2643 = vsel %vm117, %v2638, %v2640
  %v2644 = vsel %vm117, %v2640, %v2642
  %2650 = vrot.lane.b32.xlu0 %v2631, 17
  %v2651 = vpop.permute.xlu0 %2650
  %2652 = vrot.lane.b32.xlu0 %v2632, 17
  %v2653 = vpop.permute.xlu0 %2652
  %2654 = vrot.lane.b32.xlu0 %v2633, 17
  %v2655 = vpop.permute.xlu0 %2654
  %v2656 = vsel %vm117, %v2651, %v2653
  %v2657 = vsel %vm117, %v2653, %v2655
  %2660 = vst [vmem:[#allocation5] sm:$0xff] %v2643
  %2661 = vst [vmem:[#allocation5 + $0x8] sm:$0xff] %v2644
  %2662 = vst [vmem:[#allocation5 + $0x10] sm:$0xff] %v2656
  %2663 = vst [vmem:[#allocation5 + $0x18] sm:$0xff] %v2657
  %v2664 = vld [vmem:[#allocation2] sm:$0xff]
  %v2665 = vld [vmem:[#allocation2 + $0x8] sm:$0xff]
  %v2666 = vld [vmem:[#allocation2 + $0x10] sm:$0xff]
  %2667 = vrot.lane.b32.xlu0 %v2604, 127
  %v2668 = vpop.permute.xlu0 %2667
  %2669 = vrot.lane.b32.xlu0 %v2605, 127
  %v2670 = vpop.permute.xlu0 %2669
  %v2671 = vsel %vm146, %v2668, %v2670
  %v2675 = vmul.f32 %v2664, %v2668
  %v2676 = vmul.f32 %v2665, %v2671
  %v2677 = vmul.f32 %v2666, %v2670
  %v2678 = vld [vmem:[#allocation2 + $0x18] sm:$0xff]
  %v2679 = vld [vmem:[#allocation2 + $0x20] sm:$0xff]
  %v2680 = vld [vmem:[#allocation2 + $0x28] sm:$0xff]
  %v2681 = vmul.f32 %v2678, %v2668
  %v2682 = vmul.f32 %v2679, %v2671
  %v2683 = vmul.f32 %v2680, %v2670
  %2687 = vrot.lane.b32.xlu0 %v2675, 1
  %v2688 = vpop.permute.xlu0 %2687
  %2689 = vrot.lane.b32.xlu0 %v2676, 1
  %v2690 = vpop.permute.xlu0 %2689
  %2691 = vrot.lane.b32.xlu0 %v2677, 1
  %v2692 = vpop.permute.xlu0 %2691
  %v2693 = vsel %vm169, %v2688, %v2690
  %v2694 = vsel %vm169, %v2690, %v2692
  %2700 = vrot.lane.b32.xlu0 %v2681, 1
  %v2701 = vpop.permute.xlu0 %2700
  %2702 = vrot.lane.b32.xlu0 %v2682, 1
  %v2703 = vpop.permute.xlu0 %2702
  %2704 = vrot.lane.b32.xlu0 %v2683, 1
  %v2705 = vpop.permute.xlu0 %2704
  %v2706 = vsel %vm169, %v2701, %v2703
  %v2707 = vsel %vm169, %v2703, %v2705
  %2710 = vst [vmem:[#allocation5 + $0x20] sm:$0xff] %v2693
  %2711 = vst [vmem:[#allocation5 + $0x28] sm:$0xff] %v2694
  %2712 = vst [vmem:[#allocation5 + $0x30] sm:$0xff] %v2706
  %2713 = vst [vmem:[#allocation5 + $0x38] sm:$0xff] %v2707
  %v2714 = vld [vmem:[#allocation2 + $0x8] sm:$0xff]
  %v2715 = vld [vmem:[#allocation2 + $0x10] sm:$0xff]
  %v2716 = vld [vmem:[#allocation2 + $0x18] sm:$0xff]
  %2717 = vrot.lane.b32.xlu0 %v2604, 15
  %v2718 = vpop.permute.xlu0 %2717
  %2719 = vrot.lane.b32.xlu0 %v2605, 15
  %v2720 = vpop.permute.xlu0 %2719
  %v2721 = vsel %vm202, %v2718, %v2720
  %v2725 = vmul.f32 %v2714, %v2718
  %v2726 = vmul.f32 %v2715, %v2721
  %v2727 = vmul.f32 %v2716, %v2720
  %v2728 = vld [vmem:[#allocation2 + $0x20] sm:$0xff]
  %v2729 = vld [vmem:[#allocation2 + $0x28] sm:$0xff]
  %v2730 = vld [vmem:[#allocation2 + $0x30] sm:$0xff]
  %v2731 = vmul.f32 %v2728, %v2718
  %v2732 = vmul.f32 %v2729, %v2721
  %v2733 = vmul.f32 %v2730, %v2720
  %2737 = vrot.lane.b32.xlu0 %v2725, 113
  %v2738 = vpop.permute.xlu0 %2737
  %2739 = vrot.lane.b32.xlu0 %v2726, 113
  %v2740 = vpop.permute.xlu0 %2739
  %2741 = vrot.lane.b32.xlu0 %v2727, 113
  %v2742 = vpop.permute.xlu0 %2741
  %v2743 = vsel %vm225, %v2738, %v2740
  %v2744 = vsel %vm225, %v2740, %v2742
  %2750 = vrot.lane.b32.xlu0 %v2731, 113
  %v2751 = vpop.permute.xlu0 %2750
  %2752 = vrot.lane.b32.xlu0 %v2732, 113
  %v2753 = vpop.permute.xlu0 %2752
  %2754 = vrot.lane.b32.xlu0 %v2733, 113
  %v2755 = vpop.permute.xlu0 %2754
  %v2756 = vsel %vm225, %v2751, %v2753
  %v2757 = vsel %vm225, %v2753, %v2755
  %2760 = vst [vmem:[#allocation5 + $0x40] sm:$0xff] %v2743
  %2761 = vst [vmem:[#allocation5 + $0x48] sm:$0xff] %v2744
  %2762 = vst [vmem:[#allocation5 + $0x50] sm:$0xff] %v2756
  %2763 = vst [vmem:[#allocation5 + $0x58] sm:$0xff] %v2757
  %v2764 = vld [vmem:[#allocation2] sm:$0xff]
  %v2765 = vld [vmem:[#allocation2 + $0x8] sm:$0xff]
  %v2766 = vld [vmem:[#allocation2 + $0x10] sm:$0xff]
  %v2767 = vld [vmem:[#allocation2 + $0x18] sm:$0xff]
  %v2768 = vld [vmem:[#allocation2 + $0x20] sm:$0xff]
  %v2769 = vld [vmem:[#allocation2 + $0x28] sm:$0xff]
  %2773 = vrot.lane.b32.xlu0 %v2764, 16
  %v2774 = vpop.permute.xlu0 %2773
  %2775 = vrot.lane.b32.xlu0 %v2765, 16
  %v2776 = vpop.permute.xlu0 %2775
  %2777 = vrot.lane.b32.xlu0 %v2766, 16
  %v2778 = vpop.permute.xlu0 %2777
  %v2779 = vsel %vm262, %v2774, %v2776
  %v2780 = vsel %vm262, %v2776, %v2778
  %2786 = vrot.lane.b32.xlu0 %v2767, 16
  %v2787 = vpop.permute.xlu0 %2786
  %2788 = vrot.lane.b32.xlu0 %v2768, 16
  %v2789 = vpop.permute.xlu0 %2788
  %2790 = vrot.lane.b32.xlu0 %v2769, 16
  %v2791 = vpop.permute.xlu0 %2790
  %v2792 = vsel %vm262, %v2787, %v2789
  %v2793 = vsel %vm262, %v2789, %v2791
  %2796 = vst [vmem:[#allocation5 + $0x60] sm:$0xff] %v2779
  %2797 = vst [vmem:[#allocation5 + $0x68] sm:$0xff] %v2780
  %2798 = vst [vmem:[#allocation5 + $0x70] sm:$0xff] %v2792
  %2799 = vst [vmem:[#allocation5 + $0x78] sm:$0xff] %v2793
  %v2800 = vld [vmem:[#allocation2 + $0x8] sm:$0xff]
  %v2801 = vld [vmem:[#allocation2 + $0x10] sm:$0xff]
  %v2802 = vld [vmem:[#allocation2 + $0x20] sm:$0xff]
  %v2803 = vld [vmem:[#allocation2 + $0x28] sm:$0xff]
  %2804 = vst [vmem:[#allocation5 + $0x80] sm:$0xff] %v2800
  %2805 = vst [vmem:[#allocation5 + $0x88] sm:$0xff] %v2801
  %2806 = vst [vmem:[#allocation5 + $0x90] sm:$0xff] %v2802
  %2807 = vst [vmem:[#allocation5 + $0x98] sm:$0xff] %v2803
  %v2808 = vld [vmem:[#allocation2 + $0x8] sm:$0xff]
  %v2809 = vld [vmem:[#allocation2 + $0x10] sm:$0xff]
  %v2810 = vld [vmem:[#allocation2 + $0x18] sm:$0xff]
  %v2811 = vld [vmem:[#allocation2 + $0x20] sm:$0xff]
  %v2812 = vld [vmem:[#allocation2 + $0x28] sm:$0xff]
  %v2813 = vld [vmem:[#allocation2 + $0x30] sm:$0xff]
  %2817 = vrot.lane.b32.xlu0 %v2808, 112
  %v2818 = vpop.permute.xlu0 %2817
  %2819 = vrot.lane.b32.xlu0 %v2809, 112
  %v2820 = vpop.permute.xlu0 %2819
  %2821 = vrot.lane.b32.xlu0 %v2810, 112
  %v2822 = vpop.permute.xlu0 %2821
  %v2823 = vsel %vm311, %v2818, %v2820
  %v2824 = vsel %vm311, %v2820, %v2822
  %2830 = vrot.lane.b32.xlu0 %v2811, 112
  %v2831 = vpop.permute.xlu0 %2830
  %2832 = vrot.lane.b32.xlu0 %v2812, 112
  %v2833 = vpop.permute.xlu0 %2832
  %2834 = vrot.lane.b32.xlu0 %v2813, 112
  %v2835 = vpop.permute.xlu0 %2834
  %v2836 = vsel %vm311, %v2831, %v2833
  %v2837 = vsel %vm311, %v2833, %v2835
  %2840 = vst [vmem:[#allocation5 + $0xa0] sm:$0xff] %v2823
  %2841 = vst [vmem:[#allocation5 + $0xa8] sm:$0xff] %v2824
  %2842 = vst [vmem:[#allocation5 + $0xb0] sm:$0xff] %v2836
  %2843 = vst [vmem:[#allocation5 + $0xb8] sm:$0xff] %v2837
  %v2844 = vld [vmem:[#allocation2] sm:$0xff]
  %v2845 = vld [vmem:[#allocation2 + $0x8] sm:$0xff]
  %v2846 = vld [vmem:[#allocation2 + $0x10] sm:$0xff]
  %2849 = vrot.lane.b32.xlu0 %v2606, 113
  %v2850 = vpop.permute.xlu0 %2849
  %2851 = vrot.lane.b32.xlu0 %v2607, 113
  %v2852 = vpop.permute.xlu0 %2851
  %v2853 = vsel %vm225, %v2850, %v2852
  %v2857 = vmul.f32 %v2844, %v2850
  %v2858 = vmul.f32 %v2845, %v2853
  %v2859 = vmul.f32 %v2846, %v2852
  %v2860 = vld [vmem:[#allocation2 + $0x18] sm:$0xff]
  %v2861 = vld [vmem:[#allocation2 + $0x20] sm:$0xff]
  %v2862 = vld [vmem:[#allocation2 + $0x28] sm:$0xff]
  %v2863 = vmul.f32 %v2860, %v2850
  %v2864 = vmul.f32 %v2861, %v2853
  %v2865 = vmul.f32 %v2862, %v2852
  %2869 = vrot.lane.b32.xlu0 %v2857, 15
  %v2870 = vpop.permute.xlu0 %2869
  %2871 = vrot.lane.b32.xlu0 %v2858, 15
  %v2872 = vpop.permute.xlu0 %2871
  %2873 = vrot.lane.b32.xlu0 %v2859, 15
  %v2874 = vpop.permute.xlu0 %2873
  %v2875 = vsel %vm202, %v2870, %v2872
  %v2876 = vsel %vm202, %v2872, %v2874
  %2882 = vrot.lane.b32.xlu0 %v2863, 15
  %v2883 = vpop.permute.xlu0 %2882
  %2884 = vrot.lane.b32.xlu0 %v2864, 15
  %v2885 = vpop.permute.xlu0 %2884
  %2886 = vrot.lane.b32.xlu0 %v2865, 15
  %v2887 = vpop.permute.xlu0 %2886
  %v2888 = vsel %vm202, %v2883, %v2885
  %v2889 = vsel %vm202, %v2885, %v2887
  %2892 = vst [vmem:[#allocation5 + $0xc0] sm:$0xff] %v2875
  %2893 = vst [vmem:[#allocation5 + $0xc8] sm:$0xff] %v2876
  %2894 = vst [vmem:[#allocation5 + $0xd0] sm:$0xff] %v2888
  %2895 = vst [vmem:[#allocation5 + $0xd8] sm:$0xff] %v2889
  %v2896 = vld [vmem:[#allocation2 + $0x8] sm:$0xff]
  %v2897 = vld [vmem:[#allocation2 + $0x10] sm:$0xff]
  %v2898 = vld [vmem:[#allocation2 + $0x18] sm:$0xff]
  %2899 = vrot.lane.b32.xlu0 %v2606, 1
  %v2900 = vpop.permute.xlu0 %2899
  %2901 = vrot.lane.b32.xlu0 %v2607, 1
  %v2902 = vpop.permute.xlu0 %2901
  %v2903 = vsel %vm169, %v2900, %v2902
  %v2907 = vmul.f32 %v2896, %v2900
  %v2908 = vmul.f32 %v2897, %v2903
  %v2909 = vmul.f32 %v2898, %v2902
  %v2910 = vld [vmem:[#allocation2 + $0x20] sm:$0xff]
  %v2911 = vld [vmem:[#allocation2 + $0x28] sm:$0xff]
  %v2912 = vld [vmem:[#allocation2 + $0x30] sm:$0xff]
  %v2913 = vmul.f32 %v2910, %v2900
  %v2914 = vmul.f32 %v2911, %v2903
  %v2915 = vmul.f32 %v2912, %v2902
  %2919 = vrot.lane.b32.xlu0 %v2907, 127
  %v2920 = vpop.permute.xlu0 %2919
  %2921 = vrot.lane.b32.xlu0 %v2908, 127
  %v2922 = vpop.permute.xlu0 %2921
  %2923 = vrot.lane.b32.xlu0 %v2909, 127
  %v2924 = vpop.permute.xlu0 %2923
  %v2925 = vsel %vm146, %v2920, %v2922
  %v2926 = vsel %vm146, %v2922, %v2924
  %2932 = vrot.lane.b32.xlu0 %v2913, 127
  %v2933 = vpop.permute.xlu0 %2932
  %2934 = vrot.lane.b32.xlu0 %v2914, 127
  %v2935 = vpop.permute.xlu0 %2934
  %2936 = vrot.lane.b32.xlu0 %v2915, 127
  %v2937 = vpop.permute.xlu0 %2936
  %v2938 = vsel %vm146, %v2933, %v2935
  %v2939 = vsel %vm146, %v2935, %v2937
  %2942 = vst [vmem:[#allocation5 + $0xe0] sm:$0xff] %v2925
  %2943 = vst [vmem:[#allocation5 + $0xe8] sm:$0xff] %v2926
  %2944 = vst [vmem:[#allocation5 + $0xf0] sm:$0xff] %v2938
  %2945 = vst [vmem:[#allocation5 + $0xf8] sm:$0xff] %v2939
  %v2946 = vld [vmem:[#allocation2 + $0x8] sm:$0xff]
  %v2947 = vld [vmem:[#allocation2 + $0x10] sm:$0xff]
  %v2948 = vld [vmem:[#allocation2 + $0x18] sm:$0xff]
  %2949 = vrot.lane.b32.xlu0 %v2606, 17
  %v2950 = vpop.permute.xlu0 %2949
  %2951 = vrot.lane.b32.xlu0 %v2607, 17
  %v2952 = vpop.permute.xlu0 %2951
  %v2953 = vsel %vm117, %v2950, %v2952
  %v2957 = vmul.f32 %v2946, %v2950
  %v2958 = vmul.f32 %v2947, %v2953
  %v2959 = vmul.f32 %v2948, %v2952
  %v2960 = vld [vmem:[#allocation2 + $0x20] sm:$0xff]
  %v2961 = vld [vmem:[#allocation2 + $0x28] sm:$0xff]
  %v2962 = vld [vmem:[#allocation2 + $0x30] sm:$0xff]
  %v2963 = vmul.f32 %v2960, %v2950
  %v2964 = vmul.f32 %v2961, %v2953
  %v2965 = vmul.f32 %v2962, %v2952
  %2969 = vrot.lane.b32.xlu0 %v2957, 111
  %v2970 = vpop.permute.xlu0 %2969
  %2971 = vrot.lane.b32.xlu0 %v2958, 111
  %v2972 = vpop.permute.xlu0 %2971
  %2973 = vrot.lane.b32.xlu0 %v2959, 111
  %v2974 = vpop.permute.xlu0 %2973
  %v2975 = vsel %vm94, %v2970, %v2972
  %v2976 = vsel %vm94, %v2972, %v2974
  %2982 = vrot.lane.b32.xlu0 %v2963, 111
  %v2983 = vpop.permute.xlu0 %2982
  %2984 = vrot.lane.b32.xlu0 %v2964, 111
  %v2985 = vpop.permute.xlu0 %2984
  %2986 = vrot.lane.b32.xlu0 %v2965, 111
  %v2987 = vpop.permute.xlu0 %2986
  %v2988 = vsel %vm94, %v2983, %v2985
  %v2989 = vsel %vm94, %v2985, %v2987
  %2992 = vst [vmem:[#allocation5 + $0x100] sm:$0xff] %v2975
  %2993 = vst [vmem:[#allocation5 + $0x108] sm:$0xff] %v2976
  %2994 = vst [vmem:[#allocation5 + $0x110] sm:$0xff] %v2988
  %2995 = vst [vmem:[#allocation5 + $0x118] sm:$0xff] %v2989
  %v2996 = vld [vmem:[%s9] sm:$0x3]
  %v2997 = vld [vmem:[#allocation5] sm:$0xff]
  %v2998 = vld [vmem:[#allocation5 + $0x8] sm:$0xff]
  %v2999 = vld [vmem:[#allocation5 + $0x10] sm:$0xff]
  %v3000 = vld [vmem:[#allocation5 + $0x18] sm:$0xff]
  %v3001 = vld [vmem:[#allocation5 + $0x20] sm:$0xff]
  %v3002 = vld [vmem:[#allocation5 + $0x28] sm:$0xff]
  %v3003 = vld [vmem:[#allocation5 + $0x30] sm:$0xff]
  %v3004 = vld [vmem:[#allocation5 + $0x38] sm:$0xff]
  %v3005 = vld [vmem:[#allocation5 + $0x40] sm:$0xff]
  %v3006 = vld [vmem:[#allocation5 + $0x48] sm:$0xff]
  %v3007 = vld [vmem:[#allocation5 + $0x50] sm:$0xff]
  %v3008 = vld [vmem:[#allocation5 + $0x58] sm:$0xff]
  %v3009 = vld [vmem:[#allocation5 + $0x60] sm:$0xff]
  %v3010 = vld [vmem:[#allocation5 + $0x68] sm:$0xff]
  %v3011 = vld [vmem:[#allocation5 + $0x70] sm:$0xff]
  %v3012 = vld [vmem:[#allocation5 + $0x78] sm:$0xff]
  %v3013 = vld [vmem:[#allocation5 + $0x80] sm:$0xff]
  %v3014 = vld [vmem:[#allocation5 + $0x88] sm:$0xff]
  %v3015 = vld [vmem:[#allocation5 + $0x90] sm:$0xff]
  %v3016 = vld [vmem:[#allocation5 + $0x98] sm:$0xff]
  %v3017 = vld [vmem:[#allocation5 + $0xa0] sm:$0xff]
  %v3018 = vld [vmem:[#allocation5 + $0xa8] sm:$0xff]
  %v3019 = vld [vmem:[#allocation5 + $0xb0] sm:$0xff]
  %v3020 = vld [vmem:[#allocation5 + $0xb8] sm:$0xff]
  %v3021 = vld [vmem:[#allocation5 + $0xc0] sm:$0xff]
  %v3022 = vld [vmem:[#allocation5 + $0xc8] sm:$0xff]
  %v3023 = vld [vmem:[#allocation5 + $0xd0] sm:$0xff]
  %v3024 = vld [vmem:[#allocation5 + $0xd8] sm:$0xff]
  %v3025 = vld [vmem:[#allocation5 + $0xe0] sm:$0xff]
  %v3026 = vld [vmem:[#allocation5 + $0xe8] sm:$0xff]
  %v3027 = vld [vmem:[#allocation5 + $0xf0] sm:$0xff]
  %v3028 = vld [vmem:[#allocation5 + $0xf8] sm:$0xff]
  %v3029 = vld [vmem:[#allocation5 + $0x100] sm:$0xff]
  %v3030 = vld [vmem:[#allocation5 + $0x108] sm:$0xff]
  %v3031 = vld [vmem:[#allocation5 + $0x110] sm:$0xff]
  %v3032 = vld [vmem:[#allocation5 + $0x118] sm:$0xff]
  %v3033 = vpack.c.bf16 %v3001, %v2997
  %v3034 = vpack.c.bf16 %v3002, %v2998
  %v3035 = vpack.c.bf16 %v3003, %v2999
  %v3036 = vpack.c.bf16 %v3004, %v3000
  %v3037 = vpack.c.bf16 %v3009, %v3005
  %v3038 = vpack.c.bf16 %v3010, %v3006
  %v3039 = vpack.c.bf16 %v3011, %v3007
  %v3040 = vpack.c.bf16 %v3012, %v3008
  %v3041 = vpack.c.bf16 %v3017, %v3013
  %v3042 = vpack.c.bf16 %v3018, %v3014
  %v3043 = vpack.c.bf16 %v3019, %v3015
  %v3044 = vpack.c.bf16 %v3020, %v3016
  %v3045 = vpack.c.bf16 %v3025, %v3021
  %v3046 = vpack.c.bf16 %v3026, %v3022
  %v3047 = vpack.c.bf16 %v3027, %v3023
  %v3048 = vpack.c.bf16 %v3028, %v3024
  %v3049 = vpack.c.bf16 %v3029, %v3029
  %v3050 = vpack.c.bf16 %v3030, %v3030
  %v3051 = vpack.c.bf16 %v3031, %v3031
  %v3052 = vpack.c.bf16 %v3032, %v3032
  %v3054 = vsel %vm1078, %v2996, 0
  %v3057 = vsel %vm530, %v3049, 0
  %v3060 = vsel %vm530, %v3050, 0
  %v3063 = vsel %vm530, %v3051, 0
  %v3066 = vsel %vm530, %v3052, 0
  %3068 = vmatprep.subr.bf16.mxu0 %v3034
  %3069 = vmatpush1.bf16.msra.mxu0 %v3033
  %3070 = vmatprep.subr.bf16.mxu0 %v3038
  %3071 = vmatpush1.bf16.msra.mxu0 %v3037
  %3072 = vmatprep.subr.bf16.mxu0 %v3042
  %3073 = vmatpush1.bf16.msra.mxu0 %v3041
  %3074 = vmatprep.subr.bf16.mxu0 %v3046
  %3075 = vmatpush1.bf16.msra.mxu0 %v3045
  %3076 = vmatprep.subr.bf16.mxu0 %v3060
  %3077 = vmatpush1.bf16.msra.mxu0 %v3057
  %3078 = vmatprep.subr.bf16.mxu0 0
  %3079 = vmatpush1.bf16.msra.mxu0 0
  %3080 = vmatprep.subr.bf16.mxu0 0
  %3081 = vmatpush1.bf16.msra.mxu0 0
  %3082 = vmatprep.subr.bf16.mxu0 0
  %3083 = vmatpush1.bf16.msra.mxu0 0
  %3084 = vmatprep.subr.bf16.mxu0 0
  %3085 = vmatpush1.bf16.msra.mxu0 0
  %3086 = vmatprep.subr.bf16.mxu0 0
  %3087 = vmatpush1.bf16.msra.mxu0 0
  %3088 = vmatprep.subr.bf16.mxu0 0
  %3089 = vmatpush1.bf16.msra.mxu0 0
  %3090 = vmatprep.subr.bf16.mxu0 0
  %3091 = vmatpush1.bf16.msra.mxu0 0
  %3092 = vmatprep.subr.bf16.mxu0 0
  %3093 = vmatpush1.bf16.msra.mxu0 0
  %3094 = vmatprep.subr.bf16.mxu0 0
  %3095 = vmatpush1.bf16.msra.mxu0 0
  %3096 = vmatprep.subr.bf16.mxu0 0
  %3097 = vmatpush1.bf16.msra.mxu0 0
  %3098 = vmatprep.subr.bf16.mxu0 0
  %3099 = vmatpush1.bf16.msra.mxu0 0
  %3100 = vmatprep.mubr.bf16.mxu0 0
  %3101 = vmatmul.mubr.bf16.gmra.mrb[0].mxu0 %v3054
  %v3102 = vpop.f32.mrb[0].mxu0
  %v3103 = vadd.f32 0.0, %v3102
  %v3104 = vpop.f32.mrb[0].mxu0
  %v3105 = vadd.f32 0.0, %v3104
  %v3106 = vpop.f32.mrb[0].mxu0
  %v3107 = vpop.f32.mrb[0].mxu0
  %3108 = vdwg.mxu0
  %3109 = vmatprep.subr.bf16.mxu0 %v3036
  %3110 = vmatpush1.bf16.msra.mxu0 %v3035
  %3111 = vmatprep.subr.bf16.mxu0 %v3040
  %3112 = vmatpush1.bf16.msra.mxu0 %v3039
  %3113 = vmatprep.subr.bf16.mxu0 %v3044
  %3114 = vmatpush1.bf16.msra.mxu0 %v3043
  %3115 = vmatprep.subr.bf16.mxu0 %v3048
  %3116 = vmatpush1.bf16.msra.mxu0 %v3047
  %3117 = vmatprep.subr.bf16.mxu0 %v3066
  %3118 = vmatpush1.bf16.msra.mxu0 %v3063
  %3119 = vmatprep.subr.bf16.mxu0 0
  %3120 = vmatpush1.bf16.msra.mxu0 0
  %3121 = vmatprep.subr.bf16.mxu0 0
  %3122 = vmatpush1.bf16.msra.mxu0 0
  %3123 = vmatprep.subr.bf16.mxu0 0
  %3124 = vmatpush1.bf16.msra.mxu0 0
  %3125 = vmatprep.subr.bf16.mxu0 0
  %3126 = vmatpush1.bf16.msra.mxu0 0
  %3127 = vmatprep.subr.bf16.mxu0 0
  %3128 = vmatpush1.bf16.msra.mxu0 0
  %3129 = vmatprep.subr.bf16.mxu0 0
  %3130 = vmatpush1.bf16.msra.mxu0 0
  %3131 = vmatprep.subr.bf16.mxu0 0
  %3132 = vmatpush1.bf16.msra.mxu0 0
  %3133 = vmatprep.subr.bf16.mxu0 0
  %3134 = vmatpush1.bf16.msra.mxu0 0
  %3135 = vmatprep.subr.bf16.mxu0 0
  %3136 = vmatpush1.bf16.msra.mxu0 0
  %3137 = vmatprep.subr.bf16.mxu0 0
  %3138 = vmatpush1.bf16.msra.mxu0 0
  %3139 = vmatprep.subr.bf16.mxu0 0
  %3140 = vmatpush1.bf16.msra.mxu0 0
  %3141 = vmatprep.mubr.bf16.mxu0 0
  %3142 = vmatmul.mubr.bf16.gmra.mrb[0].mxu0 %v3054
  %v3143 = vpop.f32.mrb[0].mxu0
  %v3144 = vadd.f32 0.0, %v3143
  %v3145 = vpop.f32.mrb[0].mxu0
  %v3146 = vadd.f32 0.0, %v3145
  %v3147 = vpop.f32.mrb[0].mxu0
  %v3148 = vpop.f32.mrb[0].mxu0
  %3149 = vdwg.mxu0
  %v3154 = vcombine.low %v3103, %v3105
  %v3155 = vcombine.low %v3144, %v3146
  %3158 = vst [vmem:[%s14] sm:$0xff] %v3154
  %3159 = vst [vmem:[%s14 + $0x8] sm:$0xff] %v3155
  %3160 = vst [vmem:[%s15] sm:$0xf] %v1895
  // Predicated region
  $region58: #{lr_block.1} parent=0 // pred_check
    _
  $region59: #{lr_block.1} parent=0 // pred_check_branch
    %3162 = sbr.rel (0) target = $region61
  $region60: #{lr_block.1} parent=0 // pred_region
    _
  $region61: #{lr_block.1} parent=0 // pred_fallthru
    _
  // Predicated region
  $region62: #{lr_block.1} parent=0 // pred_check
    _
  $region63: #{lr_block.1} parent=0 // pred_check_branch
    %3164 = sbr.rel (0) target = $region65
  $region64: #{lr_block.1} parent=0 // pred_region
    _
  $region65: #{lr_block.1} parent=0 // pred_fallthru
    _
  // Predicated region
  $region66: #{lr_block.1} parent=0 // pred_check
    _
  $region67: #{lr_block.1} parent=0 // pred_check_branch
    %3166 = sbr.rel (0) target = $region69
  $region68: #{lr_block.1} parent=0 // pred_region
    _
  $region69: #{lr_block.1} parent=0 // pred_fallthru
    _
  // Predicated region
  $region70: #{lr_block.1} parent=0 // pred_check
    _
  $region71: #{lr_block.1} parent=0 // pred_check_branch
    %3168 = sbr.rel (0) target = $region73
  $region72: #{lr_block.1} parent=0 // pred_region
    _
  $region73: #{lr_block.1} parent=0 // pred_fallthru
    _

</llo_original>
